<compile_context>
chip_gen: v6e
topology: v6e:2x2x1
jax: 0.10.0
libtpu: 0.0.40
codegen_flags: <defaults>
</compile_context>

<pallas_src>
import functools

import jax
import jax.numpy as jnp
from jax.experimental import pallas as pl
from jax.experimental.pallas import tpu as pltpu


def _round_up(n, m):
    return ((n + m - 1) // m) * m


def _has_bf16_vpu():
    """True on chips with a native bf16 VPU (v6e / v7x); False on v4/v5."""
    try:
        kind = jax.devices()[0].device_kind.lower()
    except Exception:
        return False
    return ("v6" in kind) or ("v7" in kind) or ("trillium" in kind)


def _pick_batch_tile(batch):
    """Rows per grid step.

    Small batches: one tile rounded up to the 8-sublane granule (no wasted
    compute).  Large batches: big (<=512 row) tiles, but always >= 2
    'parallel' grid steps so both TensorCores on v7x get work.
    """
    if batch <= 256:
        return _round_up(max(batch, 8), 8)
    half = -(-batch // 2)
    return min(512, _round_up(half, 8))


def _encoder_kernel(x_ref,
                    w1_ref, b1_ref,
                    w2_ref, b2_ref,
                    w3_ref, b3_ref,
                    w4_ref, b4_ref,
                    o_ref):
    """Fused (Linear -> ReLU) x3 -> Linear.

    MXU operands are in the weights' dtype (bf16) with f32 accumulation via
    preferred_element_type.  The bias+ReLU epilogue runs in the biases' dtype
    (bf16 on v6e/v7x, f32 on v5e which has no bf16 VPU).  The final bias-add
    stays in f32.
    """
    cd = w2_ref.dtype          # MXU operand dtype (bf16)
    ep = b1_ref.dtype          # epilogue dtype (bf16 or f32)

    h = jnp.dot(x_ref[...].astype(cd), w1_ref[...],
                preferred_element_type=jnp.float32)
    h = jnp.maximum(h.astype(ep) + b1_ref[...], 0).astype(cd)

    h = jnp.dot(h, w2_ref[...], preferred_element_type=jnp.float32)
    h = jnp.maximum(h.astype(ep) + b2_ref[...], 0).astype(cd)

    h = jnp.dot(h, w3_ref[...], preferred_element_type=jnp.float32)
    h = jnp.maximum(h.astype(ep) + b3_ref[...], 0).astype(cd)

    h = jnp.dot(h, w4_ref[...], preferred_element_type=jnp.float32)
    o_ref[...] = (h + b4_ref[...]).astype(o_ref.dtype)


def prepare_params(params, *, compute_dtype=jnp.bfloat16, epilogue_dtype=None):
    """Pad + cast the weights ONCE (hoisted out of the per-call path).

    Output columns (and the matching next-layer rows) are zero-padded to
    multiples of 128 lanes so every matmul and store is lane-dense and
    unmasked.  ReLU preserves the zero padding, so the math is unchanged.
    Weight rows of layer 1 stay at the logical input_dim (x is not padded).
    """
    if epilogue_dtype is None:
        epilogue_dtype = jnp.bfloat16 if _has_bf16_vpu() else jnp.float32

    in_dim = params["w1"].shape[0]
    d1, d2, d3, d4 = (params[f"w{i}"].shape[1] for i in (1, 2, 3, 4))
    p1, p2, p3, p4 = (_round_up(d, 128) for d in (d1, d2, d3, d4))

    def pad(a, rows, cols, dt):
        a = jnp.pad(a, ((0, rows - a.shape[0]), (0, cols - a.shape[1])))
        return a.astype(dt)

    return {
        "w1": pad(params["w1"], in_dim, p1, compute_dtype),
        "b1": pad(params["b1"], 1, p1, epilogue_dtype),
        "w2": pad(params["w2"], p1, p2, compute_dtype),
        "b2": pad(params["b2"], 1, p2, epilogue_dtype),
        "w3": pad(params["w3"], p2, p3, compute_dtype),
        "b3": pad(params["b3"], 1, p3, epilogue_dtype),
        "w4": pad(params["w4"], p3, p4, compute_dtype),
        # Final bias-add stays f32 (cheap; keeps output precision).
        "b4": pad(params["b4"], 1, p4, jnp.float32),
    }
    # TODO(synk): optional v7x-only fp8 quantization of w3 (64% of FLOPs) not
    # implemented; bf16 is the portable default.


@functools.partial(jax.jit, static_argnames=("batch_tile", "out_dim"))
def _encoder_forward_jit(x, prepared, *, batch_tile, out_dim):
    B, in_dim = x.shape
    w1, b1 = prepared["w1"], prepared["b1"]
    w2, b2 = prepared["w2"], prepared["b2"]
    w3, b3 = prepared["w3"], prepared["b3"]
    w4, b4 = prepared["w4"], prepared["b4"]
    p4 = w4.shape[1]

    Bp = _round_up(max(B, 1), batch_tile)
    x_p = x if Bp == B else jnp.pad(x, ((0, Bp - B), (0, 0)))

    grid = (Bp // batch_tile,)

    def const_spec(shape):
        # Constant index_map: the block stays resident in VMEM across grid
        # steps (no re-DMA), so no Buffered(1) probe is needed.
        return pl.BlockSpec(shape, lambda i: (0, 0))

    out_p = pl.pallas_call(
        _encoder_kernel,
        out_shape=jax.ShapeDtypeStruct((Bp, p4), jnp.float32),
        grid_spec=pltpu.PrefetchScalarGridSpec(
            num_scalar_prefetch=0,
            grid=grid,
            in_specs=[
                # Last block dim == full array dim (allowed), so x needs no
                # lane padding and no inflated HBM copy.
                pl.BlockSpec((batch_tile, in_dim), lambda i: (i, 0)),
                const_spec(w1.shape), const_spec(b1.shape),
                const_spec(w2.shape), const_spec(b2.shape),
                const_spec(w3.shape), const_spec(b3.shape),
                const_spec(w4.shape), const_spec(b4.shape),
            ],
            out_specs=pl.BlockSpec((batch_tile, p4), lambda i: (i, 0)),
        ),
        compiler_params=pltpu.CompilerParams(
            dimension_semantics=("parallel",),
            # ~7 MB of weights + activations; 48 MiB stays under v7x's 64 MiB
            # physical VMEM and is ample on v5e/v6e.
            vmem_limit_bytes=48 * 1024 * 1024,
        ),
    )(x_p, w1, b1, w2, b2, w3, b3, w4, b4)

    return out_p[:B, :out_dim]


def encoder_forward(x, prepared, *, feature_dim, batch_tile=None):
    """x: (B, input_dim) f32; prepared: output of prepare_params()."""
    if batch_tile is None:
        batch_tile = _pick_batch_tile(x.shape[0])
    return _encoder_forward_jit(x, prepared, batch_tile=batch_tile,
                                out_dim=feature_dim)


def init_params(key, input_dim, feature_dim):
    """Deterministic synthetic parameters (PyTorch-style uniform init)."""
    dims = [(input_dim, 500), (500, 500), (500, 2000), (2000, feature_dim)]
    params = {}
    for i, (fan_in, fan_out) in enumerate(dims, start=1):
        key, kw, kb = jax.random.split(key, 3)
        bound = 1.0 / jnp.sqrt(fan_in)
        params[f"w{i}"] = jax.random.uniform(
            kw, (fan_in, fan_out), jnp.float32, minval=-bound, maxval=bound)
        params[f"b{i}"] = jax.random.uniform(
            kb, (1, fan_out), jnp.float32, minval=-bound, maxval=bound)
    return params


def encoder_ref(x, params):
    """Pure-JAX f32 reference for correctness check."""
    h = jnp.maximum(x @ params["w1"] + params["b1"], 0.0)
    h = jnp.maximum(h @ params["w2"] + params["b2"], 0.0)
    h = jnp.maximum(h @ params["w3"] + params["b3"], 0.0)
    return h @ params["w4"] + params["b4"]


if __name__ == "__main__":
    key = jax.random.PRNGKey(0)
    input_dim = 32
    feature_dim = 16
    batch = 8

    kx, kp = jax.random.split(key)
    x = jax.random.normal(kx, (batch, input_dim), dtype=jnp.float32)
    params = init_params(kp, input_dim, feature_dim)

    prepared = prepare_params(params)          # pad + cast once, outside jit
    out = encoder_forward(x, prepared, feature_dim=feature_dim)
    out = jax.block_until_ready(out)

    ref = encoder_ref(x, params)
    assert out.shape == (batch, feature_dim), out.shape
    # bf16 matmul operands / epilogue with f32 accumulation -> loose tol.
    max_err = float(jnp.max(jnp.abs(out - ref)))
    assert jnp.allclose(out, ref, atol=5e-2, rtol=5e-2), max_err

    print("KERNEL_OK")
</pallas_src>

<mosaic_0001>
module attributes {stable_mosaic.version = 11 : i64} {
  func.func @_encoder_kernel(%arg0: i32, %arg1: memref<8x32xf32, #tpu.memory_space<vmem>>, %arg2: memref<32x512xbf16, #tpu.memory_space<vmem>>, %arg3: memref<1x512xf32, #tpu.memory_space<vmem>>, %arg4: memref<512x512xbf16, #tpu.memory_space<vmem>>, %arg5: memref<1x512xf32, #tpu.memory_space<vmem>>, %arg6: memref<512x2048xbf16, #tpu.memory_space<vmem>>, %arg7: memref<1x2048xf32, #tpu.memory_space<vmem>>, %arg8: memref<2048x128xbf16, #tpu.memory_space<vmem>>, %arg9: memref<1x128xf32, #tpu.memory_space<vmem>>, %arg10: memref<8x128xf32, #tpu.memory_space<vmem>>) attributes {dimension_semantics = [#tpu.dimension_semantics<parallel>], iteration_bounds = array<i64: 1>, scalar_prefetch = 0 : i64, scratch_operands = 0 : i64, tpu.core_type = #tpu.core_type<tc>, window_params = [{transform_indices = @transform_0, window_bounds = array<i64: 8, 32>}, {pipeline_mode = #tpu.pipeline_mode<synchronous>, transform_indices = @transform_1, window_bounds = array<i64: 32, 512>}, {pipeline_mode = #tpu.pipeline_mode<synchronous>, transform_indices = @transform_2, window_bounds = array<i64: 1, 512>}, {pipeline_mode = #tpu.pipeline_mode<synchronous>, transform_indices = @transform_3, window_bounds = array<i64: 512, 512>}, {pipeline_mode = #tpu.pipeline_mode<synchronous>, transform_indices = @transform_4, window_bounds = array<i64: 1, 512>}, {pipeline_mode = #tpu.pipeline_mode<synchronous>, transform_indices = @transform_5, window_bounds = array<i64: 512, 2048>}, {pipeline_mode = #tpu.pipeline_mode<synchronous>, transform_indices = @transform_6, window_bounds = array<i64: 1, 2048>}, {pipeline_mode = #tpu.pipeline_mode<synchronous>, transform_indices = @transform_7, window_bounds = array<i64: 2048, 128>}, {pipeline_mode = #tpu.pipeline_mode<synchronous>, transform_indices = @transform_8, window_bounds = array<i64: 1, 128>}, {transform_indices = @transform_9, window_bounds = array<i64: 8, 128>}]} {
    %c0 = arith.constant 0 : index
    %c0_0 = arith.constant 0 : index
    %0 = vector.load %arg1[%c0, %c0_0] : memref<8x32xf32, #tpu.memory_space<vmem>>, vector<8x32xf32>
    %1 = arith.truncf %0 : vector<8x32xf32> to vector<8x32xbf16>
    %c0_1 = arith.constant 0 : index
    %c0_2 = arith.constant 0 : index
    %2 = vector.load %arg2[%c0_1, %c0_2] : memref<32x512xbf16, #tpu.memory_space<vmem>>, vector<32x512xbf16>
    %cst = arith.constant dense<0.000000e+00> : vector<8x512xf32>
    %3 = tpu.matmul %1, %2, %cst {dimension_numbers = #tpu.dot_dimension_numbers<[1], [0], [0], [1], [0, 0, 1, 1], [], []>} : vector<8x32xbf16>, vector<32x512xbf16>, vector<8x512xf32> -> vector<8x512xf32>
    %c0_3 = arith.constant 0 : index
    %c0_4 = arith.constant 0 : index
    %4 = vector.load %arg3[%c0_3, %c0_4] : memref<1x512xf32, #tpu.memory_space<vmem>>, vector<1x512xf32>
    %5 = vector.broadcast %4 : vector<1x512xf32> to vector<8x512xf32>
    %6 = arith.addf %3, %5 : vector<8x512xf32>
    %cst_5 = arith.constant 0.000000e+00 : f32
    %7 = vector.broadcast %cst_5 : f32 to vector<8x512xf32>
    %8 = arith.maximumf %6, %7 : vector<8x512xf32>
    %9 = arith.truncf %8 : vector<8x512xf32> to vector<8x512xbf16>
    %c0_6 = arith.constant 0 : index
    %c0_7 = arith.constant 0 : index
    %10 = vector.load %arg4[%c0_6, %c0_7] : memref<512x512xbf16, #tpu.memory_space<vmem>>, vector<512x512xbf16>
    %cst_8 = arith.constant dense<0.000000e+00> : vector<8x512xf32>
    %11 = tpu.matmul %9, %10, %cst_8 {dimension_numbers = #tpu.dot_dimension_numbers<[1], [0], [0], [1], [0, 0, 1, 1], [], []>} : vector<8x512xbf16>, vector<512x512xbf16>, vector<8x512xf32> -> vector<8x512xf32>
    %c0_9 = arith.constant 0 : index
    %c0_10 = arith.constant 0 : index
    %12 = vector.load %arg5[%c0_9, %c0_10] : memref<1x512xf32, #tpu.memory_space<vmem>>, vector<1x512xf32>
    %13 = vector.broadcast %12 : vector<1x512xf32> to vector<8x512xf32>
    %14 = arith.addf %11, %13 : vector<8x512xf32>
    %cst_11 = arith.constant 0.000000e+00 : f32
    %15 = vector.broadcast %cst_11 : f32 to vector<8x512xf32>
    %16 = arith.maximumf %14, %15 : vector<8x512xf32>
    %17 = arith.truncf %16 : vector<8x512xf32> to vector<8x512xbf16>
    %c0_12 = arith.constant 0 : index
    %c0_13 = arith.constant 0 : index
    %18 = vector.load %arg6[%c0_12, %c0_13] : memref<512x2048xbf16, #tpu.memory_space<vmem>>, vector<512x2048xbf16>
    %cst_14 = arith.constant dense<0.000000e+00> : vector<8x2048xf32>
    %19 = tpu.matmul %17, %18, %cst_14 {dimension_numbers = #tpu.dot_dimension_numbers<[1], [0], [0], [1], [0, 0, 1, 1], [], []>} : vector<8x512xbf16>, vector<512x2048xbf16>, vector<8x2048xf32> -> vector<8x2048xf32>
    %c0_15 = arith.constant 0 : index
    %c0_16 = arith.constant 0 : index
    %20 = vector.load %arg7[%c0_15, %c0_16] : memref<1x2048xf32, #tpu.memory_space<vmem>>, vector<1x2048xf32>
    %21 = vector.broadcast %20 : vector<1x2048xf32> to vector<8x2048xf32>
    %22 = arith.addf %19, %21 : vector<8x2048xf32>
    %cst_17 = arith.constant 0.000000e+00 : f32
    %23 = vector.broadcast %cst_17 : f32 to vector<8x2048xf32>
    %24 = arith.maximumf %22, %23 : vector<8x2048xf32>
    %25 = arith.truncf %24 : vector<8x2048xf32> to vector<8x2048xbf16>
    %c0_18 = arith.constant 0 : index
    %c0_19 = arith.constant 0 : index
    %26 = vector.load %arg8[%c0_18, %c0_19] : memref<2048x128xbf16, #tpu.memory_space<vmem>>, vector<2048x128xbf16>
    %cst_20 = arith.constant dense<0.000000e+00> : vector<8x128xf32>
    %27 = tpu.matmul %25, %26, %cst_20 {dimension_numbers = #tpu.dot_dimension_numbers<[1], [0], [0], [1], [0, 0, 1, 1], [], []>} : vector<8x2048xbf16>, vector<2048x128xbf16>, vector<8x128xf32> -> vector<8x128xf32>
    %c0_21 = arith.constant 0 : index
    %c0_22 = arith.constant 0 : index
    %28 = vector.load %arg9[%c0_21, %c0_22] : memref<1x128xf32, #tpu.memory_space<vmem>>, vector<1x128xf32>
    %29 = vector.broadcast %28 : vector<1x128xf32> to vector<8x128xf32>
    %30 = arith.addf %27, %29 : vector<8x128xf32>
    %c0_23 = arith.constant 0 : index
    %c0_24 = arith.constant 0 : index
    %31 = vector.load %arg10[%c0_23, %c0_24] : memref<8x128xf32, #tpu.memory_space<vmem>>, vector<8x128xf32>
    tpu.vector_store %arg10[%c0_23, %c0_24], %30 {strides = array<i32>} : memref<8x128xf32, #tpu.memory_space<vmem>>, vector<8x128xf32>,
    return
  }
  func.func @transform_0(%arg0: i32) -> (i32, i32) {
    %c0_i32 = arith.constant 0 : i32
    %c0_i32_0 = arith.constant 0 : i32
    return %arg0, %c0_i32 : i32, i32
  }
  func.func @transform_1(%arg0: i32) -> (i32, i32) {
    %c0_i32 = arith.constant 0 : i32
    %c0_i32_0 = arith.constant 0 : i32
    %c0_i32_1 = arith.constant 0 : i32
    return %c0_i32, %c0_i32_0 : i32, i32
  }
  func.func @transform_2(%arg0: i32) -> (i32, i32) {
    %c0_i32 = arith.constant 0 : i32
    %c0_i32_0 = arith.constant 0 : i32
    %c0_i32_1 = arith.constant 0 : i32
    return %c0_i32, %c0_i32_0 : i32, i32
  }
  func.func @transform_3(%arg0: i32) -> (i32, i32) {
    %c0_i32 = arith.constant 0 : i32
    %c0_i32_0 = arith.constant 0 : i32
    %c0_i32_1 = arith.constant 0 : i32
    return %c0_i32, %c0_i32_0 : i32, i32
  }
  func.func @transform_4(%arg0: i32) -> (i32, i32) {
    %c0_i32 = arith.constant 0 : i32
    %c0_i32_0 = arith.constant 0 : i32
    %c0_i32_1 = arith.constant 0 : i32
    return %c0_i32, %c0_i32_0 : i32, i32
  }
  func.func @transform_5(%arg0: i32) -> (i32, i32) {
    %c0_i32 = arith.constant 0 : i32
    %c0_i32_0 = arith.constant 0 : i32
    %c0_i32_1 = arith.constant 0 : i32
    return %c0_i32, %c0_i32_0 : i32, i32
  }
  func.func @transform_6(%arg0: i32) -> (i32, i32) {
    %c0_i32 = arith.constant 0 : i32
    %c0_i32_0 = arith.constant 0 : i32
    %c0_i32_1 = arith.constant 0 : i32
    return %c0_i32, %c0_i32_0 : i32, i32
  }
  func.func @transform_7(%arg0: i32) -> (i32, i32) {
    %c0_i32 = arith.constant 0 : i32
    %c0_i32_0 = arith.constant 0 : i32
    %c0_i32_1 = arith.constant 0 : i32
    return %c0_i32, %c0_i32_0 : i32, i32
  }
  func.func @transform_8(%arg0: i32) -> (i32, i32) {
    %c0_i32 = arith.constant 0 : i32
    %c0_i32_0 = arith.constant 0 : i32
    %c0_i32_1 = arith.constant 0 : i32
    return %c0_i32, %c0_i32_0 : i32, i32
  }
  func.func @transform_9(%arg0: i32) -> (i32, i32) {
    %c0_i32 = arith.constant 0 : i32
    %c0_i32_0 = arith.constant 0 : i32
    return %arg0, %c0_i32 : i32, i32
  }
}

</mosaic_0001>

<llo_original>
// kernel: _encoder_forward_jit.1
$region0: #{_encoder_forward_jit.1}
  #allocation0 [shape = 'u32[]', space=smem, size = 0x4, offset = 0x4, fixed_abs, tag = 'smem constant byte address 0x4 - core index']
  #allocation1 [shape = 'u32[144,128]{1,0:T(1,128)}', space=vmem, size = 0x12000, scoped, tag = 'internal scratch']
  %s0 = inlined_call_operand.hbm [shape: f32[8,32], index: 0, kind: input, shape index: {}]
  %s1 = inlined_call_operand.hbm [shape: bf16[32,512], index: 1, kind: input, shape index: {}]
  %s2 = inlined_call_operand.hbm [shape: f32[1,512], index: 2, kind: input, shape index: {}]
  %s3 = inlined_call_operand.hbm [shape: bf16[512,512], index: 3, kind: input, shape index: {}]
  %s4 = inlined_call_operand.hbm [shape: f32[1,512], index: 4, kind: input, shape index: {}]
  %s5 = inlined_call_operand.hbm [shape: bf16[512,2048], index: 5, kind: input, shape index: {}]
  %s6 = inlined_call_operand.hbm [shape: f32[1,2048], index: 6, kind: input, shape index: {}]
  %s7 = inlined_call_operand.hbm [shape: bf16[2048,128], index: 7, kind: input, shape index: {}]
  %s8 = inlined_call_operand.hbm [shape: f32[1,128], index: 8, kind: input, shape index: {}]
  %s9 = inlined_call_operand.hbm [shape: f32[8,128], index: 9, kind: output, shape index: {}]
  %s10 = sld [smem:[#allocation0]]
  $region82: #{_encoder_forward_jit.1} parent=0
    _
  %s12 = ssub.s32 1, %s10
  %s13 = scalar_select 0, %s12, %s10
  $region1: #{_encoder_forward_jit.1} parent=0
    #allocation2 [shape = 'u8[4096]{0}', space=vmem, size = 0x1000, scoped, tag = 'input window, operand 0, single buffered']
    #allocation3 [shape = 's32[1]{0}', space=sflag, size = 0x4, scoped, tag = 'scoped memory for _encoder_forward_jit.1']
    #allocation4 [shape = 's32[1]{0}', space=sflag, size = 0x4, scoped, tag = 'scoped memory for _encoder_forward_jit.1']
    #allocation5 [shape = 'u8[32768]{0}', space=vmem, size = 0x8000, scoped, tag = 'input window, operand 1, single buffered']
    #allocation6 [shape = 's32[1]{0}', space=sflag, size = 0x4, scoped, tag = 'scoped memory for _encoder_forward_jit.1']
    #allocation7 [shape = 'u8[2048]{0}', space=vmem, size = 0x800, scoped, tag = 'input window, operand 2, single buffered']
    #allocation8 [shape = 'u8[524288]{0}', space=vmem, size = 0x80000, scoped, tag = 'input window, operand 3, single buffered']
    #allocation9 [shape = 's32[1]{0}', space=sflag, size = 0x4, scoped, tag = 'scoped memory for _encoder_forward_jit.1']
    #allocation10 [shape = 'u8[2048]{0}', space=vmem, size = 0x800, scoped, tag = 'input window, operand 4, single buffered']
    #allocation11 [shape = 'u8[2097152]{0}', space=vmem, size = 0x200000, scoped, tag = 'input window, operand 5, single buffered']
    #allocation12 [shape = 's32[1]{0}', space=sflag, size = 0x4, scoped, tag = 'scoped memory for _encoder_forward_jit.1']
    #allocation13 [shape = 'u8[8192]{0}', space=vmem, size = 0x2000, scoped, tag = 'input window, operand 6, single buffered']
    #allocation14 [shape = 'u8[524288]{0}', space=vmem, size = 0x80000, scoped, tag = 'input window, operand 7, single buffered']
    #allocation15 [shape = 's32[1]{0}', space=sflag, size = 0x4, scoped, tag = 'scoped memory for _encoder_forward_jit.1']
    #allocation16 [shape = 'u8[512]{0}', space=vmem, size = 0x400, scoped, tag = 'input window, operand 8, single buffered']
    #allocation17 [shape = 'u8[4096]{0}', space=vmem, size = 0x1000, scoped, tag = 'output window, operand 0, single buffered']
    %14 = vsyncpa [#allocation3], 0
    %15 = vsyncpa [#allocation6], 0
    %16 = vsyncpa [#allocation9], 0
    %17 = vsyncpa [#allocation12], 0
    %18 = vsyncpa [#allocation15], 0
    %19 = vsyncpa [#allocation4], 0
    // Predicated region
    $region2: #{_encoder_forward_jit.1} parent=1 // pred_check
      _
    $region3: #{_encoder_forward_jit.1} parent=1 // pred_check_branch
      %21 = sbr.rel (0) target = $region5
    $region4: #{_encoder_forward_jit.1} parent=1 // pred_region
      %s23 = ssub.s32 128, 128
      %24 = vsyncadd [#allocation3], %s23
      %s26 = sshll.u32 [#allocation2], 4
      %s27 = int_to_ptr.vmem [resolvable:$true] %s26
      %29 = dma.hbm_to_vmem [thread:$0]  %s0, 128, %s27, [#allocation3]
    $region5: #{_encoder_forward_jit.1} parent=1 // pred_fallthru
      _
    // Predicated region
    $region6: #{_encoder_forward_jit.1} parent=1 // pred_check
      _
    $region7: #{_encoder_forward_jit.1} parent=1 // pred_check_branch
      %31 = sbr.rel (0) target = $region9
    $region8: #{_encoder_forward_jit.1} parent=1 // pred_region
      %s33 = ssub.s32 1024, 1024
      %34 = vsyncadd [#allocation6], %s33
      %s35 = sshll.u32 [#allocation5], 4
      %s36 = int_to_ptr.vmem [resolvable:$true] %s35
      %41 = dma.hbm_to_vmem [thread:$0]  %s1, 1024, %s36, [#allocation6], 256, 256, 16
    $region9: #{_encoder_forward_jit.1} parent=1 // pred_fallthru
      _
    // Predicated region
    $region10: #{_encoder_forward_jit.1} parent=1 // pred_check
      _
    $region11: #{_encoder_forward_jit.1} parent=1 // pred_check_branch
      %43 = sbr.rel (0) target = $region13
    $region12: #{_encoder_forward_jit.1} parent=1 // pred_region
      %s45 = ssub.s32 64, 64
      %46 = vsyncadd [#allocation6], %s45
      %s48 = sshll.u32 [#allocation7], 4
      %s49 = int_to_ptr.vmem [resolvable:$true] %s48
      %51 = dma.hbm_to_vmem [thread:$0]  %s2, 64, %s49, [#allocation6]
    $region13: #{_encoder_forward_jit.1} parent=1 // pred_fallthru
      _
    // Predicated region
    $region14: #{_encoder_forward_jit.1} parent=1 // pred_check
      _
    $region15: #{_encoder_forward_jit.1} parent=1 // pred_check_branch
      %53 = sbr.rel (0) target = $region17
    $region16: #{_encoder_forward_jit.1} parent=1 // pred_region
      %s55 = ssub.s32 16384, 16384
      %56 = vsyncadd [#allocation9], %s55
      %s57 = sshll.u32 [#allocation8], 4
      %s58 = int_to_ptr.vmem [resolvable:$true] %s57
      %63 = dma.hbm_to_vmem [thread:$0]  %s3, 16384, %s58, [#allocation9], 256, 256, 16
    $region17: #{_encoder_forward_jit.1} parent=1 // pred_fallthru
      _
    // Predicated region
    $region18: #{_encoder_forward_jit.1} parent=1 // pred_check
      _
    $region19: #{_encoder_forward_jit.1} parent=1 // pred_check_branch
      %65 = sbr.rel (0) target = $region21
    $region20: #{_encoder_forward_jit.1} parent=1 // pred_region
      %s67 = ssub.s32 64, 64
      %68 = vsyncadd [#allocation9], %s67
      %s70 = sshll.u32 [#allocation10], 4
      %s71 = int_to_ptr.vmem [resolvable:$true] %s70
      %73 = dma.hbm_to_vmem [thread:$0]  %s4, 64, %s71, [#allocation9]
    $region21: #{_encoder_forward_jit.1} parent=1 // pred_fallthru
      _
    // Predicated region
    $region22: #{_encoder_forward_jit.1} parent=1 // pred_check
      _
    $region23: #{_encoder_forward_jit.1} parent=1 // pred_check_branch
      %75 = sbr.rel (0) target = $region25
    $region24: #{_encoder_forward_jit.1} parent=1 // pred_region
      %s77 = ssub.s32 65536, 65536
      %78 = vsyncadd [#allocation12], %s77
      %s79 = sshll.u32 [#allocation11], 4
      %s80 = int_to_ptr.vmem [resolvable:$true] %s79
      %85 = dma.hbm_to_vmem [thread:$0]  %s5, 65536, %s80, [#allocation12], 1024, 1024, 64
    $region25: #{_encoder_forward_jit.1} parent=1 // pred_fallthru
      _
    // Predicated region
    $region26: #{_encoder_forward_jit.1} parent=1 // pred_check
      _
    $region27: #{_encoder_forward_jit.1} parent=1 // pred_check_branch
      %87 = sbr.rel (0) target = $region29
    $region28: #{_encoder_forward_jit.1} parent=1 // pred_region
      %s89 = ssub.s32 256, 256
      %90 = vsyncadd [#allocation12], %s89
      %s92 = sshll.u32 [#allocation13], 4
      %s93 = int_to_ptr.vmem [resolvable:$true] %s92
      %95 = dma.hbm_to_vmem [thread:$0]  %s6, 256, %s93, [#allocation12]
    $region29: #{_encoder_forward_jit.1} parent=1 // pred_fallthru
      _
    // Predicated region
    $region30: #{_encoder_forward_jit.1} parent=1 // pred_check
      _
    $region31: #{_encoder_forward_jit.1} parent=1 // pred_check_branch
      %97 = sbr.rel (0) target = $region33
    $region32: #{_encoder_forward_jit.1} parent=1 // pred_region
      %s99 = ssub.s32 16384, 16384
      %100 = vsyncadd [#allocation15], %s99
      %s101 = sshll.u32 [#allocation14], 4
      %s102 = int_to_ptr.vmem [resolvable:$true] %s101
      %107 = dma.hbm_to_vmem [thread:$0]  %s7, 16384, %s102, [#allocation15], 64, 64, 4
    $region33: #{_encoder_forward_jit.1} parent=1 // pred_fallthru
      _
    // Predicated region
    $region34: #{_encoder_forward_jit.1} parent=1 // pred_check
      _
    $region35: #{_encoder_forward_jit.1} parent=1 // pred_check_branch
      %109 = sbr.rel (0) target = $region37
    $region36: #{_encoder_forward_jit.1} parent=1 // pred_region
      %s111 = ssub.s32 16, 16
      %112 = vsyncadd [#allocation15], %s111
      %s114 = sshll.u32 [#allocation16], 4
      %s115 = int_to_ptr.vmem [resolvable:$true] %s114
      %117 = dma.hbm_to_vmem [thread:$0]  %s8, 16, %s115, [#allocation15]
    $region37: #{_encoder_forward_jit.1} parent=1 // pred_fallthru
      _
    // Predicated region
    $region38: #{_encoder_forward_jit.1} parent=1 // pred_check
      _
    $region39: #{_encoder_forward_jit.1} parent=1 // pred_check_branch
      %119 = sbr.rel (0) target = $region41
    $region40: #{_encoder_forward_jit.1} parent=1 // pred_region
      %120 = dma.done [#allocation3], 128
    $region41: #{_encoder_forward_jit.1} parent=1 // pred_fallthru
      _
    // Predicated region
    $region42: #{_encoder_forward_jit.1} parent=1 // pred_check
      _
    $region43: #{_encoder_forward_jit.1} parent=1 // pred_check_branch
      %122 = sbr.rel (0) target = $region45
    $region44: #{_encoder_forward_jit.1} parent=1 // pred_region
      %123 = dma.done [#allocation6], 1024
    $region45: #{_encoder_forward_jit.1} parent=1 // pred_fallthru
      _
    // Predicated region
    $region46: #{_encoder_forward_jit.1} parent=1 // pred_check
      _
    $region47: #{_encoder_forward_jit.1} parent=1 // pred_check_branch
      %125 = sbr.rel (0) target = $region49
    $region48: #{_encoder_forward_jit.1} parent=1 // pred_region
      %126 = dma.done [#allocation6], 64
    $region49: #{_encoder_forward_jit.1} parent=1 // pred_fallthru
      _
    // Predicated region
    $region50: #{_encoder_forward_jit.1} parent=1 // pred_check
      _
    $region51: #{_encoder_forward_jit.1} parent=1 // pred_check_branch
      %128 = sbr.rel (0) target = $region53
    $region52: #{_encoder_forward_jit.1} parent=1 // pred_region
      %129 = dma.done [#allocation9], 16384
    $region53: #{_encoder_forward_jit.1} parent=1 // pred_fallthru
      _
    // Predicated region
    $region54: #{_encoder_forward_jit.1} parent=1 // pred_check
      _
    $region55: #{_encoder_forward_jit.1} parent=1 // pred_check_branch
      %131 = sbr.rel (0) target = $region57
    $region56: #{_encoder_forward_jit.1} parent=1 // pred_region
      %132 = dma.done [#allocation9], 64
    $region57: #{_encoder_forward_jit.1} parent=1 // pred_fallthru
      _
    // Predicated region
    $region58: #{_encoder_forward_jit.1} parent=1 // pred_check
      _
    $region59: #{_encoder_forward_jit.1} parent=1 // pred_check_branch
      %134 = sbr.rel (0) target = $region61
    $region60: #{_encoder_forward_jit.1} parent=1 // pred_region
      %135 = dma.done [#allocation12], 65536
    $region61: #{_encoder_forward_jit.1} parent=1 // pred_fallthru
      _
    // Predicated region
    $region62: #{_encoder_forward_jit.1} parent=1 // pred_check
      _
    $region63: #{_encoder_forward_jit.1} parent=1 // pred_check_branch
      %137 = sbr.rel (0) target = $region65
    $region64: #{_encoder_forward_jit.1} parent=1 // pred_region
      %138 = dma.done [#allocation12], 256
    $region65: #{_encoder_forward_jit.1} parent=1 // pred_fallthru
      _
    // Predicated region
    $region66: #{_encoder_forward_jit.1} parent=1 // pred_check
      _
    $region67: #{_encoder_forward_jit.1} parent=1 // pred_check_branch
      %140 = sbr.rel (0) target = $region69
    $region68: #{_encoder_forward_jit.1} parent=1 // pred_region
      %141 = dma.done [#allocation15], 16384
    $region69: #{_encoder_forward_jit.1} parent=1 // pred_fallthru
      _
    // Predicated region
    $region70: #{_encoder_forward_jit.1} parent=1 // pred_check
      _
    $region71: #{_encoder_forward_jit.1} parent=1 // pred_check_branch
      %143 = sbr.rel (0) target = $region73
    $region72: #{_encoder_forward_jit.1} parent=1 // pred_region
      %144 = dma.done [#allocation15], 16
    $region73: #{_encoder_forward_jit.1} parent=1 // pred_fallthru
      _
    %v146 = vld [vmem:[#allocation2] sm:$0xff]
    %v147 = vpack.c.bf16 %v146, %v146
    %v148 = vld [vmem:[#allocation5] sm:$0xff]
    %v149 = vld [vmem:[#allocation5 + $0x8] sm:$0xff]
    %v150 = vld [vmem:[#allocation5 + $0x10] sm:$0xff]
    %v151 = vld [vmem:[#allocation5 + $0x18] sm:$0xff]
    %v152 = vld [vmem:[#allocation5 + $0x20] sm:$0xff]
    %v153 = vld [vmem:[#allocation5 + $0x28] sm:$0xff]
    %v154 = vld [vmem:[#allocation5 + $0x30] sm:$0xff]
    %v155 = vld [vmem:[#allocation5 + $0x38] sm:$0xff]
    %v156 = vld [vmem:[#allocation7] sm:$0xf]
    %v158 = vlaneseq
    %v159 = vshrl.u32 %v158, 7
    %v160 = vsub.s32 0, %v159
    %v161 = vrot.slane %v156, %v160
    %v162 = vlaneseq
    %v163 = vshrl.u32 %v162, 7
    %v164 = vsub.s32 1, %v163
    %v165 = vrot.slane %v156, %v164
    %v166 = vlaneseq
    %v167 = vshrl.u32 %v166, 7
    %v168 = vsub.s32 2, %v167
    %v169 = vrot.slane %v156, %v168
    %v170 = vlaneseq
    %v171 = vshrl.u32 %v170, 7
    %v172 = vsub.s32 3, %v171
    %v173 = vrot.slane %v156, %v172
    %v186 = vunpack.c.l.b16 %v148
    %v187 = vunpack.c.h.b16 %v148
    %v188 = vunpack.c.l.b16 %v149
    %v189 = vunpack.c.h.b16 %v149
    %v190 = vunpack.c.l.b16 %v150
    %v191 = vunpack.c.h.b16 %v150
    %v192 = vunpack.c.l.b16 %v151
    %v193 = vunpack.c.h.b16 %v151
    %v194 = vunpack.c.l.b16 %v152
    %v195 = vunpack.c.h.b16 %v152
    %v196 = vunpack.c.l.b16 %v153
    %v197 = vunpack.c.h.b16 %v153
    %v198 = vunpack.c.l.b16 %v154
    %v199 = vunpack.c.h.b16 %v154
    %v200 = vunpack.c.l.b16 %v155
    %v201 = vunpack.c.h.b16 %v155
    %v202 = vpack.c.b16 %v190, %v186
    %v203 = vpack.c.b16 %v191, %v187
    %v204 = vpack.c.b16 %v192, %v188
    %v205 = vpack.c.b16 %v193, %v189
    %v206 = vpack.c.b16 %v198, %v194
    %v207 = vpack.c.b16 %v199, %v195
    %v208 = vpack.c.b16 %v200, %v196
    %v209 = vpack.c.b16 %v201, %v197
    %vm218 = vcmask 261120
    %v220 = vsel %vm218, %v147, 0
    %222 = vmatprep.subr.bf16.mxu0 0
    %223 = vmatpush1.bf16.msra.mxu0 0
    %224 = vmatprep.subr.bf16.mxu0 0
    %225 = vmatpush1.bf16.msra.mxu0 0
    %226 = vmatprep.subr.bf16.mxu0 0
    %227 = vmatpush1.bf16.msra.mxu0 0
    %228 = vmatprep.subr.bf16.mxu0 0
    %229 = vmatpush1.bf16.msra.mxu0 0
    %230 = vmatprep.subr.bf16.mxu0 0
    %231 = vmatpush1.bf16.msra.mxu0 0
    %232 = vmatprep.subr.bf16.mxu0 0
    %233 = vmatpush1.bf16.msra.mxu0 0
    %234 = vmatprep.subr.bf16.mxu0 %v207
    %235 = vmatpush1.bf16.msra.mxu0 %v206
    %236 = vmatprep.subr.bf16.mxu0 %v203
    %237 = vmatpush1.bf16.msra.mxu0 %v202
    %238 = vmatprep.subr.bf16.mxu0 0
    %239 = vmatpush2.bf16.msra.mxu0 0
    %240 = vmatprep.subr.bf16.mxu0 0
    %241 = vmatpush2.bf16.msra.mxu0 0
    %242 = vmatprep.subr.bf16.mxu0 0
    %243 = vmatpush2.bf16.msra.mxu0 0
    %244 = vmatprep.subr.bf16.mxu0 0
    %245 = vmatpush2.bf16.msra.mxu0 0
    %246 = vmatprep.subr.bf16.mxu0 0
    %247 = vmatpush2.bf16.msra.mxu0 0
    %248 = vmatprep.subr.bf16.mxu0 0
    %249 = vmatpush2.bf16.msra.mxu0 0
    %250 = vmatprep.subr.bf16.mxu0 0
    %251 = vmatpush2.bf16.msra.mxu0 0
    %252 = vmatprep.subr.bf16.mxu0 0
    %253 = vmatpush2.bf16.msra.mxu0 0
    %254 = vmatprep.mubr.bf16.mxu0 0
    %255 = vmatmul.mubr.bf16.gmra.mxu0 %v220
    %v256 = vpop.f32.mrf.mxu0
    %v257 = vadd.f32 %v161, %v256
    %v258 = vpop.f32.mrf.mxu0
    %v259 = vadd.f32 %v165, %v258
    %v260 = vpop.f32.mrf.mxu0
    %v261 = vpop.f32.mrf.mxu0
    %262 = vdwg.mxu0
    %263 = vmatprep.subr.bf16.mxu0 0
    %264 = vmatpush1.bf16.msra.mxu0 0
    %265 = vmatprep.subr.bf16.mxu0 0
    %266 = vmatpush1.bf16.msra.mxu0 0
    %267 = vmatprep.subr.bf16.mxu0 0
    %268 = vmatpush1.bf16.msra.mxu0 0
    %269 = vmatprep.subr.bf16.mxu0 0
    %270 = vmatpush1.bf16.msra.mxu0 0
    %271 = vmatprep.subr.bf16.mxu0 0
    %272 = vmatpush1.bf16.msra.mxu0 0
    %273 = vmatprep.subr.bf16.mxu0 0
    %274 = vmatpush1.bf16.msra.mxu0 0
    %275 = vmatprep.subr.bf16.mxu0 %v209
    %276 = vmatpush1.bf16.msra.mxu0 %v208
    %277 = vmatprep.subr.bf16.mxu0 %v205
    %278 = vmatpush1.bf16.msra.mxu0 %v204
    %279 = vmatprep.subr.bf16.mxu0 0
    %280 = vmatpush2.bf16.msra.mxu0 0
    %281 = vmatprep.subr.bf16.mxu0 0
    %282 = vmatpush2.bf16.msra.mxu0 0
    %283 = vmatprep.subr.bf16.mxu0 0
    %284 = vmatpush2.bf16.msra.mxu0 0
    %285 = vmatprep.subr.bf16.mxu0 0
    %286 = vmatpush2.bf16.msra.mxu0 0
    %287 = vmatprep.subr.bf16.mxu0 0
    %288 = vmatpush2.bf16.msra.mxu0 0
    %289 = vmatprep.subr.bf16.mxu0 0
    %290 = vmatpush2.bf16.msra.mxu0 0
    %291 = vmatprep.subr.bf16.mxu0 0
    %292 = vmatpush2.bf16.msra.mxu0 0
    %293 = vmatprep.subr.bf16.mxu0 0
    %294 = vmatpush2.bf16.msra.mxu0 0
    %295 = vmatprep.mubr.bf16.mxu0 0
    %296 = vmatmul.mubr.bf16.gmra.mxu0 %v220
    %v297 = vpop.f32.mrf.mxu0
    %v298 = vadd.f32 %v169, %v297
    %v299 = vpop.f32.mrf.mxu0
    %v300 = vadd.f32 %v173, %v299
    %v301 = vpop.f32.mrf.mxu0
    %v302 = vpop.f32.mrf.mxu0
    %303 = vdwg.mxu0
    %v304 = vmax.f32 %v257, 0.0
    %v305 = vmax.f32 %v259, 0.0
    %v306 = vmax.f32 %v298, 0.0
    %v307 = vmax.f32 %v300, 0.0
    %v308 = vpack.c.bf16 %v304, %v304
    %v309 = vpack.c.bf16 %v305, %v305
    %v310 = vpack.c.bf16 %v306, %v306
    %v311 = vpack.c.bf16 %v307, %v307
    %v312 = vld [vmem:[#allocation8] sm:$0xff]
    %v313 = vld [vmem:[#allocation8 + $0x8] sm:$0xff]
    %v314 = vld [vmem:[#allocation8 + $0x10] sm:$0xff]
    %v315 = vld [vmem:[#allocation8 + $0x18] sm:$0xff]
    %v316 = vld [vmem:[#allocation8 + $0x20] sm:$0xff]
    %v317 = vld [vmem:[#allocation8 + $0x28] sm:$0xff]
    %v318 = vld [vmem:[#allocation8 + $0x30] sm:$0xff]
    %v319 = vld [vmem:[#allocation8 + $0x38] sm:$0xff]
    %v320 = vld [vmem:[#allocation8 + $0x40] sm:$0xff]
    %v321 = vld [vmem:[#allocation8 + $0x48] sm:$0xff]
    %v322 = vld [vmem:[#allocation8 + $0x50] sm:$0xff]
    %v323 = vld [vmem:[#allocation8 + $0x58] sm:$0xff]
    %v324 = vld [vmem:[#allocation8 + $0x60] sm:$0xff]
    %v325 = vld [vmem:[#allocation8 + $0x68] sm:$0xff]
    %v326 = vld [vmem:[#allocation8 + $0x70] sm:$0xff]
    %v327 = vld [vmem:[#allocation8 + $0x78] sm:$0xff]
    %v328 = vld [vmem:[#allocation8 + $0x80] sm:$0xff]
    %v329 = vld [vmem:[#allocation8 + $0x88] sm:$0xff]
    %v330 = vld [vmem:[#allocation8 + $0x90] sm:$0xff]
    %v331 = vld [vmem:[#allocation8 + $0x98] sm:$0xff]
    %v332 = vld [vmem:[#allocation8 + $0xa0] sm:$0xff]
    %v333 = vld [vmem:[#allocation8 + $0xa8] sm:$0xff]
    %v334 = vld [vmem:[#allocation8 + $0xb0] sm:$0xff]
    %v335 = vld [vmem:[#allocation8 + $0xb8] sm:$0xff]
    %v336 = vld [vmem:[#allocation8 + $0xc0] sm:$0xff]
    %v337 = vld [vmem:[#allocation8 + $0xc8] sm:$0xff]
    %v338 = vld [vmem:[#allocation8 + $0xd0] sm:$0xff]
    %v339 = vld [vmem:[#allocation8 + $0xd8] sm:$0xff]
    %v340 = vld [vmem:[#allocation8 + $0xe0] sm:$0xff]
    %v341 = vld [vmem:[#allocation8 + $0xe8] sm:$0xff]
    %v342 = vld [vmem:[#allocation8 + $0xf0] sm:$0xff]
    %v343 = vld [vmem:[#allocation8 + $0xf8] sm:$0xff]
    %v344 = vld [vmem:[#allocation8 + $0x100] sm:$0xff]
    %v345 = vld [vmem:[#allocation8 + $0x108] sm:$0xff]
    %v346 = vld [vmem:[#allocation8 + $0x110] sm:$0xff]
    %v347 = vld [vmem:[#allocation8 + $0x118] sm:$0xff]
    %v348 = vld [vmem:[#allocation8 + $0x120] sm:$0xff]
    %v349 = vld [vmem:[#allocation8 + $0x128] sm:$0xff]
    %v350 = vld [vmem:[#allocation8 + $0x130] sm:$0xff]
    %v351 = vld [vmem:[#allocation8 + $0x138] sm:$0xff]
    %v352 = vld [vmem:[#allocation8 + $0x140] sm:$0xff]
    %v353 = vld [vmem:[#allocation8 + $0x148] sm:$0xff]
    %v354 = vld [vmem:[#allocation8 + $0x150] sm:$0xff]
    %v355 = vld [vmem:[#allocation8 + $0x158] sm:$0xff]
    %v356 = vld [vmem:[#allocation8 + $0x160] sm:$0xff]
    %v357 = vld [vmem:[#allocation8 + $0x168] sm:$0xff]
    %v358 = vld [vmem:[#allocation8 + $0x170] sm:$0xff]
    %v359 = vld [vmem:[#allocation8 + $0x178] sm:$0xff]
    %v360 = vld [vmem:[#allocation8 + $0x180] sm:$0xff]
    %v361 = vld [vmem:[#allocation8 + $0x188] sm:$0xff]
    %v362 = vld [vmem:[#allocation8 + $0x190] sm:$0xff]
    %v363 = vld [vmem:[#allocation8 + $0x198] sm:$0xff]
    %v364 = vld [vmem:[#allocation8 + $0x1a0] sm:$0xff]
    %v365 = vld [vmem:[#allocation8 + $0x1a8] sm:$0xff]
    %v366 = vld [vmem:[#allocation8 + $0x1b0] sm:$0xff]
    %v367 = vld [vmem:[#allocation8 + $0x1b8] sm:$0xff]
    %v368 = vld [vmem:[#allocation8 + $0x1c0] sm:$0xff]
    %v369 = vld [vmem:[#allocation8 + $0x1c8] sm:$0xff]
    %v370 = vld [vmem:[#allocation8 + $0x1d0] sm:$0xff]
    %v371 = vld [vmem:[#allocation8 + $0x1d8] sm:$0xff]
    %v372 = vld [vmem:[#allocation8 + $0x1e0] sm:$0xff]
    %v373 = vld [vmem:[#allocation8 + $0x1e8] sm:$0xff]
    %v374 = vld [vmem:[#allocation8 + $0x1f0] sm:$0xff]
    %v375 = vld [vmem:[#allocation8 + $0x1f8] sm:$0xff]
    %v376 = vld [vmem:[#allocation8 + $0x200] sm:$0xff]
    %v377 = vld [vmem:[#allocation8 + $0x208] sm:$0xff]
    %v378 = vld [vmem:[#allocation8 + $0x210] sm:$0xff]
    %v379 = vld [vmem:[#allocation8 + $0x218] sm:$0xff]
    %v380 = vld [vmem:[#allocation8 + $0x220] sm:$0xff]
    %v381 = vld [vmem:[#allocation8 + $0x228] sm:$0xff]
    %v382 = vld [vmem:[#allocation8 + $0x230] sm:$0xff]
    %v383 = vld [vmem:[#allocation8 + $0x238] sm:$0xff]
    %v384 = vld [vmem:[#allocation8 + $0x240] sm:$0xff]
    %v385 = vld [vmem:[#allocation8 + $0x248] sm:$0xff]
    %v386 = vld [vmem:[#allocation8 + $0x250] sm:$0xff]
    %v387 = vld [vmem:[#allocation8 + $0x258] sm:$0xff]
    %v388 = vld [vmem:[#allocation8 + $0x260] sm:$0xff]
    %v389 = vld [vmem:[#allocation8 + $0x268] sm:$0xff]
    %v390 = vld [vmem:[#allocation8 + $0x270] sm:$0xff]
    %v391 = vld [vmem:[#allocation8 + $0x278] sm:$0xff]
    %v392 = vld [vmem:[#allocation8 + $0x280] sm:$0xff]
    %v393 = vld [vmem:[#allocation8 + $0x288] sm:$0xff]
    %v394 = vld [vmem:[#allocation8 + $0x290] sm:$0xff]
    %v395 = vld [vmem:[#allocation8 + $0x298] sm:$0xff]
    %v396 = vld [vmem:[#allocation8 + $0x2a0] sm:$0xff]
    %v397 = vld [vmem:[#allocation8 + $0x2a8] sm:$0xff]
    %v398 = vld [vmem:[#allocation8 + $0x2b0] sm:$0xff]
    %v399 = vld [vmem:[#allocation8 + $0x2b8] sm:$0xff]
    %v400 = vld [vmem:[#allocation8 + $0x2c0] sm:$0xff]
    %v401 = vld [vmem:[#allocation8 + $0x2c8] sm:$0xff]
    %v402 = vld [vmem:[#allocation8 + $0x2d0] sm:$0xff]
    %v403 = vld [vmem:[#allocation8 + $0x2d8] sm:$0xff]
    %v404 = vld [vmem:[#allocation8 + $0x2e0] sm:$0xff]
    %v405 = vld [vmem:[#allocation8 + $0x2e8] sm:$0xff]
    %v406 = vld [vmem:[#allocation8 + $0x2f0] sm:$0xff]
    %v407 = vld [vmem:[#allocation8 + $0x2f8] sm:$0xff]
    %v408 = vld [vmem:[#allocation8 + $0x300] sm:$0xff]
    %v409 = vld [vmem:[#allocation8 + $0x308] sm:$0xff]
    %v410 = vld [vmem:[#allocation8 + $0x310] sm:$0xff]
    %v411 = vld [vmem:[#allocation8 + $0x318] sm:$0xff]
    %v412 = vld [vmem:[#allocation8 + $0x320] sm:$0xff]
    %v413 = vld [vmem:[#allocation8 + $0x328] sm:$0xff]
    %v414 = vld [vmem:[#allocation8 + $0x330] sm:$0xff]
    %v415 = vld [vmem:[#allocation8 + $0x338] sm:$0xff]
    %v416 = vld [vmem:[#allocation8 + $0x340] sm:$0xff]
    %v417 = vld [vmem:[#allocation8 + $0x348] sm:$0xff]
    %v418 = vld [vmem:[#allocation8 + $0x350] sm:$0xff]
    %v419 = vld [vmem:[#allocation8 + $0x358] sm:$0xff]
    %v420 = vld [vmem:[#allocation8 + $0x360] sm:$0xff]
    %v421 = vld [vmem:[#allocation8 + $0x368] sm:$0xff]
    %v422 = vld [vmem:[#allocation8 + $0x370] sm:$0xff]
    %v423 = vld [vmem:[#allocation8 + $0x378] sm:$0xff]
    %v424 = vld [vmem:[#allocation8 + $0x380] sm:$0xff]
    %v425 = vld [vmem:[#allocation8 + $0x388] sm:$0xff]
    %v426 = vld [vmem:[#allocation8 + $0x390] sm:$0xff]
    %v427 = vld [vmem:[#allocation8 + $0x398] sm:$0xff]
    %v428 = vld [vmem:[#allocation8 + $0x3a0] sm:$0xff]
    %v429 = vld [vmem:[#allocation8 + $0x3a8] sm:$0xff]
    %v430 = vld [vmem:[#allocation8 + $0x3b0] sm:$0xff]
    %v431 = vld [vmem:[#allocation8 + $0x3b8] sm:$0xff]
    %v432 = vld [vmem:[#allocation8 + $0x3c0] sm:$0xff]
    %v433 = vld [vmem:[#allocation8 + $0x3c8] sm:$0xff]
    %v434 = vld [vmem:[#allocation8 + $0x3d0] sm:$0xff]
    %v435 = vld [vmem:[#allocation8 + $0x3d8] sm:$0xff]
    %v436 = vld [vmem:[#allocation8 + $0x3e0] sm:$0xff]
    %v437 = vld [vmem:[#allocation8 + $0x3e8] sm:$0xff]
    %v438 = vld [vmem:[#allocation8 + $0x3f0] sm:$0xff]
    %v439 = vld [vmem:[#allocation8 + $0x3f8] sm:$0xff]
    %v440 = vld [vmem:[#allocation10] sm:$0xf]
    %v442 = vlaneseq
    %v443 = vshrl.u32 %v442, 7
    %v444 = vsub.s32 0, %v443
    %v445 = vrot.slane %v440, %v444
    %v446 = vlaneseq
    %v447 = vshrl.u32 %v446, 7
    %v448 = vsub.s32 1, %v447
    %v449 = vrot.slane %v440, %v448
    %v450 = vlaneseq
    %v451 = vshrl.u32 %v450, 7
    %v452 = vsub.s32 2, %v451
    %v453 = vrot.slane %v440, %v452
    %v454 = vlaneseq
    %v455 = vshrl.u32 %v454, 7
    %v456 = vsub.s32 3, %v455
    %v457 = vrot.slane %v440, %v456
    %v590 = vunpack.c.l.b16 %v312
    %v591 = vunpack.c.h.b16 %v312
    %v592 = vunpack.c.l.b16 %v313
    %v593 = vunpack.c.h.b16 %v313
    %v594 = vunpack.c.l.b16 %v314
    %v595 = vunpack.c.h.b16 %v314
    %v596 = vunpack.c.l.b16 %v315
    %v597 = vunpack.c.h.b16 %v315
    %v598 = vunpack.c.l.b16 %v316
    %v599 = vunpack.c.h.b16 %v316
    %v600 = vunpack.c.l.b16 %v317
    %v601 = vunpack.c.h.b16 %v317
    %v602 = vunpack.c.l.b16 %v318
    %v603 = vunpack.c.h.b16 %v318
    %v604 = vunpack.c.l.b16 %v319
    %v605 = vunpack.c.h.b16 %v319
    %v606 = vunpack.c.l.b16 %v320
    %v607 = vunpack.c.h.b16 %v320
    %v608 = vunpack.c.l.b16 %v321
    %v609 = vunpack.c.h.b16 %v321
    %v610 = vunpack.c.l.b16 %v322
    %v611 = vunpack.c.h.b16 %v322
    %v612 = vunpack.c.l.b16 %v323
    %v613 = vunpack.c.h.b16 %v323
    %v614 = vunpack.c.l.b16 %v324
    %v615 = vunpack.c.h.b16 %v324
    %v616 = vunpack.c.l.b16 %v325
    %v617 = vunpack.c.h.b16 %v325
    %v618 = vunpack.c.l.b16 %v326
    %v619 = vunpack.c.h.b16 %v326
    %v620 = vunpack.c.l.b16 %v327
    %v621 = vunpack.c.h.b16 %v327
    %v622 = vunpack.c.l.b16 %v328
    %v623 = vunpack.c.h.b16 %v328
    %v624 = vunpack.c.l.b16 %v329
    %v625 = vunpack.c.h.b16 %v329
    %v626 = vunpack.c.l.b16 %v330
    %v627 = vunpack.c.h.b16 %v330
    %v628 = vunpack.c.l.b16 %v331
    %v629 = vunpack.c.h.b16 %v331
    %v630 = vunpack.c.l.b16 %v332
    %v631 = vunpack.c.h.b16 %v332
    %v632 = vunpack.c.l.b16 %v333
    %v633 = vunpack.c.h.b16 %v333
    %v634 = vunpack.c.l.b16 %v334
    %v635 = vunpack.c.h.b16 %v334
    %v636 = vunpack.c.l.b16 %v335
    %v637 = vunpack.c.h.b16 %v335
    %v638 = vunpack.c.l.b16 %v336
    %v639 = vunpack.c.h.b16 %v336
    %v640 = vunpack.c.l.b16 %v337
    %v641 = vunpack.c.h.b16 %v337
    %v642 = vunpack.c.l.b16 %v338
    %v643 = vunpack.c.h.b16 %v338
    %v644 = vunpack.c.l.b16 %v339
    %v645 = vunpack.c.h.b16 %v339
    %v646 = vunpack.c.l.b16 %v340
    %v647 = vunpack.c.h.b16 %v340
    %v648 = vunpack.c.l.b16 %v341
    %v649 = vunpack.c.h.b16 %v341
    %v650 = vunpack.c.l.b16 %v342
    %v651 = vunpack.c.h.b16 %v342
    %v652 = vunpack.c.l.b16 %v343
    %v653 = vunpack.c.h.b16 %v343
    %v654 = vunpack.c.l.b16 %v344
    %v655 = vunpack.c.h.b16 %v344
    %v656 = vunpack.c.l.b16 %v345
    %v657 = vunpack.c.h.b16 %v345
    %v658 = vunpack.c.l.b16 %v346
    %v659 = vunpack.c.h.b16 %v346
    %v660 = vunpack.c.l.b16 %v347
    %v661 = vunpack.c.h.b16 %v347
    %v662 = vunpack.c.l.b16 %v348
    %v663 = vunpack.c.h.b16 %v348
    %v664 = vunpack.c.l.b16 %v349
    %v665 = vunpack.c.h.b16 %v349
    %v666 = vunpack.c.l.b16 %v350
    %v667 = vunpack.c.h.b16 %v350
    %v668 = vunpack.c.l.b16 %v351
    %v669 = vunpack.c.h.b16 %v351
    %v670 = vunpack.c.l.b16 %v352
    %v671 = vunpack.c.h.b16 %v352
    %v672 = vunpack.c.l.b16 %v353
    %v673 = vunpack.c.h.b16 %v353
    %v674 = vunpack.c.l.b16 %v354
    %v675 = vunpack.c.h.b16 %v354
    %v676 = vunpack.c.l.b16 %v355
    %v677 = vunpack.c.h.b16 %v355
    %v678 = vunpack.c.l.b16 %v356
    %v679 = vunpack.c.h.b16 %v356
    %v680 = vunpack.c.l.b16 %v357
    %v681 = vunpack.c.h.b16 %v357
    %v682 = vunpack.c.l.b16 %v358
    %v683 = vunpack.c.h.b16 %v358
    %v684 = vunpack.c.l.b16 %v359
    %v685 = vunpack.c.h.b16 %v359
    %v686 = vunpack.c.l.b16 %v360
    %v687 = vunpack.c.h.b16 %v360
    %v688 = vunpack.c.l.b16 %v361
    %v689 = vunpack.c.h.b16 %v361
    %v690 = vunpack.c.l.b16 %v362
    %v691 = vunpack.c.h.b16 %v362
    %v692 = vunpack.c.l.b16 %v363
    %v693 = vunpack.c.h.b16 %v363
    %v694 = vunpack.c.l.b16 %v364
    %v695 = vunpack.c.h.b16 %v364
    %v696 = vunpack.c.l.b16 %v365
    %v697 = vunpack.c.h.b16 %v365
    %v698 = vunpack.c.l.b16 %v366
    %v699 = vunpack.c.h.b16 %v366
    %v700 = vunpack.c.l.b16 %v367
    %v701 = vunpack.c.h.b16 %v367
    %v702 = vunpack.c.l.b16 %v368
    %v703 = vunpack.c.h.b16 %v368
    %v704 = vunpack.c.l.b16 %v369
    %v705 = vunpack.c.h.b16 %v369
    %v706 = vunpack.c.l.b16 %v370
    %v707 = vunpack.c.h.b16 %v370
    %v708 = vunpack.c.l.b16 %v371
    %v709 = vunpack.c.h.b16 %v371
    %v710 = vunpack.c.l.b16 %v372
    %v711 = vunpack.c.h.b16 %v372
    %v712 = vunpack.c.l.b16 %v373
    %v713 = vunpack.c.h.b16 %v373
    %v714 = vunpack.c.l.b16 %v374
    %v715 = vunpack.c.h.b16 %v374
    %v716 = vunpack.c.l.b16 %v375
    %v717 = vunpack.c.h.b16 %v375
    %v718 = vunpack.c.l.b16 %v376
    %v719 = vunpack.c.h.b16 %v376
    %v720 = vunpack.c.l.b16 %v377
    %v721 = vunpack.c.h.b16 %v377
    %v722 = vunpack.c.l.b16 %v378
    %v723 = vunpack.c.h.b16 %v378
    %v724 = vunpack.c.l.b16 %v379
    %v725 = vunpack.c.h.b16 %v379
    %v726 = vunpack.c.l.b16 %v380
    %v727 = vunpack.c.h.b16 %v380
    %v728 = vunpack.c.l.b16 %v381
    %v729 = vunpack.c.h.b16 %v381
    %v730 = vunpack.c.l.b16 %v382
    %v731 = vunpack.c.h.b16 %v382
    %v732 = vunpack.c.l.b16 %v383
    %v733 = vunpack.c.h.b16 %v383
    %v734 = vunpack.c.l.b16 %v384
    %v735 = vunpack.c.h.b16 %v384
    %v736 = vunpack.c.l.b16 %v385
    %v737 = vunpack.c.h.b16 %v385
    %v738 = vunpack.c.l.b16 %v386
    %v739 = vunpack.c.h.b16 %v386
    %v740 = vunpack.c.l.b16 %v387
    %v741 = vunpack.c.h.b16 %v387
    %v742 = vunpack.c.l.b16 %v388
    %v743 = vunpack.c.h.b16 %v388
    %v744 = vunpack.c.l.b16 %v389
    %v745 = vunpack.c.h.b16 %v389
    %v746 = vunpack.c.l.b16 %v390
    %v747 = vunpack.c.h.b16 %v390
    %v748 = vunpack.c.l.b16 %v391
    %v749 = vunpack.c.h.b16 %v391
    %v750 = vunpack.c.l.b16 %v392
    %v751 = vunpack.c.h.b16 %v392
    %v752 = vunpack.c.l.b16 %v393
    %v753 = vunpack.c.h.b16 %v393
    %v754 = vunpack.c.l.b16 %v394
    %v755 = vunpack.c.h.b16 %v394
    %v756 = vunpack.c.l.b16 %v395
    %v757 = vunpack.c.h.b16 %v395
    %v758 = vunpack.c.l.b16 %v396
    %v759 = vunpack.c.h.b16 %v396
    %v760 = vunpack.c.l.b16 %v397
    %v761 = vunpack.c.h.b16 %v397
    %v762 = vunpack.c.l.b16 %v398
    %v763 = vunpack.c.h.b16 %v398
    %v764 = vunpack.c.l.b16 %v399
    %v765 = vunpack.c.h.b16 %v399
    %v766 = vunpack.c.l.b16 %v400
    %v767 = vunpack.c.h.b16 %v400
    %v768 = vunpack.c.l.b16 %v401
    %v769 = vunpack.c.h.b16 %v401
    %v770 = vunpack.c.l.b16 %v402
    %v771 = vunpack.c.h.b16 %v402
    %v772 = vunpack.c.l.b16 %v403
    %v773 = vunpack.c.h.b16 %v403
    %v774 = vunpack.c.l.b16 %v404
    %v775 = vunpack.c.h.b16 %v404
    %v776 = vunpack.c.l.b16 %v405
    %v777 = vunpack.c.h.b16 %v405
    %v778 = vunpack.c.l.b16 %v406
    %v779 = vunpack.c.h.b16 %v406
    %v780 = vunpack.c.l.b16 %v407
    %v781 = vunpack.c.h.b16 %v407
    %v782 = vunpack.c.l.b16 %v408
    %v783 = vunpack.c.h.b16 %v408
    %v784 = vunpack.c.l.b16 %v409
    %v785 = vunpack.c.h.b16 %v409
    %v786 = vunpack.c.l.b16 %v410
    %v787 = vunpack.c.h.b16 %v410
    %v788 = vunpack.c.l.b16 %v411
    %v789 = vunpack.c.h.b16 %v411
    %v790 = vunpack.c.l.b16 %v412
    %v791 = vunpack.c.h.b16 %v412
    %v792 = vunpack.c.l.b16 %v413
    %v793 = vunpack.c.h.b16 %v413
    %v794 = vunpack.c.l.b16 %v414
    %v795 = vunpack.c.h.b16 %v414
    %v796 = vunpack.c.l.b16 %v415
    %v797 = vunpack.c.h.b16 %v415
    %v798 = vunpack.c.l.b16 %v416
    %v799 = vunpack.c.h.b16 %v416
    %v800 = vunpack.c.l.b16 %v417
    %v801 = vunpack.c.h.b16 %v417
    %v802 = vunpack.c.l.b16 %v418
    %v803 = vunpack.c.h.b16 %v418
    %v804 = vunpack.c.l.b16 %v419
    %v805 = vunpack.c.h.b16 %v419
    %v806 = vunpack.c.l.b16 %v420
    %v807 = vunpack.c.h.b16 %v420
    %v808 = vunpack.c.l.b16 %v421
    %v809 = vunpack.c.h.b16 %v421
    %v810 = vunpack.c.l.b16 %v422
    %v811 = vunpack.c.h.b16 %v422
    %v812 = vunpack.c.l.b16 %v423
    %v813 = vunpack.c.h.b16 %v423
    %v814 = vunpack.c.l.b16 %v424
    %v815 = vunpack.c.h.b16 %v424
    %v816 = vunpack.c.l.b16 %v425
    %v817 = vunpack.c.h.b16 %v425
    %v818 = vunpack.c.l.b16 %v426
    %v819 = vunpack.c.h.b16 %v426
    %v820 = vunpack.c.l.b16 %v427
    %v821 = vunpack.c.h.b16 %v427
    %v822 = vunpack.c.l.b16 %v428
    %v823 = vunpack.c.h.b16 %v428
    %v824 = vunpack.c.l.b16 %v429
    %v825 = vunpack.c.h.b16 %v429
    %v826 = vunpack.c.l.b16 %v430
    %v827 = vunpack.c.h.b16 %v430
    %v828 = vunpack.c.l.b16 %v431
    %v829 = vunpack.c.h.b16 %v431
    %v830 = vunpack.c.l.b16 %v432
    %v831 = vunpack.c.h.b16 %v432
    %v832 = vunpack.c.l.b16 %v433
    %v833 = vunpack.c.h.b16 %v433
    %v834 = vunpack.c.l.b16 %v434
    %v835 = vunpack.c.h.b16 %v434
    %v836 = vunpack.c.l.b16 %v435
    %v837 = vunpack.c.h.b16 %v435
    %v838 = vunpack.c.l.b16 %v436
    %v839 = vunpack.c.h.b16 %v436
    %v840 = vunpack.c.l.b16 %v437
    %v841 = vunpack.c.h.b16 %v437
    %v842 = vunpack.c.l.b16 %v438
    %v843 = vunpack.c.h.b16 %v438
    %v844 = vunpack.c.l.b16 %v439
    %v845 = vunpack.c.h.b16 %v439
    %v846 = vpack.c.b16 %v594, %v590
    %v847 = vpack.c.b16 %v595, %v591
    %v848 = vpack.c.b16 %v596, %v592
    %v849 = vpack.c.b16 %v597, %v593
    %v850 = vpack.c.b16 %v602, %v598
    %v851 = vpack.c.b16 %v603, %v599
    %v852 = vpack.c.b16 %v604, %v600
    %v853 = vpack.c.b16 %v605, %v601
    %v854 = vpack.c.b16 %v610, %v606
    %v855 = vpack.c.b16 %v611, %v607
    %v856 = vpack.c.b16 %v612, %v608
    %v857 = vpack.c.b16 %v613, %v609
    %v858 = vpack.c.b16 %v618, %v614
    %v859 = vpack.c.b16 %v619, %v615
    %v860 = vpack.c.b16 %v620, %v616
    %v861 = vpack.c.b16 %v621, %v617
    %v862 = vpack.c.b16 %v626, %v622
    %v863 = vpack.c.b16 %v627, %v623
    %v864 = vpack.c.b16 %v628, %v624
    %v865 = vpack.c.b16 %v629, %v625
    %v866 = vpack.c.b16 %v634, %v630
    %v867 = vpack.c.b16 %v635, %v631
    %v868 = vpack.c.b16 %v636, %v632
    %v869 = vpack.c.b16 %v637, %v633
    %v870 = vpack.c.b16 %v642, %v638
    %v871 = vpack.c.b16 %v643, %v639
    %v872 = vpack.c.b16 %v644, %v640
    %v873 = vpack.c.b16 %v645, %v641
    %v874 = vpack.c.b16 %v650, %v646
    %v875 = vpack.c.b16 %v651, %v647
    %v876 = vpack.c.b16 %v652, %v648
    %v877 = vpack.c.b16 %v653, %v649
    %v878 = vpack.c.b16 %v658, %v654
    %v879 = vpack.c.b16 %v659, %v655
    %v880 = vpack.c.b16 %v660, %v656
    %v881 = vpack.c.b16 %v661, %v657
    %v882 = vpack.c.b16 %v666, %v662
    %v883 = vpack.c.b16 %v667, %v663
    %v884 = vpack.c.b16 %v668, %v664
    %v885 = vpack.c.b16 %v669, %v665
    %v886 = vpack.c.b16 %v674, %v670
    %v887 = vpack.c.b16 %v675, %v671
    %v888 = vpack.c.b16 %v676, %v672
    %v889 = vpack.c.b16 %v677, %v673
    %v890 = vpack.c.b16 %v682, %v678
    %v891 = vpack.c.b16 %v683, %v679
    %v892 = vpack.c.b16 %v684, %v680
    %v893 = vpack.c.b16 %v685, %v681
    %v894 = vpack.c.b16 %v690, %v686
    %v895 = vpack.c.b16 %v691, %v687
    %v896 = vpack.c.b16 %v692, %v688
    %v897 = vpack.c.b16 %v693, %v689
    %v898 = vpack.c.b16 %v698, %v694
    %v899 = vpack.c.b16 %v699, %v695
    %v900 = vpack.c.b16 %v700, %v696
    %v901 = vpack.c.b16 %v701, %v697
    %v902 = vpack.c.b16 %v706, %v702
    %v903 = vpack.c.b16 %v707, %v703
    %v904 = vpack.c.b16 %v708, %v704
    %v905 = vpack.c.b16 %v709, %v705
    %v906 = vpack.c.b16 %v714, %v710
    %v907 = vpack.c.b16 %v715, %v711
    %v908 = vpack.c.b16 %v716, %v712
    %v909 = vpack.c.b16 %v717, %v713
    %v910 = vpack.c.b16 %v722, %v718
    %v911 = vpack.c.b16 %v723, %v719
    %v912 = vpack.c.b16 %v724, %v720
    %v913 = vpack.c.b16 %v725, %v721
    %v914 = vpack.c.b16 %v730, %v726
    %v915 = vpack.c.b16 %v731, %v727
    %v916 = vpack.c.b16 %v732, %v728
    %v917 = vpack.c.b16 %v733, %v729
    %v918 = vpack.c.b16 %v738, %v734
    %v919 = vpack.c.b16 %v739, %v735
    %v920 = vpack.c.b16 %v740, %v736
    %v921 = vpack.c.b16 %v741, %v737
    %v922 = vpack.c.b16 %v746, %v742
    %v923 = vpack.c.b16 %v747, %v743
    %v924 = vpack.c.b16 %v748, %v744
    %v925 = vpack.c.b16 %v749, %v745
    %v926 = vpack.c.b16 %v754, %v750
    %v927 = vpack.c.b16 %v755, %v751
    %v928 = vpack.c.b16 %v756, %v752
    %v929 = vpack.c.b16 %v757, %v753
    %v930 = vpack.c.b16 %v762, %v758
    %v931 = vpack.c.b16 %v763, %v759
    %v932 = vpack.c.b16 %v764, %v760
    %v933 = vpack.c.b16 %v765, %v761
    %v934 = vpack.c.b16 %v770, %v766
    %v935 = vpack.c.b16 %v771, %v767
    %v936 = vpack.c.b16 %v772, %v768
    %v937 = vpack.c.b16 %v773, %v769
    %v938 = vpack.c.b16 %v778, %v774
    %v939 = vpack.c.b16 %v779, %v775
    %v940 = vpack.c.b16 %v780, %v776
    %v941 = vpack.c.b16 %v781, %v777
    %v942 = vpack.c.b16 %v786, %v782
    %v943 = vpack.c.b16 %v787, %v783
    %v944 = vpack.c.b16 %v788, %v784
    %v945 = vpack.c.b16 %v789, %v785
    %v946 = vpack.c.b16 %v794, %v790
    %v947 = vpack.c.b16 %v795, %v791
    %v948 = vpack.c.b16 %v796, %v792
    %v949 = vpack.c.b16 %v797, %v793
    %v950 = vpack.c.b16 %v802, %v798
    %v951 = vpack.c.b16 %v803, %v799
    %v952 = vpack.c.b16 %v804, %v800
    %v953 = vpack.c.b16 %v805, %v801
    %v954 = vpack.c.b16 %v810, %v806
    %v955 = vpack.c.b16 %v811, %v807
    %v956 = vpack.c.b16 %v812, %v808
    %v957 = vpack.c.b16 %v813, %v809
    %v958 = vpack.c.b16 %v818, %v814
    %v959 = vpack.c.b16 %v819, %v815
    %v960 = vpack.c.b16 %v820, %v816
    %v961 = vpack.c.b16 %v821, %v817
    %v962 = vpack.c.b16 %v826, %v822
    %v963 = vpack.c.b16 %v827, %v823
    %v964 = vpack.c.b16 %v828, %v824
    %v965 = vpack.c.b16 %v829, %v825
    %v966 = vpack.c.b16 %v834, %v830
    %v967 = vpack.c.b16 %v835, %v831
    %v968 = vpack.c.b16 %v836, %v832
    %v969 = vpack.c.b16 %v837, %v833
    %v970 = vpack.c.b16 %v842, %v838
    %v971 = vpack.c.b16 %v843, %v839
    %v972 = vpack.c.b16 %v844, %v840
    %v973 = vpack.c.b16 %v845, %v841
    %1102 = vmatprep.subr.bf16.mxu0 %v875
    %1103 = vmatpush1.bf16.msra.mxu0 %v874
    %1104 = vmatprep.subr.bf16.mxu0 %v871
    %1105 = vmatpush1.bf16.msra.mxu0 %v870
    %1106 = vmatprep.subr.bf16.mxu0 %v867
    %1107 = vmatpush1.bf16.msra.mxu0 %v866
    %1108 = vmatprep.subr.bf16.mxu0 %v863
    %1109 = vmatpush1.bf16.msra.mxu0 %v862
    %1110 = vmatprep.subr.bf16.mxu0 %v859
    %1111 = vmatpush1.bf16.msra.mxu0 %v858
    %1112 = vmatprep.subr.bf16.mxu0 %v855
    %1113 = vmatpush1.bf16.msra.mxu0 %v854
    %1114 = vmatprep.subr.bf16.mxu0 %v851
    %1115 = vmatpush1.bf16.msra.mxu0 %v850
    %1116 = vmatprep.subr.bf16.mxu0 %v847
    %1117 = vmatpush1.bf16.msra.mxu0 %v846
    %1118 = vmatprep.subr.bf16.mxu0 %v907
    %1119 = vmatpush2.bf16.msra.mxu0 %v906
    %1120 = vmatprep.subr.bf16.mxu0 %v903
    %1121 = vmatpush2.bf16.msra.mxu0 %v902
    %1122 = vmatprep.subr.bf16.mxu0 %v899
    %1123 = vmatpush2.bf16.msra.mxu0 %v898
    %1124 = vmatprep.subr.bf16.mxu0 %v895
    %1125 = vmatpush2.bf16.msra.mxu0 %v894
    %1126 = vmatprep.subr.bf16.mxu0 %v891
    %1127 = vmatpush2.bf16.msra.mxu0 %v890
    %1128 = vmatprep.subr.bf16.mxu0 %v887
    %1129 = vmatpush2.bf16.msra.mxu0 %v886
    %1130 = vmatprep.subr.bf16.mxu0 %v883
    %1131 = vmatpush2.bf16.msra.mxu0 %v882
    %1132 = vmatprep.subr.bf16.mxu0 %v879
    %1133 = vmatpush2.bf16.msra.mxu0 %v878
    %1134 = vmatprep.mubr.bf16.mxu0 %v309
    %1135 = vmatmul.mubr.bf16.gmra.mxu0 %v308
    %v1136 = vpop.f32.mrf.mxu0
    %v1137 = vadd.f32 %v445, %v1136
    %v1138 = vpop.f32.mrf.mxu0
    %v1139 = vadd.f32 %v449, %v1138
    %v1140 = vpop.f32.mrf.mxu0
    %v1141 = vpop.f32.mrf.mxu0
    %1142 = vdwg.mxu0
    %1143 = vmatprep.subr.bf16.mxu0 %v939
    %1144 = vmatpush1.bf16.msra.mxu0 %v938
    %1145 = vmatprep.subr.bf16.mxu0 %v935
    %1146 = vmatpush1.bf16.msra.mxu0 %v934
    %1147 = vmatprep.subr.bf16.mxu0 %v931
    %1148 = vmatpush1.bf16.msra.mxu0 %v930
    %1149 = vmatprep.subr.bf16.mxu0 %v927
    %1150 = vmatpush1.bf16.msra.mxu0 %v926
    %1151 = vmatprep.subr.bf16.mxu0 %v923
    %1152 = vmatpush1.bf16.msra.mxu0 %v922
    %1153 = vmatprep.subr.bf16.mxu0 %v919
    %1154 = vmatpush1.bf16.msra.mxu0 %v918
    %1155 = vmatprep.subr.bf16.mxu0 %v915
    %1156 = vmatpush1.bf16.msra.mxu0 %v914
    %1157 = vmatprep.subr.bf16.mxu0 %v911
    %1158 = vmatpush1.bf16.msra.mxu0 %v910
    %1159 = vmatprep.subr.bf16.mxu0 %v971
    %1160 = vmatpush2.bf16.msra.mxu0 %v970
    %1161 = vmatprep.subr.bf16.mxu0 %v967
    %1162 = vmatpush2.bf16.msra.mxu0 %v966
    %1163 = vmatprep.subr.bf16.mxu0 %v963
    %1164 = vmatpush2.bf16.msra.mxu0 %v962
    %1165 = vmatprep.subr.bf16.mxu0 %v959
    %1166 = vmatpush2.bf16.msra.mxu0 %v958
    %1167 = vmatprep.subr.bf16.mxu0 %v955
    %1168 = vmatpush2.bf16.msra.mxu0 %v954
    %1169 = vmatprep.subr.bf16.mxu0 %v951
    %1170 = vmatpush2.bf16.msra.mxu0 %v950
    %1171 = vmatprep.subr.bf16.mxu0 %v947
    %1172 = vmatpush2.bf16.msra.mxu0 %v946
    %1173 = vmatprep.subr.bf16.mxu0 %v943
    %1174 = vmatpush2.bf16.msra.mxu0 %v942
    %1175 = vmatprep.mubr.bf16.mxu0 %v311
    %1176 = vmatmul.mubr.bf16.gmra.mxu0 %v310
    %v1177 = vpop.f32.mrf.mxu0
    %v1178 = vadd.f32 %v1137, %v1177
    %v1179 = vpop.f32.mrf.mxu0
    %v1180 = vadd.f32 %v1139, %v1179
    %v1181 = vpop.f32.mrf.mxu0
    %v1182 = vpop.f32.mrf.mxu0
    %1183 = vdwg.mxu0
    %1184 = vmatprep.subr.bf16.mxu0 %v877
    %1185 = vmatpush1.bf16.msra.mxu0 %v876
    %1186 = vmatprep.subr.bf16.mxu0 %v873
    %1187 = vmatpush1.bf16.msra.mxu0 %v872
    %1188 = vmatprep.subr.bf16.mxu0 %v869
    %1189 = vmatpush1.bf16.msra.mxu0 %v868
    %1190 = vmatprep.subr.bf16.mxu0 %v865
    %1191 = vmatpush1.bf16.msra.mxu0 %v864
    %1192 = vmatprep.subr.bf16.mxu0 %v861
    %1193 = vmatpush1.bf16.msra.mxu0 %v860
    %1194 = vmatprep.subr.bf16.mxu0 %v857
    %1195 = vmatpush1.bf16.msra.mxu0 %v856
    %1196 = vmatprep.subr.bf16.mxu0 %v853
    %1197 = vmatpush1.bf16.msra.mxu0 %v852
    %1198 = vmatprep.subr.bf16.mxu0 %v849
    %1199 = vmatpush1.bf16.msra.mxu0 %v848
    %1200 = vmatprep.subr.bf16.mxu0 %v909
    %1201 = vmatpush2.bf16.msra.mxu0 %v908
    %1202 = vmatprep.subr.bf16.mxu0 %v905
    %1203 = vmatpush2.bf16.msra.mxu0 %v904
    %1204 = vmatprep.subr.bf16.mxu0 %v901
    %1205 = vmatpush2.bf16.msra.mxu0 %v900
    %1206 = vmatprep.subr.bf16.mxu0 %v897
    %1207 = vmatpush2.bf16.msra.mxu0 %v896
    %1208 = vmatprep.subr.bf16.mxu0 %v893
    %1209 = vmatpush2.bf16.msra.mxu0 %v892
    %1210 = vmatprep.subr.bf16.mxu0 %v889
    %1211 = vmatpush2.bf16.msra.mxu0 %v888
    %1212 = vmatprep.subr.bf16.mxu0 %v885
    %1213 = vmatpush2.bf16.msra.mxu0 %v884
    %1214 = vmatprep.subr.bf16.mxu0 %v881
    %1215 = vmatpush2.bf16.msra.mxu0 %v880
    %1216 = vmatprep.mubr.bf16.mxu0 %v309
    %1217 = vmatmul.mubr.bf16.gmra.mxu0 %v308
    %v1218 = vpop.f32.mrf.mxu0
    %v1219 = vadd.f32 %v453, %v1218
    %v1220 = vpop.f32.mrf.mxu0
    %v1221 = vadd.f32 %v457, %v1220
    %v1222 = vpop.f32.mrf.mxu0
    %v1223 = vpop.f32.mrf.mxu0
    %1224 = vdwg.mxu0
    %1225 = vmatprep.subr.bf16.mxu0 %v941
    %1226 = vmatpush1.bf16.msra.mxu0 %v940
    %1227 = vmatprep.subr.bf16.mxu0 %v937
    %1228 = vmatpush1.bf16.msra.mxu0 %v936
    %1229 = vmatprep.subr.bf16.mxu0 %v933
    %1230 = vmatpush1.bf16.msra.mxu0 %v932
    %1231 = vmatprep.subr.bf16.mxu0 %v929
    %1232 = vmatpush1.bf16.msra.mxu0 %v928
    %1233 = vmatprep.subr.bf16.mxu0 %v925
    %1234 = vmatpush1.bf16.msra.mxu0 %v924
    %1235 = vmatprep.subr.bf16.mxu0 %v921
    %1236 = vmatpush1.bf16.msra.mxu0 %v920
    %1237 = vmatprep.subr.bf16.mxu0 %v917
    %1238 = vmatpush1.bf16.msra.mxu0 %v916
    %1239 = vmatprep.subr.bf16.mxu0 %v913
    %1240 = vmatpush1.bf16.msra.mxu0 %v912
    %1241 = vmatprep.subr.bf16.mxu0 %v973
    %1242 = vmatpush2.bf16.msra.mxu0 %v972
    %1243 = vmatprep.subr.bf16.mxu0 %v969
    %1244 = vmatpush2.bf16.msra.mxu0 %v968
    %1245 = vmatprep.subr.bf16.mxu0 %v965
    %1246 = vmatpush2.bf16.msra.mxu0 %v964
    %1247 = vmatprep.subr.bf16.mxu0 %v961
    %1248 = vmatpush2.bf16.msra.mxu0 %v960
    %1249 = vmatprep.subr.bf16.mxu0 %v957
    %1250 = vmatpush2.bf16.msra.mxu0 %v956
    %1251 = vmatprep.subr.bf16.mxu0 %v953
    %1252 = vmatpush2.bf16.msra.mxu0 %v952
    %1253 = vmatprep.subr.bf16.mxu0 %v949
    %1254 = vmatpush2.bf16.msra.mxu0 %v948
    %1255 = vmatprep.subr.bf16.mxu0 %v945
    %1256 = vmatpush2.bf16.msra.mxu0 %v944
    %1257 = vmatprep.mubr.bf16.mxu0 %v311
    %1258 = vmatmul.mubr.bf16.gmra.mxu0 %v310
    %v1259 = vpop.f32.mrf.mxu0
    %v1260 = vadd.f32 %v1219, %v1259
    %v1261 = vpop.f32.mrf.mxu0
    %v1262 = vadd.f32 %v1221, %v1261
    %v1263 = vpop.f32.mrf.mxu0
    %v1264 = vpop.f32.mrf.mxu0
    %1265 = vdwg.mxu0
    %v1266 = vmax.f32 %v1178, 0.0
    %v1267 = vmax.f32 %v1180, 0.0
    %v1268 = vmax.f32 %v1260, 0.0
    %v1269 = vmax.f32 %v1262, 0.0
    %v1270 = vpack.c.bf16 %v1266, %v1266
    %v1271 = vpack.c.bf16 %v1267, %v1267
    %v1272 = vpack.c.bf16 %v1268, %v1268
    %v1273 = vpack.c.bf16 %v1269, %v1269
    %v1274 = vld [vmem:[#allocation11] sm:$0xff]
    %v1275 = vld [vmem:[#allocation11 + $0x8] sm:$0xff]
    %v1276 = vld [vmem:[#allocation11 + $0x10] sm:$0xff]
    %v1277 = vld [vmem:[#allocation11 + $0x18] sm:$0xff]
    %v1278 = vld [vmem:[#allocation11 + $0x20] sm:$0xff]
    %v1279 = vld [vmem:[#allocation11 + $0x28] sm:$0xff]
    %v1280 = vld [vmem:[#allocation11 + $0x30] sm:$0xff]
    %v1281 = vld [vmem:[#allocation11 + $0x38] sm:$0xff]
    %v1282 = vld [vmem:[#allocation11 + $0x40] sm:$0xff]
    %v1283 = vld [vmem:[#allocation11 + $0x48] sm:$0xff]
    %v1284 = vld [vmem:[#allocation11 + $0x50] sm:$0xff]
    %v1285 = vld [vmem:[#allocation11 + $0x58] sm:$0xff]
    %v1286 = vld [vmem:[#allocation11 + $0x60] sm:$0xff]
    %v1287 = vld [vmem:[#allocation11 + $0x68] sm:$0xff]
    %v1288 = vld [vmem:[#allocation11 + $0x70] sm:$0xff]
    %v1289 = vld [vmem:[#allocation11 + $0x78] sm:$0xff]
    %v1290 = vld [vmem:[#allocation11 + $0x80] sm:$0xff]
    %v1291 = vld [vmem:[#allocation11 + $0x88] sm:$0xff]
    %v1292 = vld [vmem:[#allocation11 + $0x90] sm:$0xff]
    %v1293 = vld [vmem:[#allocation11 + $0x98] sm:$0xff]
    %v1294 = vld [vmem:[#allocation11 + $0xa0] sm:$0xff]
    %v1295 = vld [vmem:[#allocation11 + $0xa8] sm:$0xff]
    %v1296 = vld [vmem:[#allocation11 + $0xb0] sm:$0xff]
    %v1297 = vld [vmem:[#allocation11 + $0xb8] sm:$0xff]
    %v1298 = vld [vmem:[#allocation11 + $0xc0] sm:$0xff]
    %v1299 = vld [vmem:[#allocation11 + $0xc8] sm:$0xff]
    %v1300 = vld [vmem:[#allocation11 + $0xd0] sm:$0xff]
    %v1301 = vld [vmem:[#allocation11 + $0xd8] sm:$0xff]
    %v1302 = vld [vmem:[#allocation11 + $0xe0] sm:$0xff]
    %v1303 = vld [vmem:[#allocation11 + $0xe8] sm:$0xff]
    %v1304 = vld [vmem:[#allocation11 + $0xf0] sm:$0xff]
    %v1305 = vld [vmem:[#allocation11 + $0xf8] sm:$0xff]
    %v1306 = vld [vmem:[#allocation11 + $0x100] sm:$0xff]
    %v1307 = vld [vmem:[#allocation11 + $0x108] sm:$0xff]
    %v1308 = vld [vmem:[#allocation11 + $0x110] sm:$0xff]
    %v1309 = vld [vmem:[#allocation11 + $0x118] sm:$0xff]
    %v1310 = vld [vmem:[#allocation11 + $0x120] sm:$0xff]
    %v1311 = vld [vmem:[#allocation11 + $0x128] sm:$0xff]
    %v1312 = vld [vmem:[#allocation11 + $0x130] sm:$0xff]
    %v1313 = vld [vmem:[#allocation11 + $0x138] sm:$0xff]
    %v1314 = vld [vmem:[#allocation11 + $0x140] sm:$0xff]
    %v1315 = vld [vmem:[#allocation11 + $0x148] sm:$0xff]
    %v1316 = vld [vmem:[#allocation11 + $0x150] sm:$0xff]
    %v1317 = vld [vmem:[#allocation11 + $0x158] sm:$0xff]
    %v1318 = vld [vmem:[#allocation11 + $0x160] sm:$0xff]
    %v1319 = vld [vmem:[#allocation11 + $0x168] sm:$0xff]
    %v1320 = vld [vmem:[#allocation11 + $0x170] sm:$0xff]
    %v1321 = vld [vmem:[#allocation11 + $0x178] sm:$0xff]
    %v1322 = vld [vmem:[#allocation11 + $0x180] sm:$0xff]
    %v1323 = vld [vmem:[#allocation11 + $0x188] sm:$0xff]
    %v1324 = vld [vmem:[#allocation11 + $0x190] sm:$0xff]
    %v1325 = vld [vmem:[#allocation11 + $0x198] sm:$0xff]
    %v1326 = vld [vmem:[#allocation11 + $0x1a0] sm:$0xff]
    %v1327 = vld [vmem:[#allocation11 + $0x1a8] sm:$0xff]
    %v1328 = vld [vmem:[#allocation11 + $0x1b0] sm:$0xff]
    %v1329 = vld [vmem:[#allocation11 + $0x1b8] sm:$0xff]
    %v1330 = vld [vmem:[#allocation11 + $0x1c0] sm:$0xff]
    %v1331 = vld [vmem:[#allocation11 + $0x1c8] sm:$0xff]
    %v1332 = vld [vmem:[#allocation11 + $0x1d0] sm:$0xff]
    %v1333 = vld [vmem:[#allocation11 + $0x1d8] sm:$0xff]
    %v1334 = vld [vmem:[#allocation11 + $0x1e0] sm:$0xff]
    %v1335 = vld [vmem:[#allocation11 + $0x1e8] sm:$0xff]
    %v1336 = vld [vmem:[#allocation11 + $0x1f0] sm:$0xff]
    %v1337 = vld [vmem:[#allocation11 + $0x1f8] sm:$0xff]
    %v1338 = vld [vmem:[#allocation11 + $0x200] sm:$0xff]
    %v1339 = vld [vmem:[#allocation11 + $0x208] sm:$0xff]
    %v1340 = vld [vmem:[#allocation11 + $0x210] sm:$0xff]
    %v1341 = vld [vmem:[#allocation11 + $0x218] sm:$0xff]
    %v1342 = vld [vmem:[#allocation11 + $0x220] sm:$0xff]
    %v1343 = vld [vmem:[#allocation11 + $0x228] sm:$0xff]
    %v1344 = vld [vmem:[#allocation11 + $0x230] sm:$0xff]
    %v1345 = vld [vmem:[#allocation11 + $0x238] sm:$0xff]
    %v1346 = vld [vmem:[#allocation11 + $0x240] sm:$0xff]
    %v1347 = vld [vmem:[#allocation11 + $0x248] sm:$0xff]
    %v1348 = vld [vmem:[#allocation11 + $0x250] sm:$0xff]
    %v1349 = vld [vmem:[#allocation11 + $0x258] sm:$0xff]
    %v1350 = vld [vmem:[#allocation11 + $0x260] sm:$0xff]
    %v1351 = vld [vmem:[#allocation11 + $0x268] sm:$0xff]
    %v1352 = vld [vmem:[#allocation11 + $0x270] sm:$0xff]
    %v1353 = vld [vmem:[#allocation11 + $0x278] sm:$0xff]
    %v1354 = vld [vmem:[#allocation11 + $0x280] sm:$0xff]
    %v1355 = vld [vmem:[#allocation11 + $0x288] sm:$0xff]
    %v1356 = vld [vmem:[#allocation11 + $0x290] sm:$0xff]
    %v1357 = vld [vmem:[#allocation11 + $0x298] sm:$0xff]
    %v1358 = vld [vmem:[#allocation11 + $0x2a0] sm:$0xff]
    %v1359 = vld [vmem:[#allocation11 + $0x2a8] sm:$0xff]
    %v1360 = vld [vmem:[#allocation11 + $0x2b0] sm:$0xff]
    %v1361 = vld [vmem:[#allocation11 + $0x2b8] sm:$0xff]
    %v1362 = vld [vmem:[#allocation11 + $0x2c0] sm:$0xff]
    %v1363 = vld [vmem:[#allocation11 + $0x2c8] sm:$0xff]
    %v1364 = vld [vmem:[#allocation11 + $0x2d0] sm:$0xff]
    %v1365 = vld [vmem:[#allocation11 + $0x2d8] sm:$0xff]
    %v1366 = vld [vmem:[#allocation11 + $0x2e0] sm:$0xff]
    %v1367 = vld [vmem:[#allocation11 + $0x2e8] sm:$0xff]
    %v1368 = vld [vmem:[#allocation11 + $0x2f0] sm:$0xff]
    %v1369 = vld [vmem:[#allocation11 + $0x2f8] sm:$0xff]
    %v1370 = vld [vmem:[#allocation11 + $0x300] sm:$0xff]
    %v1371 = vld [vmem:[#allocation11 + $0x308] sm:$0xff]
    %v1372 = vld [vmem:[#allocation11 + $0x310] sm:$0xff]
    %v1373 = vld [vmem:[#allocation11 + $0x318] sm:$0xff]
    %v1374 = vld [vmem:[#allocation11 + $0x320] sm:$0xff]
    %v1375 = vld [vmem:[#allocation11 + $0x328] sm:$0xff]
    %v1376 = vld [vmem:[#allocation11 + $0x330] sm:$0xff]
    %v1377 = vld [vmem:[#allocation11 + $0x338] sm:$0xff]
    %v1378 = vld [vmem:[#allocation11 + $0x340] sm:$0xff]
    %v1379 = vld [vmem:[#allocation11 + $0x348] sm:$0xff]
    %v1380 = vld [vmem:[#allocation11 + $0x350] sm:$0xff]
    %v1381 = vld [vmem:[#allocation11 + $0x358] sm:$0xff]
    %v1382 = vld [vmem:[#allocation11 + $0x360] sm:$0xff]
    %v1383 = vld [vmem:[#allocation11 + $0x368] sm:$0xff]
    %v1384 = vld [vmem:[#allocation11 + $0x370] sm:$0xff]
    %v1385 = vld [vmem:[#allocation11 + $0x378] sm:$0xff]
    %v1386 = vld [vmem:[#allocation11 + $0x380] sm:$0xff]
    %v1387 = vld [vmem:[#allocation11 + $0x388] sm:$0xff]
    %v1388 = vld [vmem:[#allocation11 + $0x390] sm:$0xff]
    %v1389 = vld [vmem:[#allocation11 + $0x398] sm:$0xff]
    %v1390 = vld [vmem:[#allocation11 + $0x3a0] sm:$0xff]
    %v1391 = vld [vmem:[#allocation11 + $0x3a8] sm:$0xff]
    %v1392 = vld [vmem:[#allocation11 + $0x3b0] sm:$0xff]
    %v1393 = vld [vmem:[#allocation11 + $0x3b8] sm:$0xff]
    %v1394 = vld [vmem:[#allocation11 + $0x3c0] sm:$0xff]
    %v1395 = vld [vmem:[#allocation11 + $0x3c8] sm:$0xff]
    %v1396 = vld [vmem:[#allocation11 + $0x3d0] sm:$0xff]
    %v1397 = vld [vmem:[#allocation11 + $0x3d8] sm:$0xff]
    %v1398 = vld [vmem:[#allocation11 + $0x3e0] sm:$0xff]
    %v1399 = vld [vmem:[#allocation11 + $0x3e8] sm:$0xff]
    %v1400 = vld [vmem:[#allocation11 + $0x3f0] sm:$0xff]
    %v1401 = vld [vmem:[#allocation11 + $0x3f8] sm:$0xff]
    %v1402 = vld [vmem:[#allocation11 + $0x400] sm:$0xff]
    %v1403 = vld [vmem:[#allocation11 + $0x408] sm:$0xff]
    %v1404 = vld [vmem:[#allocation11 + $0x410] sm:$0xff]
    %v1405 = vld [vmem:[#allocation11 + $0x418] sm:$0xff]
    %v1406 = vld [vmem:[#allocation11 + $0x420] sm:$0xff]
    %v1407 = vld [vmem:[#allocation11 + $0x428] sm:$0xff]
    %v1408 = vld [vmem:[#allocation11 + $0x430] sm:$0xff]
    %v1409 = vld [vmem:[#allocation11 + $0x438] sm:$0xff]
    %v1410 = vld [vmem:[#allocation11 + $0x440] sm:$0xff]
    %v1411 = vld [vmem:[#allocation11 + $0x448] sm:$0xff]
    %v1412 = vld [vmem:[#allocation11 + $0x450] sm:$0xff]
    %v1413 = vld [vmem:[#allocation11 + $0x458] sm:$0xff]
    %v1414 = vld [vmem:[#allocation11 + $0x460] sm:$0xff]
    %v1415 = vld [vmem:[#allocation11 + $0x468] sm:$0xff]
    %v1416 = vld [vmem:[#allocation11 + $0x470] sm:$0xff]
    %v1417 = vld [vmem:[#allocation11 + $0x478] sm:$0xff]
    %v1418 = vld [vmem:[#allocation11 + $0x480] sm:$0xff]
    %v1419 = vld [vmem:[#allocation11 + $0x488] sm:$0xff]
    %v1420 = vld [vmem:[#allocation11 + $0x490] sm:$0xff]
    %v1421 = vld [vmem:[#allocation11 + $0x498] sm:$0xff]
    %v1422 = vld [vmem:[#allocation11 + $0x4a0] sm:$0xff]
    %v1423 = vld [vmem:[#allocation11 + $0x4a8] sm:$0xff]
    %v1424 = vld [vmem:[#allocation11 + $0x4b0] sm:$0xff]
    %v1425 = vld [vmem:[#allocation11 + $0x4b8] sm:$0xff]
    %v1426 = vld [vmem:[#allocation11 + $0x4c0] sm:$0xff]
    %v1427 = vld [vmem:[#allocation11 + $0x4c8] sm:$0xff]
    %v1428 = vld [vmem:[#allocation11 + $0x4d0] sm:$0xff]
    %v1429 = vld [vmem:[#allocation11 + $0x4d8] sm:$0xff]
    %v1430 = vld [vmem:[#allocation11 + $0x4e0] sm:$0xff]
    %v1431 = vld [vmem:[#allocation11 + $0x4e8] sm:$0xff]
    %v1432 = vld [vmem:[#allocation11 + $0x4f0] sm:$0xff]
    %v1433 = vld [vmem:[#allocation11 + $0x4f8] sm:$0xff]
    %v1434 = vld [vmem:[#allocation11 + $0x500] sm:$0xff]
    %v1435 = vld [vmem:[#allocation11 + $0x508] sm:$0xff]
    %v1436 = vld [vmem:[#allocation11 + $0x510] sm:$0xff]
    %v1437 = vld [vmem:[#allocation11 + $0x518] sm:$0xff]
    %v1438 = vld [vmem:[#allocation11 + $0x520] sm:$0xff]
    %v1439 = vld [vmem:[#allocation11 + $0x528] sm:$0xff]
    %v1440 = vld [vmem:[#allocation11 + $0x530] sm:$0xff]
    %v1441 = vld [vmem:[#allocation11 + $0x538] sm:$0xff]
    %v1442 = vld [vmem:[#allocation11 + $0x540] sm:$0xff]
    %v1443 = vld [vmem:[#allocation11 + $0x548] sm:$0xff]
    %v1444 = vld [vmem:[#allocation11 + $0x550] sm:$0xff]
    %v1445 = vld [vmem:[#allocation11 + $0x558] sm:$0xff]
    %v1446 = vld [vmem:[#allocation11 + $0x560] sm:$0xff]
    %v1447 = vld [vmem:[#allocation11 + $0x568] sm:$0xff]
    %v1448 = vld [vmem:[#allocation11 + $0x570] sm:$0xff]
    %v1449 = vld [vmem:[#allocation11 + $0x578] sm:$0xff]
    %v1450 = vld [vmem:[#allocation11 + $0x580] sm:$0xff]
    %v1451 = vld [vmem:[#allocation11 + $0x588] sm:$0xff]
    %v1452 = vld [vmem:[#allocation11 + $0x590] sm:$0xff]
    %v1453 = vld [vmem:[#allocation11 + $0x598] sm:$0xff]
    %v1454 = vld [vmem:[#allocation11 + $0x5a0] sm:$0xff]
    %v1455 = vld [vmem:[#allocation11 + $0x5a8] sm:$0xff]
    %v1456 = vld [vmem:[#allocation11 + $0x5b0] sm:$0xff]
    %v1457 = vld [vmem:[#allocation11 + $0x5b8] sm:$0xff]
    %v1458 = vld [vmem:[#allocation11 + $0x5c0] sm:$0xff]
    %v1459 = vld [vmem:[#allocation11 + $0x5c8] sm:$0xff]
    %v1460 = vld [vmem:[#allocation11 + $0x5d0] sm:$0xff]
    %v1461 = vld [vmem:[#allocation11 + $0x5d8] sm:$0xff]
    %v1462 = vld [vmem:[#allocation11 + $0x5e0] sm:$0xff]
    %v1463 = vld [vmem:[#allocation11 + $0x5e8] sm:$0xff]
    %v1464 = vld [vmem:[#allocation11 + $0x5f0] sm:$0xff]
    %v1465 = vld [vmem:[#allocation11 + $0x5f8] sm:$0xff]
    %v1466 = vld [vmem:[#allocation11 + $0x600] sm:$0xff]
    %v1467 = vld [vmem:[#allocation11 + $0x608] sm:$0xff]
    %v1468 = vld [vmem:[#allocation11 + $0x610] sm:$0xff]
    %v1469 = vld [vmem:[#allocation11 + $0x618] sm:$0xff]
    %v1470 = vld [vmem:[#allocation11 + $0x620] sm:$0xff]
    %v1471 = vld [vmem:[#allocation11 + $0x628] sm:$0xff]
    %v1472 = vld [vmem:[#allocation11 + $0x630] sm:$0xff]
    %v1473 = vld [vmem:[#allocation11 + $0x638] sm:$0xff]
    %v1474 = vld [vmem:[#allocation11 + $0x640] sm:$0xff]
    %v1475 = vld [vmem:[#allocation11 + $0x648] sm:$0xff]
    %v1476 = vld [vmem:[#allocation11 + $0x650] sm:$0xff]
    %v1477 = vld [vmem:[#allocation11 + $0x658] sm:$0xff]
    %v1478 = vld [vmem:[#allocation11 + $0x660] sm:$0xff]
    %v1479 = vld [vmem:[#allocation11 + $0x668] sm:$0xff]
    %v1480 = vld [vmem:[#allocation11 + $0x670] sm:$0xff]
    %v1481 = vld [vmem:[#allocation11 + $0x678] sm:$0xff]
    %v1482 = vld [vmem:[#allocation11 + $0x680] sm:$0xff]
    %v1483 = vld [vmem:[#allocation11 + $0x688] sm:$0xff]
    %v1484 = vld [vmem:[#allocation11 + $0x690] sm:$0xff]
    %v1485 = vld [vmem:[#allocation11 + $0x698] sm:$0xff]
    %v1486 = vld [vmem:[#allocation11 + $0x6a0] sm:$0xff]
    %v1487 = vld [vmem:[#allocation11 + $0x6a8] sm:$0xff]
    %v1488 = vld [vmem:[#allocation11 + $0x6b0] sm:$0xff]
    %v1489 = vld [vmem:[#allocation11 + $0x6b8] sm:$0xff]
    %v1490 = vld [vmem:[#allocation11 + $0x6c0] sm:$0xff]
    %v1491 = vld [vmem:[#allocation11 + $0x6c8] sm:$0xff]
    %v1492 = vld [vmem:[#allocation11 + $0x6d0] sm:$0xff]
    %v1493 = vld [vmem:[#allocation11 + $0x6d8] sm:$0xff]
    %v1494 = vld [vmem:[#allocation11 + $0x6e0] sm:$0xff]
    %v1495 = vld [vmem:[#allocation11 + $0x6e8] sm:$0xff]
    %v1496 = vld [vmem:[#allocation11 + $0x6f0] sm:$0xff]
    %v1497 = vld [vmem:[#allocation11 + $0x6f8] sm:$0xff]
    %v1498 = vld [vmem:[#allocation11 + $0x700] sm:$0xff]
    %v1499 = vld [vmem:[#allocation11 + $0x708] sm:$0xff]
    %v1500 = vld [vmem:[#allocation11 + $0x710] sm:$0xff]
    %v1501 = vld [vmem:[#allocation11 + $0x718] sm:$0xff]
    %v1502 = vld [vmem:[#allocation11 + $0x720] sm:$0xff]
    %v1503 = vld [vmem:[#allocation11 + $0x728] sm:$0xff]
    %v1504 = vld [vmem:[#allocation11 + $0x730] sm:$0xff]
    %v1505 = vld [vmem:[#allocation11 + $0x738] sm:$0xff]
    %v1506 = vld [vmem:[#allocation11 + $0x740] sm:$0xff]
    %v1507 = vld [vmem:[#allocation11 + $0x748] sm:$0xff]
    %v1508 = vld [vmem:[#allocation11 + $0x750] sm:$0xff]
    %v1509 = vld [vmem:[#allocation11 + $0x758] sm:$0xff]
    %v1510 = vld [vmem:[#allocation11 + $0x760] sm:$0xff]
    %v1511 = vld [vmem:[#allocation11 + $0x768] sm:$0xff]
    %v1512 = vld [vmem:[#allocation11 + $0x770] sm:$0xff]
    %v1513 = vld [vmem:[#allocation11 + $0x778] sm:$0xff]
    %v1514 = vld [vmem:[#allocation11 + $0x780] sm:$0xff]
    %v1515 = vld [vmem:[#allocation11 + $0x788] sm:$0xff]
    %v1516 = vld [vmem:[#allocation11 + $0x790] sm:$0xff]
    %v1517 = vld [vmem:[#allocation11 + $0x798] sm:$0xff]
    %v1518 = vld [vmem:[#allocation11 + $0x7a0] sm:$0xff]
    %v1519 = vld [vmem:[#allocation11 + $0x7a8] sm:$0xff]
    %v1520 = vld [vmem:[#allocation11 + $0x7b0] sm:$0xff]
    %v1521 = vld [vmem:[#allocation11 + $0x7b8] sm:$0xff]
    %v1522 = vld [vmem:[#allocation11 + $0x7c0] sm:$0xff]
    %v1523 = vld [vmem:[#allocation11 + $0x7c8] sm:$0xff]
    %v1524 = vld [vmem:[#allocation11 + $0x7d0] sm:$0xff]
    %v1525 = vld [vmem:[#allocation11 + $0x7d8] sm:$0xff]
    %v1526 = vld [vmem:[#allocation11 + $0x7e0] sm:$0xff]
    %v1527 = vld [vmem:[#allocation11 + $0x7e8] sm:$0xff]
    %v1528 = vld [vmem:[#allocation11 + $0x7f0] sm:$0xff]
    %v1529 = vld [vmem:[#allocation11 + $0x7f8] sm:$0xff]
    %v1530 = vld [vmem:[#allocation11 + $0x800] sm:$0xff]
    %v1531 = vld [vmem:[#allocation11 + $0x808] sm:$0xff]
    %v1532 = vld [vmem:[#allocation11 + $0x810] sm:$0xff]
    %v1533 = vld [vmem:[#allocation11 + $0x818] sm:$0xff]
    %v1534 = vld [vmem:[#allocation11 + $0x820] sm:$0xff]
    %v1535 = vld [vmem:[#allocation11 + $0x828] sm:$0xff]
    %v1536 = vld [vmem:[#allocation11 + $0x830] sm:$0xff]
    %v1537 = vld [vmem:[#allocation11 + $0x838] sm:$0xff]
    %v1538 = vld [vmem:[#allocation11 + $0x840] sm:$0xff]
    %v1539 = vld [vmem:[#allocation11 + $0x848] sm:$0xff]
    %v1540 = vld [vmem:[#allocation11 + $0x850] sm:$0xff]
    %v1541 = vld [vmem:[#allocation11 + $0x858] sm:$0xff]
    %v1542 = vld [vmem:[#allocation11 + $0x860] sm:$0xff]
    %v1543 = vld [vmem:[#allocation11 + $0x868] sm:$0xff]
    %v1544 = vld [vmem:[#allocation11 + $0x870] sm:$0xff]
    %v1545 = vld [vmem:[#allocation11 + $0x878] sm:$0xff]
    %v1546 = vld [vmem:[#allocation11 + $0x880] sm:$0xff]
    %v1547 = vld [vmem:[#allocation11 + $0x888] sm:$0xff]
    %v1548 = vld [vmem:[#allocation11 + $0x890] sm:$0xff]
    %v1549 = vld [vmem:[#allocation11 + $0x898] sm:$0xff]
    %v1550 = vld [vmem:[#allocation11 + $0x8a0] sm:$0xff]
    %v1551 = vld [vmem:[#allocation11 + $0x8a8] sm:$0xff]
    %v1552 = vld [vmem:[#allocation11 + $0x8b0] sm:$0xff]
    %v1553 = vld [vmem:[#allocation11 + $0x8b8] sm:$0xff]
    %v1554 = vld [vmem:[#allocation11 + $0x8c0] sm:$0xff]
    %v1555 = vld [vmem:[#allocation11 + $0x8c8] sm:$0xff]
    %v1556 = vld [vmem:[#allocation11 + $0x8d0] sm:$0xff]
    %v1557 = vld [vmem:[#allocation11 + $0x8d8] sm:$0xff]
    %v1558 = vld [vmem:[#allocation11 + $0x8e0] sm:$0xff]
    %v1559 = vld [vmem:[#allocation11 + $0x8e8] sm:$0xff]
    %v1560 = vld [vmem:[#allocation11 + $0x8f0] sm:$0xff]
    %v1561 = vld [vmem:[#allocation11 + $0x8f8] sm:$0xff]
    %v1562 = vld [vmem:[#allocation11 + $0x900] sm:$0xff]
    %v1563 = vld [vmem:[#allocation11 + $0x908] sm:$0xff]
    %v1564 = vld [vmem:[#allocation11 + $0x910] sm:$0xff]
    %v1565 = vld [vmem:[#allocation11 + $0x918] sm:$0xff]
    %v1566 = vld [vmem:[#allocation11 + $0x920] sm:$0xff]
    %v1567 = vld [vmem:[#allocation11 + $0x928] sm:$0xff]
    %v1568 = vld [vmem:[#allocation11 + $0x930] sm:$0xff]
    %v1569 = vld [vmem:[#allocation11 + $0x938] sm:$0xff]
    %v1570 = vld [vmem:[#allocation11 + $0x940] sm:$0xff]
    %v1571 = vld [vmem:[#allocation11 + $0x948] sm:$0xff]
    %v1572 = vld [vmem:[#allocation11 + $0x950] sm:$0xff]
    %v1573 = vld [vmem:[#allocation11 + $0x958] sm:$0xff]
    %v1574 = vld [vmem:[#allocation11 + $0x960] sm:$0xff]
    %v1575 = vld [vmem:[#allocation11 + $0x968] sm:$0xff]
    %v1576 = vld [vmem:[#allocation11 + $0x970] sm:$0xff]
    %v1577 = vld [vmem:[#allocation11 + $0x978] sm:$0xff]
    %v1578 = vld [vmem:[#allocation11 + $0x980] sm:$0xff]
    %v1579 = vld [vmem:[#allocation11 + $0x988] sm:$0xff]
    %v1580 = vld [vmem:[#allocation11 + $0x990] sm:$0xff]
    %v1581 = vld [vmem:[#allocation11 + $0x998] sm:$0xff]
    %v1582 = vld [vmem:[#allocation11 + $0x9a0] sm:$0xff]
    %v1583 = vld [vmem:[#allocation11 + $0x9a8] sm:$0xff]
    %v1584 = vld [vmem:[#allocation11 + $0x9b0] sm:$0xff]
    %v1585 = vld [vmem:[#allocation11 + $0x9b8] sm:$0xff]
    %v1586 = vld [vmem:[#allocation11 + $0x9c0] sm:$0xff]
    %v1587 = vld [vmem:[#allocation11 + $0x9c8] sm:$0xff]
    %v1588 = vld [vmem:[#allocation11 + $0x9d0] sm:$0xff]
    %v1589 = vld [vmem:[#allocation11 + $0x9d8] sm:$0xff]
    %v1590 = vld [vmem:[#allocation11 + $0x9e0] sm:$0xff]
    %v1591 = vld [vmem:[#allocation11 + $0x9e8] sm:$0xff]
    %v1592 = vld [vmem:[#allocation11 + $0x9f0] sm:$0xff]
    %v1593 = vld [vmem:[#allocation11 + $0x9f8] sm:$0xff]
    %v1594 = vld [vmem:[#allocation11 + $0xa00] sm:$0xff]
    %v1595 = vld [vmem:[#allocation11 + $0xa08] sm:$0xff]
    %v1596 = vld [vmem:[#allocation11 + $0xa10] sm:$0xff]
    %v1597 = vld [vmem:[#allocation11 + $0xa18] sm:$0xff]
    %v1598 = vld [vmem:[#allocation11 + $0xa20] sm:$0xff]
    %v1599 = vld [vmem:[#allocation11 + $0xa28] sm:$0xff]
    %v1600 = vld [vmem:[#allocation11 + $0xa30] sm:$0xff]
    %v1601 = vld [vmem:[#allocation11 + $0xa38] sm:$0xff]
    %v1602 = vld [vmem:[#allocation11 + $0xa40] sm:$0xff]
    %v1603 = vld [vmem:[#allocation11 + $0xa48] sm:$0xff]
    %v1604 = vld [vmem:[#allocation11 + $0xa50] sm:$0xff]
    %v1605 = vld [vmem:[#allocation11 + $0xa58] sm:$0xff]
    %v1606 = vld [vmem:[#allocation11 + $0xa60] sm:$0xff]
    %v1607 = vld [vmem:[#allocation11 + $0xa68] sm:$0xff]
    %v1608 = vld [vmem:[#allocation11 + $0xa70] sm:$0xff]
    %v1609 = vld [vmem:[#allocation11 + $0xa78] sm:$0xff]
    %v1610 = vld [vmem:[#allocation11 + $0xa80] sm:$0xff]
    %v1611 = vld [vmem:[#allocation11 + $0xa88] sm:$0xff]
    %v1612 = vld [vmem:[#allocation11 + $0xa90] sm:$0xff]
    %v1613 = vld [vmem:[#allocation11 + $0xa98] sm:$0xff]
    %v1614 = vld [vmem:[#allocation11 + $0xaa0] sm:$0xff]
    %v1615 = vld [vmem:[#allocation11 + $0xaa8] sm:$0xff]
    %v1616 = vld [vmem:[#allocation11 + $0xab0] sm:$0xff]
    %v1617 = vld [vmem:[#allocation11 + $0xab8] sm:$0xff]
    %v1618 = vld [vmem:[#allocation11 + $0xac0] sm:$0xff]
    %v1619 = vld [vmem:[#allocation11 + $0xac8] sm:$0xff]
    %v1620 = vld [vmem:[#allocation11 + $0xad0] sm:$0xff]
    %v1621 = vld [vmem:[#allocation11 + $0xad8] sm:$0xff]
    %v1622 = vld [vmem:[#allocation11 + $0xae0] sm:$0xff]
    %v1623 = vld [vmem:[#allocation11 + $0xae8] sm:$0xff]
    %v1624 = vld [vmem:[#allocation11 + $0xaf0] sm:$0xff]
    %v1625 = vld [vmem:[#allocation11 + $0xaf8] sm:$0xff]
    %v1626 = vld [vmem:[#allocation11 + $0xb00] sm:$0xff]
    %v1627 = vld [vmem:[#allocation11 + $0xb08] sm:$0xff]
    %v1628 = vld [vmem:[#allocation11 + $0xb10] sm:$0xff]
    %v1629 = vld [vmem:[#allocation11 + $0xb18] sm:$0xff]
    %v1630 = vld [vmem:[#allocation11 + $0xb20] sm:$0xff]
    %v1631 = vld [vmem:[#allocation11 + $0xb28] sm:$0xff]
    %v1632 = vld [vmem:[#allocation11 + $0xb30] sm:$0xff]
    %v1633 = vld [vmem:[#allocation11 + $0xb38] sm:$0xff]
    %v1634 = vld [vmem:[#allocation11 + $0xb40] sm:$0xff]
    %v1635 = vld [vmem:[#allocation11 + $0xb48] sm:$0xff]
    %v1636 = vld [vmem:[#allocation11 + $0xb50] sm:$0xff]
    %v1637 = vld [vmem:[#allocation11 + $0xb58] sm:$0xff]
    %v1638 = vld [vmem:[#allocation11 + $0xb60] sm:$0xff]
    %v1639 = vld [vmem:[#allocation11 + $0xb68] sm:$0xff]
    %v1640 = vld [vmem:[#allocation11 + $0xb70] sm:$0xff]
    %v1641 = vld [vmem:[#allocation11 + $0xb78] sm:$0xff]
    %v1642 = vld [vmem:[#allocation11 + $0xb80] sm:$0xff]
    %v1643 = vld [vmem:[#allocation11 + $0xb88] sm:$0xff]
    %v1644 = vld [vmem:[#allocation11 + $0xb90] sm:$0xff]
    %v1645 = vld [vmem:[#allocation11 + $0xb98] sm:$0xff]
    %v1646 = vld [vmem:[#allocation11 + $0xba0] sm:$0xff]
    %v1647 = vld [vmem:[#allocation11 + $0xba8] sm:$0xff]
    %v1648 = vld [vmem:[#allocation11 + $0xbb0] sm:$0xff]
    %v1649 = vld [vmem:[#allocation11 + $0xbb8] sm:$0xff]
    %v1650 = vld [vmem:[#allocation11 + $0xbc0] sm:$0xff]
    %v1651 = vld [vmem:[#allocation11 + $0xbc8] sm:$0xff]
    %v1652 = vld [vmem:[#allocation11 + $0xbd0] sm:$0xff]
    %v1653 = vld [vmem:[#allocation11 + $0xbd8] sm:$0xff]
    %v1654 = vld [vmem:[#allocation11 + $0xbe0] sm:$0xff]
    %v1655 = vld [vmem:[#allocation11 + $0xbe8] sm:$0xff]
    %v1656 = vld [vmem:[#allocation11 + $0xbf0] sm:$0xff]
    %v1657 = vld [vmem:[#allocation11 + $0xbf8] sm:$0xff]
    %v1658 = vld [vmem:[#allocation11 + $0xc00] sm:$0xff]
    %v1659 = vld [vmem:[#allocation11 + $0xc08] sm:$0xff]
    %v1660 = vld [vmem:[#allocation11 + $0xc10] sm:$0xff]
    %v1661 = vld [vmem:[#allocation11 + $0xc18] sm:$0xff]
    %v1662 = vld [vmem:[#allocation11 + $0xc20] sm:$0xff]
    %v1663 = vld [vmem:[#allocation11 + $0xc28] sm:$0xff]
    %v1664 = vld [vmem:[#allocation11 + $0xc30] sm:$0xff]
    %v1665 = vld [vmem:[#allocation11 + $0xc38] sm:$0xff]
    %v1666 = vld [vmem:[#allocation11 + $0xc40] sm:$0xff]
    %v1667 = vld [vmem:[#allocation11 + $0xc48] sm:$0xff]
    %v1668 = vld [vmem:[#allocation11 + $0xc50] sm:$0xff]
    %v1669 = vld [vmem:[#allocation11 + $0xc58] sm:$0xff]
    %v1670 = vld [vmem:[#allocation11 + $0xc60] sm:$0xff]
    %v1671 = vld [vmem:[#allocation11 + $0xc68] sm:$0xff]
    %v1672 = vld [vmem:[#allocation11 + $0xc70] sm:$0xff]
    %v1673 = vld [vmem:[#allocation11 + $0xc78] sm:$0xff]
    %v1674 = vld [vmem:[#allocation11 + $0xc80] sm:$0xff]
    %v1675 = vld [vmem:[#allocation11 + $0xc88] sm:$0xff]
    %v1676 = vld [vmem:[#allocation11 + $0xc90] sm:$0xff]
    %v1677 = vld [vmem:[#allocation11 + $0xc98] sm:$0xff]
    %v1678 = vld [vmem:[#allocation11 + $0xca0] sm:$0xff]
    %v1679 = vld [vmem:[#allocation11 + $0xca8] sm:$0xff]
    %v1680 = vld [vmem:[#allocation11 + $0xcb0] sm:$0xff]
    %v1681 = vld [vmem:[#allocation11 + $0xcb8] sm:$0xff]
    %v1682 = vld [vmem:[#allocation11 + $0xcc0] sm:$0xff]
    %v1683 = vld [vmem:[#allocation11 + $0xcc8] sm:$0xff]
    %v1684 = vld [vmem:[#allocation11 + $0xcd0] sm:$0xff]
    %v1685 = vld [vmem:[#allocation11 + $0xcd8] sm:$0xff]
    %v1686 = vld [vmem:[#allocation11 + $0xce0] sm:$0xff]
    %v1687 = vld [vmem:[#allocation11 + $0xce8] sm:$0xff]
    %v1688 = vld [vmem:[#allocation11 + $0xcf0] sm:$0xff]
    %v1689 = vld [vmem:[#allocation11 + $0xcf8] sm:$0xff]
    %v1690 = vld [vmem:[#allocation11 + $0xd00] sm:$0xff]
    %v1691 = vld [vmem:[#allocation11 + $0xd08] sm:$0xff]
    %v1692 = vld [vmem:[#allocation11 + $0xd10] sm:$0xff]
    %v1693 = vld [vmem:[#allocation11 + $0xd18] sm:$0xff]
    %v1694 = vld [vmem:[#allocation11 + $0xd20] sm:$0xff]
    %v1695 = vld [vmem:[#allocation11 + $0xd28] sm:$0xff]
    %v1696 = vld [vmem:[#allocation11 + $0xd30] sm:$0xff]
    %v1697 = vld [vmem:[#allocation11 + $0xd38] sm:$0xff]
    %v1698 = vld [vmem:[#allocation11 + $0xd40] sm:$0xff]
    %v1699 = vld [vmem:[#allocation11 + $0xd48] sm:$0xff]
    %v1700 = vld [vmem:[#allocation11 + $0xd50] sm:$0xff]
    %v1701 = vld [vmem:[#allocation11 + $0xd58] sm:$0xff]
    %v1702 = vld [vmem:[#allocation11 + $0xd60] sm:$0xff]
    %v1703 = vld [vmem:[#allocation11 + $0xd68] sm:$0xff]
    %v1704 = vld [vmem:[#allocation11 + $0xd70] sm:$0xff]
    %v1705 = vld [vmem:[#allocation11 + $0xd78] sm:$0xff]
    %v1706 = vld [vmem:[#allocation11 + $0xd80] sm:$0xff]
    %v1707 = vld [vmem:[#allocation11 + $0xd88] sm:$0xff]
    %v1708 = vld [vmem:[#allocation11 + $0xd90] sm:$0xff]
    %v1709 = vld [vmem:[#allocation11 + $0xd98] sm:$0xff]
    %v1710 = vld [vmem:[#allocation11 + $0xda0] sm:$0xff]
    %v1711 = vld [vmem:[#allocation11 + $0xda8] sm:$0xff]
    %v1712 = vld [vmem:[#allocation11 + $0xdb0] sm:$0xff]
    %v1713 = vld [vmem:[#allocation11 + $0xdb8] sm:$0xff]
    %v1714 = vld [vmem:[#allocation11 + $0xdc0] sm:$0xff]
    %v1715 = vld [vmem:[#allocation11 + $0xdc8] sm:$0xff]
    %v1716 = vld [vmem:[#allocation11 + $0xdd0] sm:$0xff]
    %v1717 = vld [vmem:[#allocation11 + $0xdd8] sm:$0xff]
    %v1718 = vld [vmem:[#allocation11 + $0xde0] sm:$0xff]
    %v1719 = vld [vmem:[#allocation11 + $0xde8] sm:$0xff]
    %v1720 = vld [vmem:[#allocation11 + $0xdf0] sm:$0xff]
    %v1721 = vld [vmem:[#allocation11 + $0xdf8] sm:$0xff]
    %v1722 = vld [vmem:[#allocation11 + $0xe00] sm:$0xff]
    %v1723 = vld [vmem:[#allocation11 + $0xe08] sm:$0xff]
    %v1724 = vld [vmem:[#allocation11 + $0xe10] sm:$0xff]
    %v1725 = vld [vmem:[#allocation11 + $0xe18] sm:$0xff]
    %v1726 = vld [vmem:[#allocation11 + $0xe20] sm:$0xff]
    %v1727 = vld [vmem:[#allocation11 + $0xe28] sm:$0xff]
    %v1728 = vld [vmem:[#allocation11 + $0xe30] sm:$0xff]
    %v1729 = vld [vmem:[#allocation11 + $0xe38] sm:$0xff]
    %v1730 = vld [vmem:[#allocation11 + $0xe40] sm:$0xff]
    %v1731 = vld [vmem:[#allocation11 + $0xe48] sm:$0xff]
    %v1732 = vld [vmem:[#allocation11 + $0xe50] sm:$0xff]
    %v1733 = vld [vmem:[#allocation11 + $0xe58] sm:$0xff]
    %v1734 = vld [vmem:[#allocation11 + $0xe60] sm:$0xff]
    %v1735 = vld [vmem:[#allocation11 + $0xe68] sm:$0xff]
    %v1736 = vld [vmem:[#allocation11 + $0xe70] sm:$0xff]
    %v1737 = vld [vmem:[#allocation11 + $0xe78] sm:$0xff]
    %v1738 = vld [vmem:[#allocation11 + $0xe80] sm:$0xff]
    %v1739 = vld [vmem:[#allocation11 + $0xe88] sm:$0xff]
    %v1740 = vld [vmem:[#allocation11 + $0xe90] sm:$0xff]
    %v1741 = vld [vmem:[#allocation11 + $0xe98] sm:$0xff]
    %v1742 = vld [vmem:[#allocation11 + $0xea0] sm:$0xff]
    %v1743 = vld [vmem:[#allocation11 + $0xea8] sm:$0xff]
    %v1744 = vld [vmem:[#allocation11 + $0xeb0] sm:$0xff]
    %v1745 = vld [vmem:[#allocation11 + $0xeb8] sm:$0xff]
    %v1746 = vld [vmem:[#allocation11 + $0xec0] sm:$0xff]
    %v1747 = vld [vmem:[#allocation11 + $0xec8] sm:$0xff]
    %v1748 = vld [vmem:[#allocation11 + $0xed0] sm:$0xff]
    %v1749 = vld [vmem:[#allocation11 + $0xed8] sm:$0xff]
    %v1750 = vld [vmem:[#allocation11 + $0xee0] sm:$0xff]
    %v1751 = vld [vmem:[#allocation11 + $0xee8] sm:$0xff]
    %v1752 = vld [vmem:[#allocation11 + $0xef0] sm:$0xff]
    %v1753 = vld [vmem:[#allocation11 + $0xef8] sm:$0xff]
    %v1754 = vld [vmem:[#allocation11 + $0xf00] sm:$0xff]
    %v1755 = vld [vmem:[#allocation11 + $0xf08] sm:$0xff]
    %v1756 = vld [vmem:[#allocation11 + $0xf10] sm:$0xff]
    %v1757 = vld [vmem:[#allocation11 + $0xf18] sm:$0xff]
    %v1758 = vld [vmem:[#allocation11 + $0xf20] sm:$0xff]
    %v1759 = vld [vmem:[#allocation11 + $0xf28] sm:$0xff]
    %v1760 = vld [vmem:[#allocation11 + $0xf30] sm:$0xff]
    %v1761 = vld [vmem:[#allocation11 + $0xf38] sm:$0xff]
    %v1762 = vld [vmem:[#allocation11 + $0xf40] sm:$0xff]
    %v1763 = vld [vmem:[#allocation11 + $0xf48] sm:$0xff]
    %v1764 = vld [vmem:[#allocation11 + $0xf50] sm:$0xff]
    %v1765 = vld [vmem:[#allocation11 + $0xf58] sm:$0xff]
    %v1766 = vld [vmem:[#allocation11 + $0xf60] sm:$0xff]
    %v1767 = vld [vmem:[#allocation11 + $0xf68] sm:$0xff]
    %v1768 = vld [vmem:[#allocation11 + $0xf70] sm:$0xff]
    %v1769 = vld [vmem:[#allocation11 + $0xf78] sm:$0xff]
    %v1770 = vld [vmem:[#allocation11 + $0xf80] sm:$0xff]
    %v1771 = vld [vmem:[#allocation11 + $0xf88] sm:$0xff]
    %v1772 = vld [vmem:[#allocation11 + $0xf90] sm:$0xff]
    %v1773 = vld [vmem:[#allocation11 + $0xf98] sm:$0xff]
    %v1774 = vld [vmem:[#allocation11 + $0xfa0] sm:$0xff]
    %v1775 = vld [vmem:[#allocation11 + $0xfa8] sm:$0xff]
    %v1776 = vld [vmem:[#allocation11 + $0xfb0] sm:$0xff]
    %v1777 = vld [vmem:[#allocation11 + $0xfb8] sm:$0xff]
    %v1778 = vld [vmem:[#allocation11 + $0xfc0] sm:$0xff]
    %v1779 = vld [vmem:[#allocation11 + $0xfc8] sm:$0xff]
    %v1780 = vld [vmem:[#allocation11 + $0xfd0] sm:$0xff]
    %v1781 = vld [vmem:[#allocation11 + $0xfd8] sm:$0xff]
    %v1782 = vld [vmem:[#allocation11 + $0xfe0] sm:$0xff]
    %v1783 = vld [vmem:[#allocation11 + $0xfe8] sm:$0xff]
    %v1784 = vld [vmem:[#allocation11 + $0xff0] sm:$0xff]
    %v1785 = vld [vmem:[#allocation11 + $0xff8] sm:$0xff]
    %v1786 = vld [vmem:[#allocation13] sm:$0xff]
    %v1787 = vld [vmem:[#allocation13 + $0x8] sm:$0xff]
    %v1790 = vlaneseq
    %v1791 = vshrl.u32 %v1790, 7
    %v1792 = vsub.s32 0, %v1791
    %v1793 = vrot.slane %v1786, %v1792
    %v1794 = vlaneseq
    %v1795 = vshrl.u32 %v1794, 7
    %v1796 = vsub.s32 1, %v1795
    %v1797 = vrot.slane %v1786, %v1796
    %v1798 = vlaneseq
    %v1799 = vshrl.u32 %v1798, 7
    %v1800 = vsub.s32 2, %v1799
    %v1801 = vrot.slane %v1786, %v1800
    %v1802 = vlaneseq
    %v1803 = vshrl.u32 %v1802, 7
    %v1804 = vsub.s32 3, %v1803
    %v1805 = vrot.slane %v1786, %v1804
    %v1806 = vlaneseq
    %v1807 = vshrl.u32 %v1806, 7
    %v1808 = vsub.s32 4, %v1807
    %v1809 = vrot.slane %v1786, %v1808
    %v1810 = vlaneseq
    %v1811 = vshrl.u32 %v1810, 7
    %v1812 = vsub.s32 5, %v1811
    %v1813 = vrot.slane %v1786, %v1812
    %v1814 = vlaneseq
    %v1815 = vshrl.u32 %v1814, 7
    %v1816 = vsub.s32 6, %v1815
    %v1817 = vrot.slane %v1786, %v1816
    %v1818 = vlaneseq
    %v1819 = vshrl.u32 %v1818, 7
    %v1820 = vsub.s32 7, %v1819
    %v1821 = vrot.slane %v1786, %v1820
    %v1822 = vlaneseq
    %v1823 = vshrl.u32 %v1822, 7
    %v1824 = vsub.s32 0, %v1823
    %v1825 = vrot.slane %v1787, %v1824
    %v1826 = vlaneseq
    %v1827 = vshrl.u32 %v1826, 7
    %v1828 = vsub.s32 1, %v1827
    %v1829 = vrot.slane %v1787, %v1828
    %v1830 = vlaneseq
    %v1831 = vshrl.u32 %v1830, 7
    %v1832 = vsub.s32 2, %v1831
    %v1833 = vrot.slane %v1787, %v1832
    %v1834 = vlaneseq
    %v1835 = vshrl.u32 %v1834, 7
    %v1836 = vsub.s32 3, %v1835
    %v1837 = vrot.slane %v1787, %v1836
    %v1838 = vlaneseq
    %v1839 = vshrl.u32 %v1838, 7
    %v1840 = vsub.s32 4, %v1839
    %v1841 = vrot.slane %v1787, %v1840
    %v1842 = vlaneseq
    %v1843 = vshrl.u32 %v1842, 7
    %v1844 = vsub.s32 5, %v1843
    %v1845 = vrot.slane %v1787, %v1844
    %v1846 = vlaneseq
    %v1847 = vshrl.u32 %v1846, 7
    %v1848 = vsub.s32 6, %v1847
    %v1849 = vrot.slane %v1787, %v1848
    %v1850 = vlaneseq
    %v1851 = vshrl.u32 %v1850, 7
    %v1852 = vsub.s32 7, %v1851
    %v1853 = vrot.slane %v1787, %v1852
    %v2382 = vunpack.c.l.b16 %v1274
    %v2383 = vunpack.c.h.b16 %v1274
    %v2384 = vunpack.c.l.b16 %v1275
    %v2385 = vunpack.c.h.b16 %v1275
    %v2386 = vunpack.c.l.b16 %v1276
    %v2387 = vunpack.c.h.b16 %v1276
    %v2388 = vunpack.c.l.b16 %v1277
    %v2389 = vunpack.c.h.b16 %v1277
    %v2390 = vunpack.c.l.b16 %v1278
    %v2391 = vunpack.c.h.b16 %v1278
    %v2392 = vunpack.c.l.b16 %v1279
    %v2393 = vunpack.c.h.b16 %v1279
    %v2394 = vunpack.c.l.b16 %v1280
    %v2395 = vunpack.c.h.b16 %v1280
    %v2396 = vunpack.c.l.b16 %v1281
    %v2397 = vunpack.c.h.b16 %v1281
    %v2398 = vunpack.c.l.b16 %v1282
    %v2399 = vunpack.c.h.b16 %v1282
    %v2400 = vunpack.c.l.b16 %v1283
    %v2401 = vunpack.c.h.b16 %v1283
    %v2402 = vunpack.c.l.b16 %v1284
    %v2403 = vunpack.c.h.b16 %v1284
    %v2404 = vunpack.c.l.b16 %v1285
    %v2405 = vunpack.c.h.b16 %v1285
    %v2406 = vunpack.c.l.b16 %v1286
    %v2407 = vunpack.c.h.b16 %v1286
    %v2408 = vunpack.c.l.b16 %v1287
    %v2409 = vunpack.c.h.b16 %v1287
    %v2410 = vunpack.c.l.b16 %v1288
    %v2411 = vunpack.c.h.b16 %v1288
    %v2412 = vunpack.c.l.b16 %v1289
    %v2413 = vunpack.c.h.b16 %v1289
    %v2414 = vunpack.c.l.b16 %v1290
    %v2415 = vunpack.c.h.b16 %v1290
    %v2416 = vunpack.c.l.b16 %v1291
    %v2417 = vunpack.c.h.b16 %v1291
    %v2418 = vunpack.c.l.b16 %v1292
    %v2419 = vunpack.c.h.b16 %v1292
    %v2420 = vunpack.c.l.b16 %v1293
    %v2421 = vunpack.c.h.b16 %v1293
    %v2422 = vunpack.c.l.b16 %v1294
    %v2423 = vunpack.c.h.b16 %v1294
    %v2424 = vunpack.c.l.b16 %v1295
    %v2425 = vunpack.c.h.b16 %v1295
    %v2426 = vunpack.c.l.b16 %v1296
    %v2427 = vunpack.c.h.b16 %v1296
    %v2428 = vunpack.c.l.b16 %v1297
    %v2429 = vunpack.c.h.b16 %v1297
    %v2430 = vunpack.c.l.b16 %v1298
    %v2431 = vunpack.c.h.b16 %v1298
    %v2432 = vunpack.c.l.b16 %v1299
    %v2433 = vunpack.c.h.b16 %v1299
    %v2434 = vunpack.c.l.b16 %v1300
    %v2435 = vunpack.c.h.b16 %v1300
    %v2436 = vunpack.c.l.b16 %v1301
    %v2437 = vunpack.c.h.b16 %v1301
    %v2438 = vunpack.c.l.b16 %v1302
    %v2439 = vunpack.c.h.b16 %v1302
    %v2440 = vunpack.c.l.b16 %v1303
    %v2441 = vunpack.c.h.b16 %v1303
    %v2442 = vunpack.c.l.b16 %v1304
    %v2443 = vunpack.c.h.b16 %v1304
    %v2444 = vunpack.c.l.b16 %v1305
    %v2445 = vunpack.c.h.b16 %v1305
    %v2446 = vunpack.c.l.b16 %v1306
    %v2447 = vunpack.c.h.b16 %v1306
    %v2448 = vunpack.c.l.b16 %v1307
    %v2449 = vunpack.c.h.b16 %v1307
    %v2450 = vunpack.c.l.b16 %v1308
    %v2451 = vunpack.c.h.b16 %v1308
    %v2452 = vunpack.c.l.b16 %v1309
    %v2453 = vunpack.c.h.b16 %v1309
    %v2454 = vunpack.c.l.b16 %v1310
    %v2455 = vunpack.c.h.b16 %v1310
    %v2456 = vunpack.c.l.b16 %v1311
    %v2457 = vunpack.c.h.b16 %v1311
    %v2458 = vunpack.c.l.b16 %v1312
    %v2459 = vunpack.c.h.b16 %v1312
    %v2460 = vunpack.c.l.b16 %v1313
    %v2461 = vunpack.c.h.b16 %v1313
    %v2462 = vunpack.c.l.b16 %v1314
    %v2463 = vunpack.c.h.b16 %v1314
    %v2464 = vunpack.c.l.b16 %v1315
    %v2465 = vunpack.c.h.b16 %v1315
    %v2466 = vunpack.c.l.b16 %v1316
    %v2467 = vunpack.c.h.b16 %v1316
    %v2468 = vunpack.c.l.b16 %v1317
    %v2469 = vunpack.c.h.b16 %v1317
    %v2470 = vunpack.c.l.b16 %v1318
    %v2471 = vunpack.c.h.b16 %v1318
    %v2472 = vunpack.c.l.b16 %v1319
    %v2473 = vunpack.c.h.b16 %v1319
    %v2474 = vunpack.c.l.b16 %v1320
    %v2475 = vunpack.c.h.b16 %v1320
    %v2476 = vunpack.c.l.b16 %v1321
    %v2477 = vunpack.c.h.b16 %v1321
    %v2478 = vunpack.c.l.b16 %v1322
    %v2479 = vunpack.c.h.b16 %v1322
    %v2480 = vunpack.c.l.b16 %v1323
    %v2481 = vunpack.c.h.b16 %v1323
    %v2482 = vunpack.c.l.b16 %v1324
    %v2483 = vunpack.c.h.b16 %v1324
    %v2484 = vunpack.c.l.b16 %v1325
    %v2485 = vunpack.c.h.b16 %v1325
    %v2486 = vunpack.c.l.b16 %v1326
    %v2487 = vunpack.c.h.b16 %v1326
    %v2488 = vunpack.c.l.b16 %v1327
    %v2489 = vunpack.c.h.b16 %v1327
    %v2490 = vunpack.c.l.b16 %v1328
    %v2491 = vunpack.c.h.b16 %v1328
    %v2492 = vunpack.c.l.b16 %v1329
    %v2493 = vunpack.c.h.b16 %v1329
    %v2494 = vunpack.c.l.b16 %v1330
    %v2495 = vunpack.c.h.b16 %v1330
    %v2496 = vunpack.c.l.b16 %v1331
    %v2497 = vunpack.c.h.b16 %v1331
    %v2498 = vunpack.c.l.b16 %v1332
    %v2499 = vunpack.c.h.b16 %v1332
    %v2500 = vunpack.c.l.b16 %v1333
    %v2501 = vunpack.c.h.b16 %v1333
    %v2502 = vunpack.c.l.b16 %v1334
    %v2503 = vunpack.c.h.b16 %v1334
    %v2504 = vunpack.c.l.b16 %v1335
    %v2505 = vunpack.c.h.b16 %v1335
    %v2506 = vunpack.c.l.b16 %v1336
    %v2507 = vunpack.c.h.b16 %v1336
    %v2508 = vunpack.c.l.b16 %v1337
    %v2509 = vunpack.c.h.b16 %v1337
    %v2510 = vunpack.c.l.b16 %v1338
    %v2511 = vunpack.c.h.b16 %v1338
    %v2512 = vunpack.c.l.b16 %v1339
    %v2513 = vunpack.c.h.b16 %v1339
    %v2514 = vunpack.c.l.b16 %v1340
    %v2515 = vunpack.c.h.b16 %v1340
    %v2516 = vunpack.c.l.b16 %v1341
    %v2517 = vunpack.c.h.b16 %v1341
    %v2518 = vunpack.c.l.b16 %v1342
    %v2519 = vunpack.c.h.b16 %v1342
    %v2520 = vunpack.c.l.b16 %v1343
    %v2521 = vunpack.c.h.b16 %v1343
    %v2522 = vunpack.c.l.b16 %v1344
    %v2523 = vunpack.c.h.b16 %v1344
    %v2524 = vunpack.c.l.b16 %v1345
    %v2525 = vunpack.c.h.b16 %v1345
    %v2526 = vunpack.c.l.b16 %v1346
    %v2527 = vunpack.c.h.b16 %v1346
    %v2528 = vunpack.c.l.b16 %v1347
    %v2529 = vunpack.c.h.b16 %v1347
    %v2530 = vunpack.c.l.b16 %v1348
    %v2531 = vunpack.c.h.b16 %v1348
    %v2532 = vunpack.c.l.b16 %v1349
    %v2533 = vunpack.c.h.b16 %v1349
    %v2534 = vunpack.c.l.b16 %v1350
    %v2535 = vunpack.c.h.b16 %v1350
    %v2536 = vunpack.c.l.b16 %v1351
    %v2537 = vunpack.c.h.b16 %v1351
    %v2538 = vunpack.c.l.b16 %v1352
    %v2539 = vunpack.c.h.b16 %v1352
    %v2540 = vunpack.c.l.b16 %v1353
    %v2541 = vunpack.c.h.b16 %v1353
    %v2542 = vunpack.c.l.b16 %v1354
    %v2543 = vunpack.c.h.b16 %v1354
    %v2544 = vunpack.c.l.b16 %v1355
    %v2545 = vunpack.c.h.b16 %v1355
    %v2546 = vunpack.c.l.b16 %v1356
    %v2547 = vunpack.c.h.b16 %v1356
    %v2548 = vunpack.c.l.b16 %v1357
    %v2549 = vunpack.c.h.b16 %v1357
    %v2550 = vunpack.c.l.b16 %v1358
    %v2551 = vunpack.c.h.b16 %v1358
    %v2552 = vunpack.c.l.b16 %v1359
    %v2553 = vunpack.c.h.b16 %v1359
    %v2554 = vunpack.c.l.b16 %v1360
    %v2555 = vunpack.c.h.b16 %v1360
    %v2556 = vunpack.c.l.b16 %v1361
    %v2557 = vunpack.c.h.b16 %v1361
    %v2558 = vunpack.c.l.b16 %v1362
    %v2559 = vunpack.c.h.b16 %v1362
    %v2560 = vunpack.c.l.b16 %v1363
    %v2561 = vunpack.c.h.b16 %v1363
    %v2562 = vunpack.c.l.b16 %v1364
    %v2563 = vunpack.c.h.b16 %v1364
    %v2564 = vunpack.c.l.b16 %v1365
    %v2565 = vunpack.c.h.b16 %v1365
    %v2566 = vunpack.c.l.b16 %v1366
    %v2567 = vunpack.c.h.b16 %v1366
    %v2568 = vunpack.c.l.b16 %v1367
    %v2569 = vunpack.c.h.b16 %v1367
    %v2570 = vunpack.c.l.b16 %v1368
    %v2571 = vunpack.c.h.b16 %v1368
    %v2572 = vunpack.c.l.b16 %v1369
    %v2573 = vunpack.c.h.b16 %v1369
    %v2574 = vunpack.c.l.b16 %v1370
    %v2575 = vunpack.c.h.b16 %v1370
    %v2576 = vunpack.c.l.b16 %v1371
    %v2577 = vunpack.c.h.b16 %v1371
    %v2578 = vunpack.c.l.b16 %v1372
    %v2579 = vunpack.c.h.b16 %v1372
    %v2580 = vunpack.c.l.b16 %v1373
    %v2581 = vunpack.c.h.b16 %v1373
    %v2582 = vunpack.c.l.b16 %v1374
    %v2583 = vunpack.c.h.b16 %v1374
    %v2584 = vunpack.c.l.b16 %v1375
    %v2585 = vunpack.c.h.b16 %v1375
    %v2586 = vunpack.c.l.b16 %v1376
    %v2587 = vunpack.c.h.b16 %v1376
    %v2588 = vunpack.c.l.b16 %v1377
    %v2589 = vunpack.c.h.b16 %v1377
    %v2590 = vunpack.c.l.b16 %v1378
    %v2591 = vunpack.c.h.b16 %v1378
    %v2592 = vunpack.c.l.b16 %v1379
    %v2593 = vunpack.c.h.b16 %v1379
    %v2594 = vunpack.c.l.b16 %v1380
    %v2595 = vunpack.c.h.b16 %v1380
    %v2596 = vunpack.c.l.b16 %v1381
    %v2597 = vunpack.c.h.b16 %v1381
    %v2598 = vunpack.c.l.b16 %v1382
    %v2599 = vunpack.c.h.b16 %v1382
    %v2600 = vunpack.c.l.b16 %v1383
    %v2601 = vunpack.c.h.b16 %v1383
    %v2602 = vunpack.c.l.b16 %v1384
    %v2603 = vunpack.c.h.b16 %v1384
    %v2604 = vunpack.c.l.b16 %v1385
    %v2605 = vunpack.c.h.b16 %v1385
    %v2606 = vunpack.c.l.b16 %v1386
    %v2607 = vunpack.c.h.b16 %v1386
    %v2608 = vunpack.c.l.b16 %v1387
    %v2609 = vunpack.c.h.b16 %v1387
    %v2610 = vunpack.c.l.b16 %v1388
    %v2611 = vunpack.c.h.b16 %v1388
    %v2612 = vunpack.c.l.b16 %v1389
    %v2613 = vunpack.c.h.b16 %v1389
    %v2614 = vunpack.c.l.b16 %v1390
    %v2615 = vunpack.c.h.b16 %v1390
    %v2616 = vunpack.c.l.b16 %v1391
    %v2617 = vunpack.c.h.b16 %v1391
    %v2618 = vunpack.c.l.b16 %v1392
    %v2619 = vunpack.c.h.b16 %v1392
    %v2620 = vunpack.c.l.b16 %v1393
    %v2621 = vunpack.c.h.b16 %v1393
    %v2622 = vunpack.c.l.b16 %v1394
    %v2623 = vunpack.c.h.b16 %v1394
    %v2624 = vunpack.c.l.b16 %v1395
    %v2625 = vunpack.c.h.b16 %v1395
    %v2626 = vunpack.c.l.b16 %v1396
    %v2627 = vunpack.c.h.b16 %v1396
    %v2628 = vunpack.c.l.b16 %v1397
    %v2629 = vunpack.c.h.b16 %v1397
    %v2630 = vunpack.c.l.b16 %v1398
    %v2631 = vunpack.c.h.b16 %v1398
    %v2632 = vunpack.c.l.b16 %v1399
    %v2633 = vunpack.c.h.b16 %v1399
    %v2634 = vunpack.c.l.b16 %v1400
    %v2635 = vunpack.c.h.b16 %v1400
    %v2636 = vunpack.c.l.b16 %v1401
    %v2637 = vunpack.c.h.b16 %v1401
    %v2638 = vunpack.c.l.b16 %v1402
    %v2639 = vunpack.c.h.b16 %v1402
    %v2640 = vunpack.c.l.b16 %v1403
    %v2641 = vunpack.c.h.b16 %v1403
    %v2642 = vunpack.c.l.b16 %v1404
    %v2643 = vunpack.c.h.b16 %v1404
    %v2644 = vunpack.c.l.b16 %v1405
    %v2645 = vunpack.c.h.b16 %v1405
    %v2646 = vunpack.c.l.b16 %v1406
    %v2647 = vunpack.c.h.b16 %v1406
    %v2648 = vunpack.c.l.b16 %v1407
    %v2649 = vunpack.c.h.b16 %v1407
    %v2650 = vunpack.c.l.b16 %v1408
    %v2651 = vunpack.c.h.b16 %v1408
    %v2652 = vunpack.c.l.b16 %v1409
    %v2653 = vunpack.c.h.b16 %v1409
    %v2654 = vunpack.c.l.b16 %v1410
    %v2655 = vunpack.c.h.b16 %v1410
    %v2656 = vunpack.c.l.b16 %v1411
    %v2657 = vunpack.c.h.b16 %v1411
    %v2658 = vunpack.c.l.b16 %v1412
    %v2659 = vunpack.c.h.b16 %v1412
    %v2660 = vunpack.c.l.b16 %v1413
    %v2661 = vunpack.c.h.b16 %v1413
    %v2662 = vunpack.c.l.b16 %v1414
    %v2663 = vunpack.c.h.b16 %v1414
    %v2664 = vunpack.c.l.b16 %v1415
    %v2665 = vunpack.c.h.b16 %v1415
    %v2666 = vunpack.c.l.b16 %v1416
    %v2667 = vunpack.c.h.b16 %v1416
    %v2668 = vunpack.c.l.b16 %v1417
    %v2669 = vunpack.c.h.b16 %v1417
    %v2670 = vunpack.c.l.b16 %v1418
    %v2671 = vunpack.c.h.b16 %v1418
    %v2672 = vunpack.c.l.b16 %v1419
    %v2673 = vunpack.c.h.b16 %v1419
    %v2674 = vunpack.c.l.b16 %v1420
    %v2675 = vunpack.c.h.b16 %v1420
    %v2676 = vunpack.c.l.b16 %v1421
    %v2677 = vunpack.c.h.b16 %v1421
    %v2678 = vunpack.c.l.b16 %v1422
    %v2679 = vunpack.c.h.b16 %v1422
    %v2680 = vunpack.c.l.b16 %v1423
    %v2681 = vunpack.c.h.b16 %v1423
    %v2682 = vunpack.c.l.b16 %v1424
    %v2683 = vunpack.c.h.b16 %v1424
    %v2684 = vunpack.c.l.b16 %v1425
    %v2685 = vunpack.c.h.b16 %v1425
    %v2686 = vunpack.c.l.b16 %v1426
    %v2687 = vunpack.c.h.b16 %v1426
    %v2688 = vunpack.c.l.b16 %v1427
    %v2689 = vunpack.c.h.b16 %v1427
    %v2690 = vunpack.c.l.b16 %v1428
    %v2691 = vunpack.c.h.b16 %v1428
    %v2692 = vunpack.c.l.b16 %v1429
    %v2693 = vunpack.c.h.b16 %v1429
    %v2694 = vunpack.c.l.b16 %v1430
    %v2695 = vunpack.c.h.b16 %v1430
    %v2696 = vunpack.c.l.b16 %v1431
    %v2697 = vunpack.c.h.b16 %v1431
    %v2698 = vunpack.c.l.b16 %v1432
    %v2699 = vunpack.c.h.b16 %v1432
    %v2700 = vunpack.c.l.b16 %v1433
    %v2701 = vunpack.c.h.b16 %v1433
    %v2702 = vunpack.c.l.b16 %v1434
    %v2703 = vunpack.c.h.b16 %v1434
    %v2704 = vunpack.c.l.b16 %v1435
    %v2705 = vunpack.c.h.b16 %v1435
    %v2706 = vunpack.c.l.b16 %v1436
    %v2707 = vunpack.c.h.b16 %v1436
    %v2708 = vunpack.c.l.b16 %v1437
    %v2709 = vunpack.c.h.b16 %v1437
    %v2710 = vunpack.c.l.b16 %v1438
    %v2711 = vunpack.c.h.b16 %v1438
    %v2712 = vunpack.c.l.b16 %v1439
    %v2713 = vunpack.c.h.b16 %v1439
    %v2714 = vunpack.c.l.b16 %v1440
    %v2715 = vunpack.c.h.b16 %v1440
    %v2716 = vunpack.c.l.b16 %v1441
    %v2717 = vunpack.c.h.b16 %v1441
    %v2718 = vunpack.c.l.b16 %v1442
    %v2719 = vunpack.c.h.b16 %v1442
    %v2720 = vunpack.c.l.b16 %v1443
    %v2721 = vunpack.c.h.b16 %v1443
    %v2722 = vunpack.c.l.b16 %v1444
    %v2723 = vunpack.c.h.b16 %v1444
    %v2724 = vunpack.c.l.b16 %v1445
    %v2725 = vunpack.c.h.b16 %v1445
    %v2726 = vunpack.c.l.b16 %v1446
    %v2727 = vunpack.c.h.b16 %v1446
    %v2728 = vunpack.c.l.b16 %v1447
    %v2729 = vunpack.c.h.b16 %v1447
    %v2730 = vunpack.c.l.b16 %v1448
    %v2731 = vunpack.c.h.b16 %v1448
    %v2732 = vunpack.c.l.b16 %v1449
    %v2733 = vunpack.c.h.b16 %v1449
    %v2734 = vunpack.c.l.b16 %v1450
    %v2735 = vunpack.c.h.b16 %v1450
    %v2736 = vunpack.c.l.b16 %v1451
    %v2737 = vunpack.c.h.b16 %v1451
    %v2738 = vunpack.c.l.b16 %v1452
    %v2739 = vunpack.c.h.b16 %v1452
    %v2740 = vunpack.c.l.b16 %v1453
    %v2741 = vunpack.c.h.b16 %v1453
    %v2742 = vunpack.c.l.b16 %v1454
    %v2743 = vunpack.c.h.b16 %v1454
    %v2744 = vunpack.c.l.b16 %v1455
    %v2745 = vunpack.c.h.b16 %v1455
    %v2746 = vunpack.c.l.b16 %v1456
    %v2747 = vunpack.c.h.b16 %v1456
    %v2748 = vunpack.c.l.b16 %v1457
    %v2749 = vunpack.c.h.b16 %v1457
    %v2750 = vunpack.c.l.b16 %v1458
    %v2751 = vunpack.c.h.b16 %v1458
    %v2752 = vunpack.c.l.b16 %v1459
    %v2753 = vunpack.c.h.b16 %v1459
    %v2754 = vunpack.c.l.b16 %v1460
    %v2755 = vunpack.c.h.b16 %v1460
    %v2756 = vunpack.c.l.b16 %v1461
    %v2757 = vunpack.c.h.b16 %v1461
    %v2758 = vunpack.c.l.b16 %v1462
    %v2759 = vunpack.c.h.b16 %v1462
    %v2760 = vunpack.c.l.b16 %v1463
    %v2761 = vunpack.c.h.b16 %v1463
    %v2762 = vunpack.c.l.b16 %v1464
    %v2763 = vunpack.c.h.b16 %v1464
    %v2764 = vunpack.c.l.b16 %v1465
    %v2765 = vunpack.c.h.b16 %v1465
    %v2766 = vunpack.c.l.b16 %v1466
    %v2767 = vunpack.c.h.b16 %v1466
    %v2768 = vunpack.c.l.b16 %v1467
    %v2769 = vunpack.c.h.b16 %v1467
    %v2770 = vunpack.c.l.b16 %v1468
    %v2771 = vunpack.c.h.b16 %v1468
    %v2772 = vunpack.c.l.b16 %v1469
    %v2773 = vunpack.c.h.b16 %v1469
    %v2774 = vunpack.c.l.b16 %v1470
    %v2775 = vunpack.c.h.b16 %v1470
    %v2776 = vunpack.c.l.b16 %v1471
    %v2777 = vunpack.c.h.b16 %v1471
    %v2778 = vunpack.c.l.b16 %v1472
    %v2779 = vunpack.c.h.b16 %v1472
    %v2780 = vunpack.c.l.b16 %v1473
    %v2781 = vunpack.c.h.b16 %v1473
    %v2782 = vunpack.c.l.b16 %v1474
    %v2783 = vunpack.c.h.b16 %v1474
    %v2784 = vunpack.c.l.b16 %v1475
    %v2785 = vunpack.c.h.b16 %v1475
    %v2786 = vunpack.c.l.b16 %v1476
    %v2787 = vunpack.c.h.b16 %v1476
    %v2788 = vunpack.c.l.b16 %v1477
    %v2789 = vunpack.c.h.b16 %v1477
    %v2790 = vunpack.c.l.b16 %v1478
    %v2791 = vunpack.c.h.b16 %v1478
    %v2792 = vunpack.c.l.b16 %v1479
    %v2793 = vunpack.c.h.b16 %v1479
    %v2794 = vunpack.c.l.b16 %v1480
    %v2795 = vunpack.c.h.b16 %v1480
    %v2796 = vunpack.c.l.b16 %v1481
    %v2797 = vunpack.c.h.b16 %v1481
    %v2798 = vunpack.c.l.b16 %v1482
    %v2799 = vunpack.c.h.b16 %v1482
    %v2800 = vunpack.c.l.b16 %v1483
    %v2801 = vunpack.c.h.b16 %v1483
    %v2802 = vunpack.c.l.b16 %v1484
    %v2803 = vunpack.c.h.b16 %v1484
    %v2804 = vunpack.c.l.b16 %v1485
    %v2805 = vunpack.c.h.b16 %v1485
    %v2806 = vunpack.c.l.b16 %v1486
    %v2807 = vunpack.c.h.b16 %v1486
    %v2808 = vunpack.c.l.b16 %v1487
    %v2809 = vunpack.c.h.b16 %v1487
    %v2810 = vunpack.c.l.b16 %v1488
    %v2811 = vunpack.c.h.b16 %v1488
    %v2812 = vunpack.c.l.b16 %v1489
    %v2813 = vunpack.c.h.b16 %v1489
    %v2814 = vunpack.c.l.b16 %v1490
    %v2815 = vunpack.c.h.b16 %v1490
    %v2816 = vunpack.c.l.b16 %v1491
    %v2817 = vunpack.c.h.b16 %v1491
    %v2818 = vunpack.c.l.b16 %v1492
    %v2819 = vunpack.c.h.b16 %v1492
    %v2820 = vunpack.c.l.b16 %v1493
    %v2821 = vunpack.c.h.b16 %v1493
    %v2822 = vunpack.c.l.b16 %v1494
    %v2823 = vunpack.c.h.b16 %v1494
    %v2824 = vunpack.c.l.b16 %v1495
    %v2825 = vunpack.c.h.b16 %v1495
    %v2826 = vunpack.c.l.b16 %v1496
    %v2827 = vunpack.c.h.b16 %v1496
    %v2828 = vunpack.c.l.b16 %v1497
    %v2829 = vunpack.c.h.b16 %v1497
    %v2830 = vunpack.c.l.b16 %v1498
    %v2831 = vunpack.c.h.b16 %v1498
    %v2832 = vunpack.c.l.b16 %v1499
    %v2833 = vunpack.c.h.b16 %v1499
    %v2834 = vunpack.c.l.b16 %v1500
    %v2835 = vunpack.c.h.b16 %v1500
    %v2836 = vunpack.c.l.b16 %v1501
    %v2837 = vunpack.c.h.b16 %v1501
    %v2838 = vunpack.c.l.b16 %v1502
    %v2839 = vunpack.c.h.b16 %v1502
    %v2840 = vunpack.c.l.b16 %v1503
    %v2841 = vunpack.c.h.b16 %v1503
    %v2842 = vunpack.c.l.b16 %v1504
    %v2843 = vunpack.c.h.b16 %v1504
    %v2844 = vunpack.c.l.b16 %v1505
    %v2845 = vunpack.c.h.b16 %v1505
    %v2846 = vunpack.c.l.b16 %v1506
    %v2847 = vunpack.c.h.b16 %v1506
    %v2848 = vunpack.c.l.b16 %v1507
    %v2849 = vunpack.c.h.b16 %v1507
    %v2850 = vunpack.c.l.b16 %v1508
    %v2851 = vunpack.c.h.b16 %v1508
    %v2852 = vunpack.c.l.b16 %v1509
    %v2853 = vunpack.c.h.b16 %v1509
    %v2854 = vunpack.c.l.b16 %v1510
    %v2855 = vunpack.c.h.b16 %v1510
    %v2856 = vunpack.c.l.b16 %v1511
    %v2857 = vunpack.c.h.b16 %v1511
    %v2858 = vunpack.c.l.b16 %v1512
    %v2859 = vunpack.c.h.b16 %v1512
    %v2860 = vunpack.c.l.b16 %v1513
    %v2861 = vunpack.c.h.b16 %v1513
    %v2862 = vunpack.c.l.b16 %v1514
    %v2863 = vunpack.c.h.b16 %v1514
    %v2864 = vunpack.c.l.b16 %v1515
    %v2865 = vunpack.c.h.b16 %v1515
    %v2866 = vunpack.c.l.b16 %v1516
    %v2867 = vunpack.c.h.b16 %v1516
    %v2868 = vunpack.c.l.b16 %v1517
    %v2869 = vunpack.c.h.b16 %v1517
    %v2870 = vunpack.c.l.b16 %v1518
    %v2871 = vunpack.c.h.b16 %v1518
    %v2872 = vunpack.c.l.b16 %v1519
    %v2873 = vunpack.c.h.b16 %v1519
    %v2874 = vunpack.c.l.b16 %v1520
    %v2875 = vunpack.c.h.b16 %v1520
    %v2876 = vunpack.c.l.b16 %v1521
    %v2877 = vunpack.c.h.b16 %v1521
    %v2878 = vunpack.c.l.b16 %v1522
    %v2879 = vunpack.c.h.b16 %v1522
    %v2880 = vunpack.c.l.b16 %v1523
    %v2881 = vunpack.c.h.b16 %v1523
    %v2882 = vunpack.c.l.b16 %v1524
    %v2883 = vunpack.c.h.b16 %v1524
    %v2884 = vunpack.c.l.b16 %v1525
    %v2885 = vunpack.c.h.b16 %v1525
    %v2886 = vunpack.c.l.b16 %v1526
    %v2887 = vunpack.c.h.b16 %v1526
    %v2888 = vunpack.c.l.b16 %v1527
    %v2889 = vunpack.c.h.b16 %v1527
    %v2890 = vunpack.c.l.b16 %v1528
    %v2891 = vunpack.c.h.b16 %v1528
    %v2892 = vunpack.c.l.b16 %v1529
    %v2893 = vunpack.c.h.b16 %v1529
    %v2894 = vunpack.c.l.b16 %v1530
    %v2895 = vunpack.c.h.b16 %v1530
    %v2896 = vunpack.c.l.b16 %v1531
    %v2897 = vunpack.c.h.b16 %v1531
    %v2898 = vunpack.c.l.b16 %v1532
    %v2899 = vunpack.c.h.b16 %v1532
    %v2900 = vunpack.c.l.b16 %v1533
    %v2901 = vunpack.c.h.b16 %v1533
    %v2902 = vunpack.c.l.b16 %v1534
    %v2903 = vunpack.c.h.b16 %v1534
    %v2904 = vunpack.c.l.b16 %v1535
    %v2905 = vunpack.c.h.b16 %v1535
    %v2906 = vunpack.c.l.b16 %v1536
    %v2907 = vunpack.c.h.b16 %v1536
    %v2908 = vunpack.c.l.b16 %v1537
    %v2909 = vunpack.c.h.b16 %v1537
    %v2910 = vunpack.c.l.b16 %v1538
    %v2911 = vunpack.c.h.b16 %v1538
    %v2912 = vunpack.c.l.b16 %v1539
    %v2913 = vunpack.c.h.b16 %v1539
    %v2914 = vunpack.c.l.b16 %v1540
    %v2915 = vunpack.c.h.b16 %v1540
    %v2916 = vunpack.c.l.b16 %v1541
    %v2917 = vunpack.c.h.b16 %v1541
    %v2918 = vunpack.c.l.b16 %v1542
    %v2919 = vunpack.c.h.b16 %v1542
    %v2920 = vunpack.c.l.b16 %v1543
    %v2921 = vunpack.c.h.b16 %v1543
    %v2922 = vunpack.c.l.b16 %v1544
    %v2923 = vunpack.c.h.b16 %v1544
    %v2924 = vunpack.c.l.b16 %v1545
    %v2925 = vunpack.c.h.b16 %v1545
    %v2926 = vunpack.c.l.b16 %v1546
    %v2927 = vunpack.c.h.b16 %v1546
    %v2928 = vunpack.c.l.b16 %v1547
    %v2929 = vunpack.c.h.b16 %v1547
    %v2930 = vunpack.c.l.b16 %v1548
    %v2931 = vunpack.c.h.b16 %v1548
    %v2932 = vunpack.c.l.b16 %v1549
    %v2933 = vunpack.c.h.b16 %v1549
    %v2934 = vunpack.c.l.b16 %v1550
    %v2935 = vunpack.c.h.b16 %v1550
    %v2936 = vunpack.c.l.b16 %v1551
    %v2937 = vunpack.c.h.b16 %v1551
    %v2938 = vunpack.c.l.b16 %v1552
    %v2939 = vunpack.c.h.b16 %v1552
    %v2940 = vunpack.c.l.b16 %v1553
    %v2941 = vunpack.c.h.b16 %v1553
    %v2942 = vunpack.c.l.b16 %v1554
    %v2943 = vunpack.c.h.b16 %v1554
    %v2944 = vunpack.c.l.b16 %v1555
    %v2945 = vunpack.c.h.b16 %v1555
    %v2946 = vunpack.c.l.b16 %v1556
    %v2947 = vunpack.c.h.b16 %v1556
    %v2948 = vunpack.c.l.b16 %v1557
    %v2949 = vunpack.c.h.b16 %v1557
    %v2950 = vunpack.c.l.b16 %v1558
    %v2951 = vunpack.c.h.b16 %v1558
    %v2952 = vunpack.c.l.b16 %v1559
    %v2953 = vunpack.c.h.b16 %v1559
    %v2954 = vunpack.c.l.b16 %v1560
    %v2955 = vunpack.c.h.b16 %v1560
    %v2956 = vunpack.c.l.b16 %v1561
    %v2957 = vunpack.c.h.b16 %v1561
    %v2958 = vunpack.c.l.b16 %v1562
    %v2959 = vunpack.c.h.b16 %v1562
    %v2960 = vunpack.c.l.b16 %v1563
    %v2961 = vunpack.c.h.b16 %v1563
    %v2962 = vunpack.c.l.b16 %v1564
    %v2963 = vunpack.c.h.b16 %v1564
    %v2964 = vunpack.c.l.b16 %v1565
    %v2965 = vunpack.c.h.b16 %v1565
    %v2966 = vunpack.c.l.b16 %v1566
    %v2967 = vunpack.c.h.b16 %v1566
    %v2968 = vunpack.c.l.b16 %v1567
    %v2969 = vunpack.c.h.b16 %v1567
    %v2970 = vunpack.c.l.b16 %v1568
    %v2971 = vunpack.c.h.b16 %v1568
    %v2972 = vunpack.c.l.b16 %v1569
    %v2973 = vunpack.c.h.b16 %v1569
    %v2974 = vunpack.c.l.b16 %v1570
    %v2975 = vunpack.c.h.b16 %v1570
    %v2976 = vunpack.c.l.b16 %v1571
    %v2977 = vunpack.c.h.b16 %v1571
    %v2978 = vunpack.c.l.b16 %v1572
    %v2979 = vunpack.c.h.b16 %v1572
    %v2980 = vunpack.c.l.b16 %v1573
    %v2981 = vunpack.c.h.b16 %v1573
    %v2982 = vunpack.c.l.b16 %v1574
    %v2983 = vunpack.c.h.b16 %v1574
    %v2984 = vunpack.c.l.b16 %v1575
    %v2985 = vunpack.c.h.b16 %v1575
    %v2986 = vunpack.c.l.b16 %v1576
    %v2987 = vunpack.c.h.b16 %v1576
    %v2988 = vunpack.c.l.b16 %v1577
    %v2989 = vunpack.c.h.b16 %v1577
    %v2990 = vunpack.c.l.b16 %v1578
    %v2991 = vunpack.c.h.b16 %v1578
    %v2992 = vunpack.c.l.b16 %v1579
    %v2993 = vunpack.c.h.b16 %v1579
    %v2994 = vunpack.c.l.b16 %v1580
    %v2995 = vunpack.c.h.b16 %v1580
    %v2996 = vunpack.c.l.b16 %v1581
    %v2997 = vunpack.c.h.b16 %v1581
    %v2998 = vunpack.c.l.b16 %v1582
    %v2999 = vunpack.c.h.b16 %v1582
    %v3000 = vunpack.c.l.b16 %v1583
    %v3001 = vunpack.c.h.b16 %v1583
    %v3002 = vunpack.c.l.b16 %v1584
    %v3003 = vunpack.c.h.b16 %v1584
    %v3004 = vunpack.c.l.b16 %v1585
    %v3005 = vunpack.c.h.b16 %v1585
    %v3006 = vunpack.c.l.b16 %v1586
    %v3007 = vunpack.c.h.b16 %v1586
    %v3008 = vunpack.c.l.b16 %v1587
    %v3009 = vunpack.c.h.b16 %v1587
    %v3010 = vunpack.c.l.b16 %v1588
    %v3011 = vunpack.c.h.b16 %v1588
    %v3012 = vunpack.c.l.b16 %v1589
    %v3013 = vunpack.c.h.b16 %v1589
    %v3014 = vunpack.c.l.b16 %v1590
    %v3015 = vunpack.c.h.b16 %v1590
    %v3016 = vunpack.c.l.b16 %v1591
    %v3017 = vunpack.c.h.b16 %v1591
    %v3018 = vunpack.c.l.b16 %v1592
    %v3019 = vunpack.c.h.b16 %v1592
    %v3020 = vunpack.c.l.b16 %v1593
    %v3021 = vunpack.c.h.b16 %v1593
    %v3022 = vunpack.c.l.b16 %v1594
    %v3023 = vunpack.c.h.b16 %v1594
    %v3024 = vunpack.c.l.b16 %v1595
    %v3025 = vunpack.c.h.b16 %v1595
    %v3026 = vunpack.c.l.b16 %v1596
    %v3027 = vunpack.c.h.b16 %v1596
    %v3028 = vunpack.c.l.b16 %v1597
    %v3029 = vunpack.c.h.b16 %v1597
    %v3030 = vunpack.c.l.b16 %v1598
    %v3031 = vunpack.c.h.b16 %v1598
    %v3032 = vunpack.c.l.b16 %v1599
    %v3033 = vunpack.c.h.b16 %v1599
    %v3034 = vunpack.c.l.b16 %v1600
    %v3035 = vunpack.c.h.b16 %v1600
    %v3036 = vunpack.c.l.b16 %v1601
    %v3037 = vunpack.c.h.b16 %v1601
    %v3038 = vunpack.c.l.b16 %v1602
    %v3039 = vunpack.c.h.b16 %v1602
    %v3040 = vunpack.c.l.b16 %v1603
    %v3041 = vunpack.c.h.b16 %v1603
    %v3042 = vunpack.c.l.b16 %v1604
    %v3043 = vunpack.c.h.b16 %v1604
    %v3044 = vunpack.c.l.b16 %v1605
    %v3045 = vunpack.c.h.b16 %v1605
    %v3046 = vunpack.c.l.b16 %v1606
    %v3047 = vunpack.c.h.b16 %v1606
    %v3048 = vunpack.c.l.b16 %v1607
    %v3049 = vunpack.c.h.b16 %v1607
    %v3050 = vunpack.c.l.b16 %v1608
    %v3051 = vunpack.c.h.b16 %v1608
    %v3052 = vunpack.c.l.b16 %v1609
    %v3053 = vunpack.c.h.b16 %v1609
    %v3054 = vunpack.c.l.b16 %v1610
    %v3055 = vunpack.c.h.b16 %v1610
    %v3056 = vunpack.c.l.b16 %v1611
    %v3057 = vunpack.c.h.b16 %v1611
    %v3058 = vunpack.c.l.b16 %v1612
    %v3059 = vunpack.c.h.b16 %v1612
    %v3060 = vunpack.c.l.b16 %v1613
    %v3061 = vunpack.c.h.b16 %v1613
    %v3062 = vunpack.c.l.b16 %v1614
    %v3063 = vunpack.c.h.b16 %v1614
    %v3064 = vunpack.c.l.b16 %v1615
    %v3065 = vunpack.c.h.b16 %v1615
    %v3066 = vunpack.c.l.b16 %v1616
    %v3067 = vunpack.c.h.b16 %v1616
    %v3068 = vunpack.c.l.b16 %v1617
    %v3069 = vunpack.c.h.b16 %v1617
    %v3070 = vunpack.c.l.b16 %v1618
    %v3071 = vunpack.c.h.b16 %v1618
    %v3072 = vunpack.c.l.b16 %v1619
    %v3073 = vunpack.c.h.b16 %v1619
    %v3074 = vunpack.c.l.b16 %v1620
    %v3075 = vunpack.c.h.b16 %v1620
    %v3076 = vunpack.c.l.b16 %v1621
    %v3077 = vunpack.c.h.b16 %v1621
    %v3078 = vunpack.c.l.b16 %v1622
    %v3079 = vunpack.c.h.b16 %v1622
    %v3080 = vunpack.c.l.b16 %v1623
    %v3081 = vunpack.c.h.b16 %v1623
    %v3082 = vunpack.c.l.b16 %v1624
    %v3083 = vunpack.c.h.b16 %v1624
    %v3084 = vunpack.c.l.b16 %v1625
    %v3085 = vunpack.c.h.b16 %v1625
    %v3086 = vunpack.c.l.b16 %v1626
    %v3087 = vunpack.c.h.b16 %v1626
    %v3088 = vunpack.c.l.b16 %v1627
    %v3089 = vunpack.c.h.b16 %v1627
    %v3090 = vunpack.c.l.b16 %v1628
    %v3091 = vunpack.c.h.b16 %v1628
    %v3092 = vunpack.c.l.b16 %v1629
    %v3093 = vunpack.c.h.b16 %v1629
    %v3094 = vunpack.c.l.b16 %v1630
    %v3095 = vunpack.c.h.b16 %v1630
    %v3096 = vunpack.c.l.b16 %v1631
    %v3097 = vunpack.c.h.b16 %v1631
    %v3098 = vunpack.c.l.b16 %v1632
    %v3099 = vunpack.c.h.b16 %v1632
    %v3100 = vunpack.c.l.b16 %v1633
    %v3101 = vunpack.c.h.b16 %v1633
    %v3102 = vunpack.c.l.b16 %v1634
    %v3103 = vunpack.c.h.b16 %v1634
    %v3104 = vunpack.c.l.b16 %v1635
    %v3105 = vunpack.c.h.b16 %v1635
    %v3106 = vunpack.c.l.b16 %v1636
    %v3107 = vunpack.c.h.b16 %v1636
    %v3108 = vunpack.c.l.b16 %v1637
    %v3109 = vunpack.c.h.b16 %v1637
    %v3110 = vunpack.c.l.b16 %v1638
    %v3111 = vunpack.c.h.b16 %v1638
    %v3112 = vunpack.c.l.b16 %v1639
    %v3113 = vunpack.c.h.b16 %v1639
    %v3114 = vunpack.c.l.b16 %v1640
    %v3115 = vunpack.c.h.b16 %v1640
    %v3116 = vunpack.c.l.b16 %v1641
    %v3117 = vunpack.c.h.b16 %v1641
    %v3118 = vunpack.c.l.b16 %v1642
    %v3119 = vunpack.c.h.b16 %v1642
    %v3120 = vunpack.c.l.b16 %v1643
    %v3121 = vunpack.c.h.b16 %v1643
    %v3122 = vunpack.c.l.b16 %v1644
    %v3123 = vunpack.c.h.b16 %v1644
    %v3124 = vunpack.c.l.b16 %v1645
    %v3125 = vunpack.c.h.b16 %v1645
    %v3126 = vunpack.c.l.b16 %v1646
    %v3127 = vunpack.c.h.b16 %v1646
    %v3128 = vunpack.c.l.b16 %v1647
    %v3129 = vunpack.c.h.b16 %v1647
    %v3130 = vunpack.c.l.b16 %v1648
    %v3131 = vunpack.c.h.b16 %v1648
    %v3132 = vunpack.c.l.b16 %v1649
    %v3133 = vunpack.c.h.b16 %v1649
    %v3134 = vunpack.c.l.b16 %v1650
    %v3135 = vunpack.c.h.b16 %v1650
    %v3136 = vunpack.c.l.b16 %v1651
    %v3137 = vunpack.c.h.b16 %v1651
    %v3138 = vunpack.c.l.b16 %v1652
    %v3139 = vunpack.c.h.b16 %v1652
    %v3140 = vunpack.c.l.b16 %v1653
    %v3141 = vunpack.c.h.b16 %v1653
    %v3142 = vunpack.c.l.b16 %v1654
    %v3143 = vunpack.c.h.b16 %v1654
    %v3144 = vunpack.c.l.b16 %v1655
    %v3145 = vunpack.c.h.b16 %v1655
    %v3146 = vunpack.c.l.b16 %v1656
    %v3147 = vunpack.c.h.b16 %v1656
    %v3148 = vunpack.c.l.b16 %v1657
    %v3149 = vunpack.c.h.b16 %v1657
    %v3150 = vunpack.c.l.b16 %v1658
    %v3151 = vunpack.c.h.b16 %v1658
    %v3152 = vunpack.c.l.b16 %v1659
    %v3153 = vunpack.c.h.b16 %v1659
    %v3154 = vunpack.c.l.b16 %v1660
    %v3155 = vunpack.c.h.b16 %v1660
    %v3156 = vunpack.c.l.b16 %v1661
    %v3157 = vunpack.c.h.b16 %v1661
    %v3158 = vunpack.c.l.b16 %v1662
    %v3159 = vunpack.c.h.b16 %v1662
    %v3160 = vunpack.c.l.b16 %v1663
    %v3161 = vunpack.c.h.b16 %v1663
    %v3162 = vunpack.c.l.b16 %v1664
    %v3163 = vunpack.c.h.b16 %v1664
    %v3164 = vunpack.c.l.b16 %v1665
    %v3165 = vunpack.c.h.b16 %v1665
    %v3166 = vunpack.c.l.b16 %v1666
    %v3167 = vunpack.c.h.b16 %v1666
    %v3168 = vunpack.c.l.b16 %v1667
    %v3169 = vunpack.c.h.b16 %v1667
    %v3170 = vunpack.c.l.b16 %v1668
    %v3171 = vunpack.c.h.b16 %v1668
    %v3172 = vunpack.c.l.b16 %v1669
    %v3173 = vunpack.c.h.b16 %v1669
    %v3174 = vunpack.c.l.b16 %v1670
    %v3175 = vunpack.c.h.b16 %v1670
    %v3176 = vunpack.c.l.b16 %v1671
    %v3177 = vunpack.c.h.b16 %v1671
    %v3178 = vunpack.c.l.b16 %v1672
    %v3179 = vunpack.c.h.b16 %v1672
    %v3180 = vunpack.c.l.b16 %v1673
    %v3181 = vunpack.c.h.b16 %v1673
    %v3182 = vunpack.c.l.b16 %v1674
    %v3183 = vunpack.c.h.b16 %v1674
    %v3184 = vunpack.c.l.b16 %v1675
    %v3185 = vunpack.c.h.b16 %v1675
    %v3186 = vunpack.c.l.b16 %v1676
    %v3187 = vunpack.c.h.b16 %v1676
    %v3188 = vunpack.c.l.b16 %v1677
    %v3189 = vunpack.c.h.b16 %v1677
    %v3190 = vunpack.c.l.b16 %v1678
    %v3191 = vunpack.c.h.b16 %v1678
    %v3192 = vunpack.c.l.b16 %v1679
    %v3193 = vunpack.c.h.b16 %v1679
    %v3194 = vunpack.c.l.b16 %v1680
    %v3195 = vunpack.c.h.b16 %v1680
    %v3196 = vunpack.c.l.b16 %v1681
    %v3197 = vunpack.c.h.b16 %v1681
    %v3198 = vunpack.c.l.b16 %v1682
    %v3199 = vunpack.c.h.b16 %v1682
    %v3200 = vunpack.c.l.b16 %v1683
    %v3201 = vunpack.c.h.b16 %v1683
    %v3202 = vunpack.c.l.b16 %v1684
    %v3203 = vunpack.c.h.b16 %v1684
    %v3204 = vunpack.c.l.b16 %v1685
    %v3205 = vunpack.c.h.b16 %v1685
    %v3206 = vunpack.c.l.b16 %v1686
    %v3207 = vunpack.c.h.b16 %v1686
    %v3208 = vunpack.c.l.b16 %v1687
    %v3209 = vunpack.c.h.b16 %v1687
    %v3210 = vunpack.c.l.b16 %v1688
    %v3211 = vunpack.c.h.b16 %v1688
    %v3212 = vunpack.c.l.b16 %v1689
    %v3213 = vunpack.c.h.b16 %v1689
    %v3214 = vunpack.c.l.b16 %v1690
    %v3215 = vunpack.c.h.b16 %v1690
    %v3216 = vunpack.c.l.b16 %v1691
    %v3217 = vunpack.c.h.b16 %v1691
    %v3218 = vunpack.c.l.b16 %v1692
    %v3219 = vunpack.c.h.b16 %v1692
    %v3220 = vunpack.c.l.b16 %v1693
    %v3221 = vunpack.c.h.b16 %v1693
    %v3222 = vunpack.c.l.b16 %v1694
    %v3223 = vunpack.c.h.b16 %v1694
    %v3224 = vunpack.c.l.b16 %v1695
    %v3225 = vunpack.c.h.b16 %v1695
    %v3226 = vunpack.c.l.b16 %v1696
    %v3227 = vunpack.c.h.b16 %v1696
    %v3228 = vunpack.c.l.b16 %v1697
    %v3229 = vunpack.c.h.b16 %v1697
    %v3230 = vunpack.c.l.b16 %v1698
    %v3231 = vunpack.c.h.b16 %v1698
    %v3232 = vunpack.c.l.b16 %v1699
    %v3233 = vunpack.c.h.b16 %v1699
    %v3234 = vunpack.c.l.b16 %v1700
    %v3235 = vunpack.c.h.b16 %v1700
    %v3236 = vunpack.c.l.b16 %v1701
    %v3237 = vunpack.c.h.b16 %v1701
    %v3238 = vunpack.c.l.b16 %v1702
    %v3239 = vunpack.c.h.b16 %v1702
    %v3240 = vunpack.c.l.b16 %v1703
    %v3241 = vunpack.c.h.b16 %v1703
    %v3242 = vunpack.c.l.b16 %v1704
    %v3243 = vunpack.c.h.b16 %v1704
    %v3244 = vunpack.c.l.b16 %v1705
    %v3245 = vunpack.c.h.b16 %v1705
    %v3246 = vunpack.c.l.b16 %v1706
    %v3247 = vunpack.c.h.b16 %v1706
    %v3248 = vunpack.c.l.b16 %v1707
    %v3249 = vunpack.c.h.b16 %v1707
    %v3250 = vunpack.c.l.b16 %v1708
    %v3251 = vunpack.c.h.b16 %v1708
    %v3252 = vunpack.c.l.b16 %v1709
    %v3253 = vunpack.c.h.b16 %v1709
    %v3254 = vunpack.c.l.b16 %v1710
    %v3255 = vunpack.c.h.b16 %v1710
    %v3256 = vunpack.c.l.b16 %v1711
    %v3257 = vunpack.c.h.b16 %v1711
    %v3258 = vunpack.c.l.b16 %v1712
    %v3259 = vunpack.c.h.b16 %v1712
    %v3260 = vunpack.c.l.b16 %v1713
    %v3261 = vunpack.c.h.b16 %v1713
    %v3262 = vunpack.c.l.b16 %v1714
    %v3263 = vunpack.c.h.b16 %v1714
    %v3264 = vunpack.c.l.b16 %v1715
    %v3265 = vunpack.c.h.b16 %v1715
    %v3266 = vunpack.c.l.b16 %v1716
    %v3267 = vunpack.c.h.b16 %v1716
    %v3268 = vunpack.c.l.b16 %v1717
    %v3269 = vunpack.c.h.b16 %v1717
    %v3270 = vunpack.c.l.b16 %v1718
    %v3271 = vunpack.c.h.b16 %v1718
    %v3272 = vunpack.c.l.b16 %v1719
    %v3273 = vunpack.c.h.b16 %v1719
    %v3274 = vunpack.c.l.b16 %v1720
    %v3275 = vunpack.c.h.b16 %v1720
    %v3276 = vunpack.c.l.b16 %v1721
    %v3277 = vunpack.c.h.b16 %v1721
    %v3278 = vunpack.c.l.b16 %v1722
    %v3279 = vunpack.c.h.b16 %v1722
    %v3280 = vunpack.c.l.b16 %v1723
    %v3281 = vunpack.c.h.b16 %v1723
    %v3282 = vunpack.c.l.b16 %v1724
    %v3283 = vunpack.c.h.b16 %v1724
    %v3284 = vunpack.c.l.b16 %v1725
    %v3285 = vunpack.c.h.b16 %v1725
    %v3286 = vunpack.c.l.b16 %v1726
    %v3287 = vunpack.c.h.b16 %v1726
    %v3288 = vunpack.c.l.b16 %v1727
    %v3289 = vunpack.c.h.b16 %v1727
    %v3290 = vunpack.c.l.b16 %v1728
    %v3291 = vunpack.c.h.b16 %v1728
    %v3292 = vunpack.c.l.b16 %v1729
    %v3293 = vunpack.c.h.b16 %v1729
    %v3294 = vunpack.c.l.b16 %v1730
    %v3295 = vunpack.c.h.b16 %v1730
    %v3296 = vunpack.c.l.b16 %v1731
    %v3297 = vunpack.c.h.b16 %v1731
    %v3298 = vunpack.c.l.b16 %v1732
    %v3299 = vunpack.c.h.b16 %v1732
    %v3300 = vunpack.c.l.b16 %v1733
    %v3301 = vunpack.c.h.b16 %v1733
    %v3302 = vunpack.c.l.b16 %v1734
    %v3303 = vunpack.c.h.b16 %v1734
    %v3304 = vunpack.c.l.b16 %v1735
    %v3305 = vunpack.c.h.b16 %v1735
    %v3306 = vunpack.c.l.b16 %v1736
    %v3307 = vunpack.c.h.b16 %v1736
    %v3308 = vunpack.c.l.b16 %v1737
    %v3309 = vunpack.c.h.b16 %v1737
    %v3310 = vunpack.c.l.b16 %v1738
    %v3311 = vunpack.c.h.b16 %v1738
    %v3312 = vunpack.c.l.b16 %v1739
    %v3313 = vunpack.c.h.b16 %v1739
    %v3314 = vunpack.c.l.b16 %v1740
    %v3315 = vunpack.c.h.b16 %v1740
    %v3316 = vunpack.c.l.b16 %v1741
    %v3317 = vunpack.c.h.b16 %v1741
    %v3318 = vunpack.c.l.b16 %v1742
    %v3319 = vunpack.c.h.b16 %v1742
    %v3320 = vunpack.c.l.b16 %v1743
    %v3321 = vunpack.c.h.b16 %v1743
    %v3322 = vunpack.c.l.b16 %v1744
    %v3323 = vunpack.c.h.b16 %v1744
    %v3324 = vunpack.c.l.b16 %v1745
    %v3325 = vunpack.c.h.b16 %v1745
    %v3326 = vunpack.c.l.b16 %v1746
    %v3327 = vunpack.c.h.b16 %v1746
    %v3328 = vunpack.c.l.b16 %v1747
    %v3329 = vunpack.c.h.b16 %v1747
    %v3330 = vunpack.c.l.b16 %v1748
    %v3331 = vunpack.c.h.b16 %v1748
    %v3332 = vunpack.c.l.b16 %v1749
    %v3333 = vunpack.c.h.b16 %v1749
    %v3334 = vunpack.c.l.b16 %v1750
    %v3335 = vunpack.c.h.b16 %v1750
    %v3336 = vunpack.c.l.b16 %v1751
    %v3337 = vunpack.c.h.b16 %v1751
    %v3338 = vunpack.c.l.b16 %v1752
    %v3339 = vunpack.c.h.b16 %v1752
    %v3340 = vunpack.c.l.b16 %v1753
    %v3341 = vunpack.c.h.b16 %v1753
    %v3342 = vunpack.c.l.b16 %v1754
    %v3343 = vunpack.c.h.b16 %v1754
    %v3344 = vunpack.c.l.b16 %v1755
    %v3345 = vunpack.c.h.b16 %v1755
    %v3346 = vunpack.c.l.b16 %v1756
    %v3347 = vunpack.c.h.b16 %v1756
    %v3348 = vunpack.c.l.b16 %v1757
    %v3349 = vunpack.c.h.b16 %v1757
    %v3350 = vunpack.c.l.b16 %v1758
    %v3351 = vunpack.c.h.b16 %v1758
    %v3352 = vunpack.c.l.b16 %v1759
    %v3353 = vunpack.c.h.b16 %v1759
    %v3354 = vunpack.c.l.b16 %v1760
    %v3355 = vunpack.c.h.b16 %v1760
    %v3356 = vunpack.c.l.b16 %v1761
    %v3357 = vunpack.c.h.b16 %v1761
    %v3358 = vunpack.c.l.b16 %v1762
    %v3359 = vunpack.c.h.b16 %v1762
    %v3360 = vunpack.c.l.b16 %v1763
    %v3361 = vunpack.c.h.b16 %v1763
    %v3362 = vunpack.c.l.b16 %v1764
    %v3363 = vunpack.c.h.b16 %v1764
    %v3364 = vunpack.c.l.b16 %v1765
    %v3365 = vunpack.c.h.b16 %v1765
    %v3366 = vunpack.c.l.b16 %v1766
    %v3367 = vunpack.c.h.b16 %v1766
    %v3368 = vunpack.c.l.b16 %v1767
    %v3369 = vunpack.c.h.b16 %v1767
    %v3370 = vunpack.c.l.b16 %v1768
    %v3371 = vunpack.c.h.b16 %v1768
    %v3372 = vunpack.c.l.b16 %v1769
    %v3373 = vunpack.c.h.b16 %v1769
    %v3374 = vunpack.c.l.b16 %v1770
    %v3375 = vunpack.c.h.b16 %v1770
    %v3376 = vunpack.c.l.b16 %v1771
    %v3377 = vunpack.c.h.b16 %v1771
    %v3378 = vunpack.c.l.b16 %v1772
    %v3379 = vunpack.c.h.b16 %v1772
    %v3380 = vunpack.c.l.b16 %v1773
    %v3381 = vunpack.c.h.b16 %v1773
    %v3382 = vunpack.c.l.b16 %v1774
    %v3383 = vunpack.c.h.b16 %v1774
    %v3384 = vunpack.c.l.b16 %v1775
    %v3385 = vunpack.c.h.b16 %v1775
    %v3386 = vunpack.c.l.b16 %v1776
    %v3387 = vunpack.c.h.b16 %v1776
    %v3388 = vunpack.c.l.b16 %v1777
    %v3389 = vunpack.c.h.b16 %v1777
    %v3390 = vunpack.c.l.b16 %v1778
    %v3391 = vunpack.c.h.b16 %v1778
    %v3392 = vunpack.c.l.b16 %v1779
    %v3393 = vunpack.c.h.b16 %v1779
    %v3394 = vunpack.c.l.b16 %v1780
    %v3395 = vunpack.c.h.b16 %v1780
    %v3396 = vunpack.c.l.b16 %v1781
    %v3397 = vunpack.c.h.b16 %v1781
    %v3398 = vunpack.c.l.b16 %v1782
    %v3399 = vunpack.c.h.b16 %v1782
    %v3400 = vunpack.c.l.b16 %v1783
    %v3401 = vunpack.c.h.b16 %v1783
    %v3402 = vunpack.c.l.b16 %v1784
    %v3403 = vunpack.c.h.b16 %v1784
    %v3404 = vunpack.c.l.b16 %v1785
    %v3405 = vunpack.c.h.b16 %v1785
    %v3406 = vpack.c.b16 %v2398, %v2382
    %v3407 = vpack.c.b16 %v2399, %v2383
    %v3408 = vpack.c.b16 %v2400, %v2384
    %v3409 = vpack.c.b16 %v2401, %v2385
    %v3410 = vpack.c.b16 %v2402, %v2386
    %v3411 = vpack.c.b16 %v2403, %v2387
    %v3412 = vpack.c.b16 %v2404, %v2388
    %v3413 = vpack.c.b16 %v2405, %v2389
    %v3414 = vpack.c.b16 %v2406, %v2390
    %v3415 = vpack.c.b16 %v2407, %v2391
    %v3416 = vpack.c.b16 %v2408, %v2392
    %v3417 = vpack.c.b16 %v2409, %v2393
    %v3418 = vpack.c.b16 %v2410, %v2394
    %v3419 = vpack.c.b16 %v2411, %v2395
    %v3420 = vpack.c.b16 %v2412, %v2396
    %v3421 = vpack.c.b16 %v2413, %v2397
    %v3422 = vpack.c.b16 %v2430, %v2414
    %v3423 = vpack.c.b16 %v2431, %v2415
    %v3424 = vpack.c.b16 %v2432, %v2416
    %v3425 = vpack.c.b16 %v2433, %v2417
    %v3426 = vpack.c.b16 %v2434, %v2418
    %v3427 = vpack.c.b16 %v2435, %v2419
    %v3428 = vpack.c.b16 %v2436, %v2420
    %v3429 = vpack.c.b16 %v2437, %v2421
    %v3430 = vpack.c.b16 %v2438, %v2422
    %v3431 = vpack.c.b16 %v2439, %v2423
    %v3432 = vpack.c.b16 %v2440, %v2424
    %v3433 = vpack.c.b16 %v2441, %v2425
    %v3434 = vpack.c.b16 %v2442, %v2426
    %v3435 = vpack.c.b16 %v2443, %v2427
    %v3436 = vpack.c.b16 %v2444, %v2428
    %v3437 = vpack.c.b16 %v2445, %v2429
    %v3438 = vpack.c.b16 %v2462, %v2446
    %v3439 = vpack.c.b16 %v2463, %v2447
    %v3440 = vpack.c.b16 %v2464, %v2448
    %v3441 = vpack.c.b16 %v2465, %v2449
    %v3442 = vpack.c.b16 %v2466, %v2450
    %v3443 = vpack.c.b16 %v2467, %v2451
    %v3444 = vpack.c.b16 %v2468, %v2452
    %v3445 = vpack.c.b16 %v2469, %v2453
    %v3446 = vpack.c.b16 %v2470, %v2454
    %v3447 = vpack.c.b16 %v2471, %v2455
    %v3448 = vpack.c.b16 %v2472, %v2456
    %v3449 = vpack.c.b16 %v2473, %v2457
    %v3450 = vpack.c.b16 %v2474, %v2458
    %v3451 = vpack.c.b16 %v2475, %v2459
    %v3452 = vpack.c.b16 %v2476, %v2460
    %v3453 = vpack.c.b16 %v2477, %v2461
    %v3454 = vpack.c.b16 %v2494, %v2478
    %v3455 = vpack.c.b16 %v2495, %v2479
    %v3456 = vpack.c.b16 %v2496, %v2480
    %v3457 = vpack.c.b16 %v2497, %v2481
    %v3458 = vpack.c.b16 %v2498, %v2482
    %v3459 = vpack.c.b16 %v2499, %v2483
    %v3460 = vpack.c.b16 %v2500, %v2484
    %v3461 = vpack.c.b16 %v2501, %v2485
    %v3462 = vpack.c.b16 %v2502, %v2486
    %v3463 = vpack.c.b16 %v2503, %v2487
    %v3464 = vpack.c.b16 %v2504, %v2488
    %v3465 = vpack.c.b16 %v2505, %v2489
    %v3466 = vpack.c.b16 %v2506, %v2490
    %v3467 = vpack.c.b16 %v2507, %v2491
    %v3468 = vpack.c.b16 %v2508, %v2492
    %v3469 = vpack.c.b16 %v2509, %v2493
    %v3470 = vpack.c.b16 %v2526, %v2510
    %v3471 = vpack.c.b16 %v2527, %v2511
    %v3472 = vpack.c.b16 %v2528, %v2512
    %v3473 = vpack.c.b16 %v2529, %v2513
    %v3474 = vpack.c.b16 %v2530, %v2514
    %v3475 = vpack.c.b16 %v2531, %v2515
    %v3476 = vpack.c.b16 %v2532, %v2516
    %v3477 = vpack.c.b16 %v2533, %v2517
    %v3478 = vpack.c.b16 %v2534, %v2518
    %v3479 = vpack.c.b16 %v2535, %v2519
    %v3480 = vpack.c.b16 %v2536, %v2520
    %v3481 = vpack.c.b16 %v2537, %v2521
    %v3482 = vpack.c.b16 %v2538, %v2522
    %v3483 = vpack.c.b16 %v2539, %v2523
    %v3484 = vpack.c.b16 %v2540, %v2524
    %v3485 = vpack.c.b16 %v2541, %v2525
    %v3486 = vpack.c.b16 %v2558, %v2542
    %v3487 = vpack.c.b16 %v2559, %v2543
    %v3488 = vpack.c.b16 %v2560, %v2544
    %v3489 = vpack.c.b16 %v2561, %v2545
    %v3490 = vpack.c.b16 %v2562, %v2546
    %v3491 = vpack.c.b16 %v2563, %v2547
    %v3492 = vpack.c.b16 %v2564, %v2548
    %v3493 = vpack.c.b16 %v2565, %v2549
    %v3494 = vpack.c.b16 %v2566, %v2550
    %v3495 = vpack.c.b16 %v2567, %v2551
    %v3496 = vpack.c.b16 %v2568, %v2552
    %v3497 = vpack.c.b16 %v2569, %v2553
    %v3498 = vpack.c.b16 %v2570, %v2554
    %v3499 = vpack.c.b16 %v2571, %v2555
    %v3500 = vpack.c.b16 %v2572, %v2556
    %v3501 = vpack.c.b16 %v2573, %v2557
    %v3502 = vpack.c.b16 %v2590, %v2574
    %v3503 = vpack.c.b16 %v2591, %v2575
    %v3504 = vpack.c.b16 %v2592, %v2576
    %v3505 = vpack.c.b16 %v2593, %v2577
    %v3506 = vpack.c.b16 %v2594, %v2578
    %v3507 = vpack.c.b16 %v2595, %v2579
    %v3508 = vpack.c.b16 %v2596, %v2580
    %v3509 = vpack.c.b16 %v2597, %v2581
    %v3510 = vpack.c.b16 %v2598, %v2582
    %v3511 = vpack.c.b16 %v2599, %v2583
    %v3512 = vpack.c.b16 %v2600, %v2584
    %v3513 = vpack.c.b16 %v2601, %v2585
    %v3514 = vpack.c.b16 %v2602, %v2586
    %v3515 = vpack.c.b16 %v2603, %v2587
    %v3516 = vpack.c.b16 %v2604, %v2588
    %v3517 = vpack.c.b16 %v2605, %v2589
    %v3518 = vpack.c.b16 %v2622, %v2606
    %v3519 = vpack.c.b16 %v2623, %v2607
    %v3520 = vpack.c.b16 %v2624, %v2608
    %v3521 = vpack.c.b16 %v2625, %v2609
    %v3522 = vpack.c.b16 %v2626, %v2610
    %v3523 = vpack.c.b16 %v2627, %v2611
    %v3524 = vpack.c.b16 %v2628, %v2612
    %v3525 = vpack.c.b16 %v2629, %v2613
    %v3526 = vpack.c.b16 %v2630, %v2614
    %v3527 = vpack.c.b16 %v2631, %v2615
    %v3528 = vpack.c.b16 %v2632, %v2616
    %v3529 = vpack.c.b16 %v2633, %v2617
    %v3530 = vpack.c.b16 %v2634, %v2618
    %v3531 = vpack.c.b16 %v2635, %v2619
    %v3532 = vpack.c.b16 %v2636, %v2620
    %v3533 = vpack.c.b16 %v2637, %v2621
    %v3534 = vpack.c.b16 %v2654, %v2638
    %v3535 = vpack.c.b16 %v2655, %v2639
    %v3536 = vpack.c.b16 %v2656, %v2640
    %v3537 = vpack.c.b16 %v2657, %v2641
    %v3538 = vpack.c.b16 %v2658, %v2642
    %v3539 = vpack.c.b16 %v2659, %v2643
    %v3540 = vpack.c.b16 %v2660, %v2644
    %v3541 = vpack.c.b16 %v2661, %v2645
    %v3542 = vpack.c.b16 %v2662, %v2646
    %v3543 = vpack.c.b16 %v2663, %v2647
    %v3544 = vpack.c.b16 %v2664, %v2648
    %v3545 = vpack.c.b16 %v2665, %v2649
    %v3546 = vpack.c.b16 %v2666, %v2650
    %v3547 = vpack.c.b16 %v2667, %v2651
    %v3548 = vpack.c.b16 %v2668, %v2652
    %v3549 = vpack.c.b16 %v2669, %v2653
    %v3550 = vpack.c.b16 %v2686, %v2670
    %v3551 = vpack.c.b16 %v2687, %v2671
    %v3552 = vpack.c.b16 %v2688, %v2672
    %v3553 = vpack.c.b16 %v2689, %v2673
    %v3554 = vpack.c.b16 %v2690, %v2674
    %v3555 = vpack.c.b16 %v2691, %v2675
    %v3556 = vpack.c.b16 %v2692, %v2676
    %v3557 = vpack.c.b16 %v2693, %v2677
    %v3558 = vpack.c.b16 %v2694, %v2678
    %v3559 = vpack.c.b16 %v2695, %v2679
    %v3560 = vpack.c.b16 %v2696, %v2680
    %v3561 = vpack.c.b16 %v2697, %v2681
    %v3562 = vpack.c.b16 %v2698, %v2682
    %v3563 = vpack.c.b16 %v2699, %v2683
    %v3564 = vpack.c.b16 %v2700, %v2684
    %v3565 = vpack.c.b16 %v2701, %v2685
    %v3566 = vpack.c.b16 %v2718, %v2702
    %v3567 = vpack.c.b16 %v2719, %v2703
    %v3568 = vpack.c.b16 %v2720, %v2704
    %v3569 = vpack.c.b16 %v2721, %v2705
    %v3570 = vpack.c.b16 %v2722, %v2706
    %v3571 = vpack.c.b16 %v2723, %v2707
    %v3572 = vpack.c.b16 %v2724, %v2708
    %v3573 = vpack.c.b16 %v2725, %v2709
    %v3574 = vpack.c.b16 %v2726, %v2710
    %v3575 = vpack.c.b16 %v2727, %v2711
    %v3576 = vpack.c.b16 %v2728, %v2712
    %v3577 = vpack.c.b16 %v2729, %v2713
    %v3578 = vpack.c.b16 %v2730, %v2714
    %v3579 = vpack.c.b16 %v2731, %v2715
    %v3580 = vpack.c.b16 %v2732, %v2716
    %v3581 = vpack.c.b16 %v2733, %v2717
    %v3582 = vpack.c.b16 %v2750, %v2734
    %v3583 = vpack.c.b16 %v2751, %v2735
    %v3584 = vpack.c.b16 %v2752, %v2736
    %v3585 = vpack.c.b16 %v2753, %v2737
    %v3586 = vpack.c.b16 %v2754, %v2738
    %v3587 = vpack.c.b16 %v2755, %v2739
    %v3588 = vpack.c.b16 %v2756, %v2740
    %v3589 = vpack.c.b16 %v2757, %v2741
    %v3590 = vpack.c.b16 %v2758, %v2742
    %v3591 = vpack.c.b16 %v2759, %v2743
    %v3592 = vpack.c.b16 %v2760, %v2744
    %v3593 = vpack.c.b16 %v2761, %v2745
    %v3594 = vpack.c.b16 %v2762, %v2746
    %v3595 = vpack.c.b16 %v2763, %v2747
    %v3596 = vpack.c.b16 %v2764, %v2748
    %v3597 = vpack.c.b16 %v2765, %v2749
    %v3598 = vpack.c.b16 %v2782, %v2766
    %v3599 = vpack.c.b16 %v2783, %v2767
    %v3600 = vpack.c.b16 %v2784, %v2768
    %v3601 = vpack.c.b16 %v2785, %v2769
    %v3602 = vpack.c.b16 %v2786, %v2770
    %v3603 = vpack.c.b16 %v2787, %v2771
    %v3604 = vpack.c.b16 %v2788, %v2772
    %v3605 = vpack.c.b16 %v2789, %v2773
    %v3606 = vpack.c.b16 %v2790, %v2774
    %v3607 = vpack.c.b16 %v2791, %v2775
    %v3608 = vpack.c.b16 %v2792, %v2776
    %v3609 = vpack.c.b16 %v2793, %v2777
    %v3610 = vpack.c.b16 %v2794, %v2778
    %v3611 = vpack.c.b16 %v2795, %v2779
    %v3612 = vpack.c.b16 %v2796, %v2780
    %v3613 = vpack.c.b16 %v2797, %v2781
    %v3614 = vpack.c.b16 %v2814, %v2798
    %v3615 = vpack.c.b16 %v2815, %v2799
    %v3616 = vpack.c.b16 %v2816, %v2800
    %v3617 = vpack.c.b16 %v2817, %v2801
    %v3618 = vpack.c.b16 %v2818, %v2802
    %v3619 = vpack.c.b16 %v2819, %v2803
    %v3620 = vpack.c.b16 %v2820, %v2804
    %v3621 = vpack.c.b16 %v2821, %v2805
    %v3622 = vpack.c.b16 %v2822, %v2806
    %v3623 = vpack.c.b16 %v2823, %v2807
    %v3624 = vpack.c.b16 %v2824, %v2808
    %v3625 = vpack.c.b16 %v2825, %v2809
    %v3626 = vpack.c.b16 %v2826, %v2810
    %v3627 = vpack.c.b16 %v2827, %v2811
    %v3628 = vpack.c.b16 %v2828, %v2812
    %v3629 = vpack.c.b16 %v2829, %v2813
    %v3630 = vpack.c.b16 %v2846, %v2830
    %v3631 = vpack.c.b16 %v2847, %v2831
    %v3632 = vpack.c.b16 %v2848, %v2832
    %v3633 = vpack.c.b16 %v2849, %v2833
    %v3634 = vpack.c.b16 %v2850, %v2834
    %v3635 = vpack.c.b16 %v2851, %v2835
    %v3636 = vpack.c.b16 %v2852, %v2836
    %v3637 = vpack.c.b16 %v2853, %v2837
    %v3638 = vpack.c.b16 %v2854, %v2838
    %v3639 = vpack.c.b16 %v2855, %v2839
    %v3640 = vpack.c.b16 %v2856, %v2840
    %v3641 = vpack.c.b16 %v2857, %v2841
    %v3642 = vpack.c.b16 %v2858, %v2842
    %v3643 = vpack.c.b16 %v2859, %v2843
    %v3644 = vpack.c.b16 %v2860, %v2844
    %v3645 = vpack.c.b16 %v2861, %v2845
    %v3646 = vpack.c.b16 %v2878, %v2862
    %v3647 = vpack.c.b16 %v2879, %v2863
    %v3648 = vpack.c.b16 %v2880, %v2864
    %v3649 = vpack.c.b16 %v2881, %v2865
    %v3650 = vpack.c.b16 %v2882, %v2866
    %v3651 = vpack.c.b16 %v2883, %v2867
    %v3652 = vpack.c.b16 %v2884, %v2868
    %v3653 = vpack.c.b16 %v2885, %v2869
    %v3654 = vpack.c.b16 %v2886, %v2870
    %v3655 = vpack.c.b16 %v2887, %v2871
    %v3656 = vpack.c.b16 %v2888, %v2872
    %v3657 = vpack.c.b16 %v2889, %v2873
    %v3658 = vpack.c.b16 %v2890, %v2874
    %v3659 = vpack.c.b16 %v2891, %v2875
    %v3660 = vpack.c.b16 %v2892, %v2876
    %v3661 = vpack.c.b16 %v2893, %v2877
    %v3662 = vpack.c.b16 %v2910, %v2894
    %v3663 = vpack.c.b16 %v2911, %v2895
    %v3664 = vpack.c.b16 %v2912, %v2896
    %v3665 = vpack.c.b16 %v2913, %v2897
    %v3666 = vpack.c.b16 %v2914, %v2898
    %v3667 = vpack.c.b16 %v2915, %v2899
    %v3668 = vpack.c.b16 %v2916, %v2900
    %v3669 = vpack.c.b16 %v2917, %v2901
    %v3670 = vpack.c.b16 %v2918, %v2902
    %v3671 = vpack.c.b16 %v2919, %v2903
    %v3672 = vpack.c.b16 %v2920, %v2904
    %v3673 = vpack.c.b16 %v2921, %v2905
    %v3674 = vpack.c.b16 %v2922, %v2906
    %v3675 = vpack.c.b16 %v2923, %v2907
    %v3676 = vpack.c.b16 %v2924, %v2908
    %v3677 = vpack.c.b16 %v2925, %v2909
    %v3678 = vpack.c.b16 %v2942, %v2926
    %v3679 = vpack.c.b16 %v2943, %v2927
    %v3680 = vpack.c.b16 %v2944, %v2928
    %v3681 = vpack.c.b16 %v2945, %v2929
    %v3682 = vpack.c.b16 %v2946, %v2930
    %v3683 = vpack.c.b16 %v2947, %v2931
    %v3684 = vpack.c.b16 %v2948, %v2932
    %v3685 = vpack.c.b16 %v2949, %v2933
    %v3686 = vpack.c.b16 %v2950, %v2934
    %v3687 = vpack.c.b16 %v2951, %v2935
    %v3688 = vpack.c.b16 %v2952, %v2936
    %v3689 = vpack.c.b16 %v2953, %v2937
    %v3690 = vpack.c.b16 %v2954, %v2938
    %v3691 = vpack.c.b16 %v2955, %v2939
    %v3692 = vpack.c.b16 %v2956, %v2940
    %v3693 = vpack.c.b16 %v2957, %v2941
    %v3694 = vpack.c.b16 %v2974, %v2958
    %v3695 = vpack.c.b16 %v2975, %v2959
    %v3696 = vpack.c.b16 %v2976, %v2960
    %v3697 = vpack.c.b16 %v2977, %v2961
    %v3698 = vpack.c.b16 %v2978, %v2962
    %v3699 = vpack.c.b16 %v2979, %v2963
    %v3700 = vpack.c.b16 %v2980, %v2964
    %v3701 = vpack.c.b16 %v2981, %v2965
    %v3702 = vpack.c.b16 %v2982, %v2966
    %v3703 = vpack.c.b16 %v2983, %v2967
    %v3704 = vpack.c.b16 %v2984, %v2968
    %v3705 = vpack.c.b16 %v2985, %v2969
    %v3706 = vpack.c.b16 %v2986, %v2970
    %v3707 = vpack.c.b16 %v2987, %v2971
    %v3708 = vpack.c.b16 %v2988, %v2972
    %v3709 = vpack.c.b16 %v2989, %v2973
    %v3710 = vpack.c.b16 %v3006, %v2990
    %v3711 = vpack.c.b16 %v3007, %v2991
    %v3712 = vpack.c.b16 %v3008, %v2992
    %v3713 = vpack.c.b16 %v3009, %v2993
    %v3714 = vpack.c.b16 %v3010, %v2994
    %v3715 = vpack.c.b16 %v3011, %v2995
    %v3716 = vpack.c.b16 %v3012, %v2996
    %v3717 = vpack.c.b16 %v3013, %v2997
    %v3718 = vpack.c.b16 %v3014, %v2998
    %v3719 = vpack.c.b16 %v3015, %v2999
    %v3720 = vpack.c.b16 %v3016, %v3000
    %v3721 = vpack.c.b16 %v3017, %v3001
    %v3722 = vpack.c.b16 %v3018, %v3002
    %v3723 = vpack.c.b16 %v3019, %v3003
    %v3724 = vpack.c.b16 %v3020, %v3004
    %v3725 = vpack.c.b16 %v3021, %v3005
    %v3726 = vpack.c.b16 %v3038, %v3022
    %v3727 = vpack.c.b16 %v3039, %v3023
    %v3728 = vpack.c.b16 %v3040, %v3024
    %v3729 = vpack.c.b16 %v3041, %v3025
    %v3730 = vpack.c.b16 %v3042, %v3026
    %v3731 = vpack.c.b16 %v3043, %v3027
    %v3732 = vpack.c.b16 %v3044, %v3028
    %v3733 = vpack.c.b16 %v3045, %v3029
    %v3734 = vpack.c.b16 %v3046, %v3030
    %v3735 = vpack.c.b16 %v3047, %v3031
    %v3736 = vpack.c.b16 %v3048, %v3032
    %v3737 = vpack.c.b16 %v3049, %v3033
    %v3738 = vpack.c.b16 %v3050, %v3034
    %v3739 = vpack.c.b16 %v3051, %v3035
    %v3740 = vpack.c.b16 %v3052, %v3036
    %v3741 = vpack.c.b16 %v3053, %v3037
    %v3742 = vpack.c.b16 %v3070, %v3054
    %v3743 = vpack.c.b16 %v3071, %v3055
    %v3744 = vpack.c.b16 %v3072, %v3056
    %v3745 = vpack.c.b16 %v3073, %v3057
    %v3746 = vpack.c.b16 %v3074, %v3058
    %v3747 = vpack.c.b16 %v3075, %v3059
    %v3748 = vpack.c.b16 %v3076, %v3060
    %v3749 = vpack.c.b16 %v3077, %v3061
    %v3750 = vpack.c.b16 %v3078, %v3062
    %v3751 = vpack.c.b16 %v3079, %v3063
    %v3752 = vpack.c.b16 %v3080, %v3064
    %v3753 = vpack.c.b16 %v3081, %v3065
    %v3754 = vpack.c.b16 %v3082, %v3066
    %v3755 = vpack.c.b16 %v3083, %v3067
    %v3756 = vpack.c.b16 %v3084, %v3068
    %v3757 = vpack.c.b16 %v3085, %v3069
    %v3758 = vpack.c.b16 %v3102, %v3086
    %v3759 = vpack.c.b16 %v3103, %v3087
    %v3760 = vpack.c.b16 %v3104, %v3088
    %v3761 = vpack.c.b16 %v3105, %v3089
    %v3762 = vpack.c.b16 %v3106, %v3090
    %v3763 = vpack.c.b16 %v3107, %v3091
    %v3764 = vpack.c.b16 %v3108, %v3092
    %v3765 = vpack.c.b16 %v3109, %v3093
    %v3766 = vpack.c.b16 %v3110, %v3094
    %v3767 = vpack.c.b16 %v3111, %v3095
    %v3768 = vpack.c.b16 %v3112, %v3096
    %v3769 = vpack.c.b16 %v3113, %v3097
    %v3770 = vpack.c.b16 %v3114, %v3098
    %v3771 = vpack.c.b16 %v3115, %v3099
    %v3772 = vpack.c.b16 %v3116, %v3100
    %v3773 = vpack.c.b16 %v3117, %v3101
    %v3774 = vpack.c.b16 %v3134, %v3118
    %v3775 = vpack.c.b16 %v3135, %v3119
    %v3776 = vpack.c.b16 %v3136, %v3120
    %v3777 = vpack.c.b16 %v3137, %v3121
    %v3778 = vpack.c.b16 %v3138, %v3122
    %v3779 = vpack.c.b16 %v3139, %v3123
    %v3780 = vpack.c.b16 %v3140, %v3124
    %v3781 = vpack.c.b16 %v3141, %v3125
    %v3782 = vpack.c.b16 %v3142, %v3126
    %v3783 = vpack.c.b16 %v3143, %v3127
    %v3784 = vpack.c.b16 %v3144, %v3128
    %v3785 = vpack.c.b16 %v3145, %v3129
    %v3786 = vpack.c.b16 %v3146, %v3130
    %v3787 = vpack.c.b16 %v3147, %v3131
    %v3788 = vpack.c.b16 %v3148, %v3132
    %v3789 = vpack.c.b16 %v3149, %v3133
    %v3790 = vpack.c.b16 %v3166, %v3150
    %v3791 = vpack.c.b16 %v3167, %v3151
    %v3792 = vpack.c.b16 %v3168, %v3152
    %v3793 = vpack.c.b16 %v3169, %v3153
    %v3794 = vpack.c.b16 %v3170, %v3154
    %v3795 = vpack.c.b16 %v3171, %v3155
    %v3796 = vpack.c.b16 %v3172, %v3156
    %v3797 = vpack.c.b16 %v3173, %v3157
    %v3798 = vpack.c.b16 %v3174, %v3158
    %v3799 = vpack.c.b16 %v3175, %v3159
    %v3800 = vpack.c.b16 %v3176, %v3160
    %v3801 = vpack.c.b16 %v3177, %v3161
    %v3802 = vpack.c.b16 %v3178, %v3162
    %v3803 = vpack.c.b16 %v3179, %v3163
    %v3804 = vpack.c.b16 %v3180, %v3164
    %v3805 = vpack.c.b16 %v3181, %v3165
    %v3806 = vpack.c.b16 %v3198, %v3182
    %v3807 = vpack.c.b16 %v3199, %v3183
    %v3808 = vpack.c.b16 %v3200, %v3184
    %v3809 = vpack.c.b16 %v3201, %v3185
    %v3810 = vpack.c.b16 %v3202, %v3186
    %v3811 = vpack.c.b16 %v3203, %v3187
    %v3812 = vpack.c.b16 %v3204, %v3188
    %v3813 = vpack.c.b16 %v3205, %v3189
    %v3814 = vpack.c.b16 %v3206, %v3190
    %v3815 = vpack.c.b16 %v3207, %v3191
    %v3816 = vpack.c.b16 %v3208, %v3192
    %v3817 = vpack.c.b16 %v3209, %v3193
    %v3818 = vpack.c.b16 %v3210, %v3194
    %v3819 = vpack.c.b16 %v3211, %v3195
    %v3820 = vpack.c.b16 %v3212, %v3196
    %v3821 = vpack.c.b16 %v3213, %v3197
    %v3822 = vpack.c.b16 %v3230, %v3214
    %v3823 = vpack.c.b16 %v3231, %v3215
    %v3824 = vpack.c.b16 %v3232, %v3216
    %v3825 = vpack.c.b16 %v3233, %v3217
    %v3826 = vpack.c.b16 %v3234, %v3218
    %v3827 = vpack.c.b16 %v3235, %v3219
    %v3828 = vpack.c.b16 %v3236, %v3220
    %v3829 = vpack.c.b16 %v3237, %v3221
    %v3830 = vpack.c.b16 %v3238, %v3222
    %v3831 = vpack.c.b16 %v3239, %v3223
    %v3832 = vpack.c.b16 %v3240, %v3224
    %v3833 = vpack.c.b16 %v3241, %v3225
    %v3834 = vpack.c.b16 %v3242, %v3226
    %v3835 = vpack.c.b16 %v3243, %v3227
    %v3836 = vpack.c.b16 %v3244, %v3228
    %v3837 = vpack.c.b16 %v3245, %v3229
    %v3838 = vpack.c.b16 %v3262, %v3246
    %v3839 = vpack.c.b16 %v3263, %v3247
    %v3840 = vpack.c.b16 %v3264, %v3248
    %v3841 = vpack.c.b16 %v3265, %v3249
    %v3842 = vpack.c.b16 %v3266, %v3250
    %v3843 = vpack.c.b16 %v3267, %v3251
    %v3844 = vpack.c.b16 %v3268, %v3252
    %v3845 = vpack.c.b16 %v3269, %v3253
    %v3846 = vpack.c.b16 %v3270, %v3254
    %v3847 = vpack.c.b16 %v3271, %v3255
    %v3848 = vpack.c.b16 %v3272, %v3256
    %v3849 = vpack.c.b16 %v3273, %v3257
    %v3850 = vpack.c.b16 %v3274, %v3258
    %v3851 = vpack.c.b16 %v3275, %v3259
    %v3852 = vpack.c.b16 %v3276, %v3260
    %v3853 = vpack.c.b16 %v3277, %v3261
    %v3854 = vpack.c.b16 %v3294, %v3278
    %v3855 = vpack.c.b16 %v3295, %v3279
    %v3856 = vpack.c.b16 %v3296, %v3280
    %v3857 = vpack.c.b16 %v3297, %v3281
    %v3858 = vpack.c.b16 %v3298, %v3282
    %v3859 = vpack.c.b16 %v3299, %v3283
    %v3860 = vpack.c.b16 %v3300, %v3284
    %v3861 = vpack.c.b16 %v3301, %v3285
    %v3862 = vpack.c.b16 %v3302, %v3286
    %v3863 = vpack.c.b16 %v3303, %v3287
    %v3864 = vpack.c.b16 %v3304, %v3288
    %v3865 = vpack.c.b16 %v3305, %v3289
    %v3866 = vpack.c.b16 %v3306, %v3290
    %v3867 = vpack.c.b16 %v3307, %v3291
    %v3868 = vpack.c.b16 %v3308, %v3292
    %v3869 = vpack.c.b16 %v3309, %v3293
    %v3870 = vpack.c.b16 %v3326, %v3310
    %v3871 = vpack.c.b16 %v3327, %v3311
    %v3872 = vpack.c.b16 %v3328, %v3312
    %v3873 = vpack.c.b16 %v3329, %v3313
    %v3874 = vpack.c.b16 %v3330, %v3314
    %v3875 = vpack.c.b16 %v3331, %v3315
    %v3876 = vpack.c.b16 %v3332, %v3316
    %v3877 = vpack.c.b16 %v3333, %v3317
    %v3878 = vpack.c.b16 %v3334, %v3318
    %v3879 = vpack.c.b16 %v3335, %v3319
    %v3880 = vpack.c.b16 %v3336, %v3320
    %v3881 = vpack.c.b16 %v3337, %v3321
    %v3882 = vpack.c.b16 %v3338, %v3322
    %v3883 = vpack.c.b16 %v3339, %v3323
    %v3884 = vpack.c.b16 %v3340, %v3324
    %v3885 = vpack.c.b16 %v3341, %v3325
    %v3886 = vpack.c.b16 %v3358, %v3342
    %v3887 = vpack.c.b16 %v3359, %v3343
    %v3888 = vpack.c.b16 %v3360, %v3344
    %v3889 = vpack.c.b16 %v3361, %v3345
    %v3890 = vpack.c.b16 %v3362, %v3346
    %v3891 = vpack.c.b16 %v3363, %v3347
    %v3892 = vpack.c.b16 %v3364, %v3348
    %v3893 = vpack.c.b16 %v3365, %v3349
    %v3894 = vpack.c.b16 %v3366, %v3350
    %v3895 = vpack.c.b16 %v3367, %v3351
    %v3896 = vpack.c.b16 %v3368, %v3352
    %v3897 = vpack.c.b16 %v3369, %v3353
    %v3898 = vpack.c.b16 %v3370, %v3354
    %v3899 = vpack.c.b16 %v3371, %v3355
    %v3900 = vpack.c.b16 %v3372, %v3356
    %v3901 = vpack.c.b16 %v3373, %v3357
    %v3902 = vpack.c.b16 %v3390, %v3374
    %v3903 = vpack.c.b16 %v3391, %v3375
    %v3904 = vpack.c.b16 %v3392, %v3376
    %v3905 = vpack.c.b16 %v3393, %v3377
    %v3906 = vpack.c.b16 %v3394, %v3378
    %v3907 = vpack.c.b16 %v3395, %v3379
    %v3908 = vpack.c.b16 %v3396, %v3380
    %v3909 = vpack.c.b16 %v3397, %v3381
    %v3910 = vpack.c.b16 %v3398, %v3382
    %v3911 = vpack.c.b16 %v3399, %v3383
    %v3912 = vpack.c.b16 %v3400, %v3384
    %v3913 = vpack.c.b16 %v3401, %v3385
    %v3914 = vpack.c.b16 %v3402, %v3386
    %v3915 = vpack.c.b16 %v3403, %v3387
    %v3916 = vpack.c.b16 %v3404, %v3388
    %v3917 = vpack.c.b16 %v3405, %v3389
    %4430 = vmatprep.subr.bf16.mxu0 %v3519
    %4431 = vmatpush1.bf16.msra.mxu0 %v3518
    %4432 = vmatprep.subr.bf16.mxu0 %v3503
    %4433 = vmatpush1.bf16.msra.mxu0 %v3502
    %4434 = vmatprep.subr.bf16.mxu0 %v3487
    %4435 = vmatpush1.bf16.msra.mxu0 %v3486
    %4436 = vmatprep.subr.bf16.mxu0 %v3471
    %4437 = vmatpush1.bf16.msra.mxu0 %v3470
    %4438 = vmatprep.subr.bf16.mxu0 %v3455
    %4439 = vmatpush1.bf16.msra.mxu0 %v3454
    %4440 = vmatprep.subr.bf16.mxu0 %v3439
    %4441 = vmatpush1.bf16.msra.mxu0 %v3438
    %4442 = vmatprep.subr.bf16.mxu0 %v3423
    %4443 = vmatpush1.bf16.msra.mxu0 %v3422
    %4444 = vmatprep.subr.bf16.mxu0 %v3407
    %4445 = vmatpush1.bf16.msra.mxu0 %v3406
    %4446 = vmatprep.subr.bf16.mxu0 %v3647
    %4447 = vmatpush2.bf16.msra.mxu0 %v3646
    %4448 = vmatprep.subr.bf16.mxu0 %v3631
    %4449 = vmatpush2.bf16.msra.mxu0 %v3630
    %4450 = vmatprep.subr.bf16.mxu0 %v3615
    %4451 = vmatpush2.bf16.msra.mxu0 %v3614
    %4452 = vmatprep.subr.bf16.mxu0 %v3599
    %4453 = vmatpush2.bf16.msra.mxu0 %v3598
    %4454 = vmatprep.subr.bf16.mxu0 %v3583
    %4455 = vmatpush2.bf16.msra.mxu0 %v3582
    %4456 = vmatprep.subr.bf16.mxu0 %v3567
    %4457 = vmatpush2.bf16.msra.mxu0 %v3566
    %4458 = vmatprep.subr.bf16.mxu0 %v3551
    %4459 = vmatpush2.bf16.msra.mxu0 %v3550
    %4460 = vmatprep.subr.bf16.mxu0 %v3535
    %4461 = vmatpush2.bf16.msra.mxu0 %v3534
    %4462 = vmatprep.mubr.bf16.mxu0 %v1271
    %4463 = vmatmul.mubr.bf16.gmra.mxu0 %v1270
    %v4464 = vpop.f32.mrf.mxu0
    %v4465 = vadd.f32 %v1793, %v4464
    %v4466 = vpop.f32.mrf.mxu0
    %v4467 = vadd.f32 %v1797, %v4466
    %v4468 = vpop.f32.mrf.mxu0
    %v4469 = vpop.f32.mrf.mxu0
    %4470 = vdwg.mxu0
    %4471 = vmatprep.subr.bf16.mxu0 %v3775
    %4472 = vmatpush1.bf16.msra.mxu0 %v3774
    %4473 = vmatprep.subr.bf16.mxu0 %v3759
    %4474 = vmatpush1.bf16.msra.mxu0 %v3758
    %4475 = vmatprep.subr.bf16.mxu0 %v3743
    %4476 = vmatpush1.bf16.msra.mxu0 %v3742
    %4477 = vmatprep.subr.bf16.mxu0 %v3727
    %4478 = vmatpush1.bf16.msra.mxu0 %v3726
    %4479 = vmatprep.subr.bf16.mxu0 %v3711
    %4480 = vmatpush1.bf16.msra.mxu0 %v3710
    %4481 = vmatprep.subr.bf16.mxu0 %v3695
    %4482 = vmatpush1.bf16.msra.mxu0 %v3694
    %4483 = vmatprep.subr.bf16.mxu0 %v3679
    %4484 = vmatpush1.bf16.msra.mxu0 %v3678
    %4485 = vmatprep.subr.bf16.mxu0 %v3663
    %4486 = vmatpush1.bf16.msra.mxu0 %v3662
    %4487 = vmatprep.subr.bf16.mxu0 %v3903
    %4488 = vmatpush2.bf16.msra.mxu0 %v3902
    %4489 = vmatprep.subr.bf16.mxu0 %v3887
    %4490 = vmatpush2.bf16.msra.mxu0 %v3886
    %4491 = vmatprep.subr.bf16.mxu0 %v3871
    %4492 = vmatpush2.bf16.msra.mxu0 %v3870
    %4493 = vmatprep.subr.bf16.mxu0 %v3855
    %4494 = vmatpush2.bf16.msra.mxu0 %v3854
    %4495 = vmatprep.subr.bf16.mxu0 %v3839
    %4496 = vmatpush2.bf16.msra.mxu0 %v3838
    %4497 = vmatprep.subr.bf16.mxu0 %v3823
    %4498 = vmatpush2.bf16.msra.mxu0 %v3822
    %4499 = vmatprep.subr.bf16.mxu0 %v3807
    %4500 = vmatpush2.bf16.msra.mxu0 %v3806
    %4501 = vmatprep.subr.bf16.mxu0 %v3791
    %4502 = vmatpush2.bf16.msra.mxu0 %v3790
    %4503 = vmatprep.mubr.bf16.mxu0 %v1273
    %4504 = vmatmul.mubr.bf16.gmra.mxu0 %v1272
    %v4505 = vpop.f32.mrf.mxu0
    %v4506 = vadd.f32 %v4465, %v4505
    %v4507 = vpop.f32.mrf.mxu0
    %v4508 = vadd.f32 %v4467, %v4507
    %v4509 = vpop.f32.mrf.mxu0
    %v4510 = vpop.f32.mrf.mxu0
    %4511 = vdwg.mxu0
    %4512 = vmatprep.subr.bf16.mxu0 %v3521
    %4513 = vmatpush1.bf16.msra.mxu0 %v3520
    %4514 = vmatprep.subr.bf16.mxu0 %v3505
    %4515 = vmatpush1.bf16.msra.mxu0 %v3504
    %4516 = vmatprep.subr.bf16.mxu0 %v3489
    %4517 = vmatpush1.bf16.msra.mxu0 %v3488
    %4518 = vmatprep.subr.bf16.mxu0 %v3473
    %4519 = vmatpush1.bf16.msra.mxu0 %v3472
    %4520 = vmatprep.subr.bf16.mxu0 %v3457
    %4521 = vmatpush1.bf16.msra.mxu0 %v3456
    %4522 = vmatprep.subr.bf16.mxu0 %v3441
    %4523 = vmatpush1.bf16.msra.mxu0 %v3440
    %4524 = vmatprep.subr.bf16.mxu0 %v3425
    %4525 = vmatpush1.bf16.msra.mxu0 %v3424
    %4526 = vmatprep.subr.bf16.mxu0 %v3409
    %4527 = vmatpush1.bf16.msra.mxu0 %v3408
    %4528 = vmatprep.subr.bf16.mxu0 %v3649
    %4529 = vmatpush2.bf16.msra.mxu0 %v3648
    %4530 = vmatprep.subr.bf16.mxu0 %v3633
    %4531 = vmatpush2.bf16.msra.mxu0 %v3632
    %4532 = vmatprep.subr.bf16.mxu0 %v3617
    %4533 = vmatpush2.bf16.msra.mxu0 %v3616
    %4534 = vmatprep.subr.bf16.mxu0 %v3601
    %4535 = vmatpush2.bf16.msra.mxu0 %v3600
    %4536 = vmatprep.subr.bf16.mxu0 %v3585
    %4537 = vmatpush2.bf16.msra.mxu0 %v3584
    %4538 = vmatprep.subr.bf16.mxu0 %v3569
    %4539 = vmatpush2.bf16.msra.mxu0 %v3568
    %4540 = vmatprep.subr.bf16.mxu0 %v3553
    %4541 = vmatpush2.bf16.msra.mxu0 %v3552
    %4542 = vmatprep.subr.bf16.mxu0 %v3537
    %4543 = vmatpush2.bf16.msra.mxu0 %v3536
    %4544 = vmatprep.mubr.bf16.mxu0 %v1271
    %4545 = vmatmul.mubr.bf16.gmra.mxu0 %v1270
    %v4546 = vpop.f32.mrf.mxu0
    %v4547 = vadd.f32 %v1801, %v4546
    %v4548 = vpop.f32.mrf.mxu0
    %v4549 = vadd.f32 %v1805, %v4548
    %v4550 = vpop.f32.mrf.mxu0
    %v4551 = vpop.f32.mrf.mxu0
    %4552 = vdwg.mxu0
    %4553 = vmatprep.subr.bf16.mxu0 %v3777
    %4554 = vmatpush1.bf16.msra.mxu0 %v3776
    %4555 = vmatprep.subr.bf16.mxu0 %v3761
    %4556 = vmatpush1.bf16.msra.mxu0 %v3760
    %4557 = vmatprep.subr.bf16.mxu0 %v3745
    %4558 = vmatpush1.bf16.msra.mxu0 %v3744
    %4559 = vmatprep.subr.bf16.mxu0 %v3729
    %4560 = vmatpush1.bf16.msra.mxu0 %v3728
    %4561 = vmatprep.subr.bf16.mxu0 %v3713
    %4562 = vmatpush1.bf16.msra.mxu0 %v3712
    %4563 = vmatprep.subr.bf16.mxu0 %v3697
    %4564 = vmatpush1.bf16.msra.mxu0 %v3696
    %4565 = vmatprep.subr.bf16.mxu0 %v3681
    %4566 = vmatpush1.bf16.msra.mxu0 %v3680
    %4567 = vmatprep.subr.bf16.mxu0 %v3665
    %4568 = vmatpush1.bf16.msra.mxu0 %v3664
    %4569 = vmatprep.subr.bf16.mxu0 %v3905
    %4570 = vmatpush2.bf16.msra.mxu0 %v3904
    %4571 = vmatprep.subr.bf16.mxu0 %v3889
    %4572 = vmatpush2.bf16.msra.mxu0 %v3888
    %4573 = vmatprep.subr.bf16.mxu0 %v3873
    %4574 = vmatpush2.bf16.msra.mxu0 %v3872
    %4575 = vmatprep.subr.bf16.mxu0 %v3857
    %4576 = vmatpush2.bf16.msra.mxu0 %v3856
    %4577 = vmatprep.subr.bf16.mxu0 %v3841
    %4578 = vmatpush2.bf16.msra.mxu0 %v3840
    %4579 = vmatprep.subr.bf16.mxu0 %v3825
    %4580 = vmatpush2.bf16.msra.mxu0 %v3824
    %4581 = vmatprep.subr.bf16.mxu0 %v3809
    %4582 = vmatpush2.bf16.msra.mxu0 %v3808
    %4583 = vmatprep.subr.bf16.mxu0 %v3793
    %4584 = vmatpush2.bf16.msra.mxu0 %v3792
    %4585 = vmatprep.mubr.bf16.mxu0 %v1273
    %4586 = vmatmul.mubr.bf16.gmra.mxu0 %v1272
    %v4587 = vpop.f32.mrf.mxu0
    %v4588 = vadd.f32 %v4547, %v4587
    %v4589 = vpop.f32.mrf.mxu0
    %v4590 = vadd.f32 %v4549, %v4589
    %v4591 = vpop.f32.mrf.mxu0
    %v4592 = vpop.f32.mrf.mxu0
    %4593 = vdwg.mxu0
    %4594 = vmatprep.subr.bf16.mxu0 %v3523
    %4595 = vmatpush1.bf16.msra.mxu0 %v3522
    %4596 = vmatprep.subr.bf16.mxu0 %v3507
    %4597 = vmatpush1.bf16.msra.mxu0 %v3506
    %4598 = vmatprep.subr.bf16.mxu0 %v3491
    %4599 = vmatpush1.bf16.msra.mxu0 %v3490
    %4600 = vmatprep.subr.bf16.mxu0 %v3475
    %4601 = vmatpush1.bf16.msra.mxu0 %v3474
    %4602 = vmatprep.subr.bf16.mxu0 %v3459
    %4603 = vmatpush1.bf16.msra.mxu0 %v3458
    %4604 = vmatprep.subr.bf16.mxu0 %v3443
    %4605 = vmatpush1.bf16.msra.mxu0 %v3442
    %4606 = vmatprep.subr.bf16.mxu0 %v3427
    %4607 = vmatpush1.bf16.msra.mxu0 %v3426
    %4608 = vmatprep.subr.bf16.mxu0 %v3411
    %4609 = vmatpush1.bf16.msra.mxu0 %v3410
    %4610 = vmatprep.subr.bf16.mxu0 %v3651
    %4611 = vmatpush2.bf16.msra.mxu0 %v3650
    %4612 = vmatprep.subr.bf16.mxu0 %v3635
    %4613 = vmatpush2.bf16.msra.mxu0 %v3634
    %4614 = vmatprep.subr.bf16.mxu0 %v3619
    %4615 = vmatpush2.bf16.msra.mxu0 %v3618
    %4616 = vmatprep.subr.bf16.mxu0 %v3603
    %4617 = vmatpush2.bf16.msra.mxu0 %v3602
    %4618 = vmatprep.subr.bf16.mxu0 %v3587
    %4619 = vmatpush2.bf16.msra.mxu0 %v3586
    %4620 = vmatprep.subr.bf16.mxu0 %v3571
    %4621 = vmatpush2.bf16.msra.mxu0 %v3570
    %4622 = vmatprep.subr.bf16.mxu0 %v3555
    %4623 = vmatpush2.bf16.msra.mxu0 %v3554
    %4624 = vmatprep.subr.bf16.mxu0 %v3539
    %4625 = vmatpush2.bf16.msra.mxu0 %v3538
    %4626 = vmatprep.mubr.bf16.mxu0 %v1271
    %4627 = vmatmul.mubr.bf16.gmra.mxu0 %v1270
    %v4628 = vpop.f32.mrf.mxu0
    %v4629 = vadd.f32 %v1809, %v4628
    %v4630 = vpop.f32.mrf.mxu0
    %v4631 = vadd.f32 %v1813, %v4630
    %v4632 = vpop.f32.mrf.mxu0
    %v4633 = vpop.f32.mrf.mxu0
    %4634 = vdwg.mxu0
    %4635 = vmatprep.subr.bf16.mxu0 %v3779
    %4636 = vmatpush1.bf16.msra.mxu0 %v3778
    %4637 = vmatprep.subr.bf16.mxu0 %v3763
    %4638 = vmatpush1.bf16.msra.mxu0 %v3762
    %4639 = vmatprep.subr.bf16.mxu0 %v3747
    %4640 = vmatpush1.bf16.msra.mxu0 %v3746
    %4641 = vmatprep.subr.bf16.mxu0 %v3731
    %4642 = vmatpush1.bf16.msra.mxu0 %v3730
    %4643 = vmatprep.subr.bf16.mxu0 %v3715
    %4644 = vmatpush1.bf16.msra.mxu0 %v3714
    %4645 = vmatprep.subr.bf16.mxu0 %v3699
    %4646 = vmatpush1.bf16.msra.mxu0 %v3698
    %4647 = vmatprep.subr.bf16.mxu0 %v3683
    %4648 = vmatpush1.bf16.msra.mxu0 %v3682
    %4649 = vmatprep.subr.bf16.mxu0 %v3667
    %4650 = vmatpush1.bf16.msra.mxu0 %v3666
    %4651 = vmatprep.subr.bf16.mxu0 %v3907
    %4652 = vmatpush2.bf16.msra.mxu0 %v3906
    %4653 = vmatprep.subr.bf16.mxu0 %v3891
    %4654 = vmatpush2.bf16.msra.mxu0 %v3890
    %4655 = vmatprep.subr.bf16.mxu0 %v3875
    %4656 = vmatpush2.bf16.msra.mxu0 %v3874
    %4657 = vmatprep.subr.bf16.mxu0 %v3859
    %4658 = vmatpush2.bf16.msra.mxu0 %v3858
    %4659 = vmatprep.subr.bf16.mxu0 %v3843
    %4660 = vmatpush2.bf16.msra.mxu0 %v3842
    %4661 = vmatprep.subr.bf16.mxu0 %v3827
    %4662 = vmatpush2.bf16.msra.mxu0 %v3826
    %4663 = vmatprep.subr.bf16.mxu0 %v3811
    %4664 = vmatpush2.bf16.msra.mxu0 %v3810
    %4665 = vmatprep.subr.bf16.mxu0 %v3795
    %4666 = vmatpush2.bf16.msra.mxu0 %v3794
    %4667 = vmatprep.mubr.bf16.mxu0 %v1273
    %4668 = vmatmul.mubr.bf16.gmra.mxu0 %v1272
    %v4669 = vpop.f32.mrf.mxu0
    %v4670 = vadd.f32 %v4629, %v4669
    %v4671 = vpop.f32.mrf.mxu0
    %v4672 = vadd.f32 %v4631, %v4671
    %v4673 = vpop.f32.mrf.mxu0
    %v4674 = vpop.f32.mrf.mxu0
    %4675 = vdwg.mxu0
    %4676 = vmatprep.subr.bf16.mxu0 %v3525
    %4677 = vmatpush1.bf16.msra.mxu0 %v3524
    %4678 = vmatprep.subr.bf16.mxu0 %v3509
    %4679 = vmatpush1.bf16.msra.mxu0 %v3508
    %4680 = vmatprep.subr.bf16.mxu0 %v3493
    %4681 = vmatpush1.bf16.msra.mxu0 %v3492
    %4682 = vmatprep.subr.bf16.mxu0 %v3477
    %4683 = vmatpush1.bf16.msra.mxu0 %v3476
    %4684 = vmatprep.subr.bf16.mxu0 %v3461
    %4685 = vmatpush1.bf16.msra.mxu0 %v3460
    %4686 = vmatprep.subr.bf16.mxu0 %v3445
    %4687 = vmatpush1.bf16.msra.mxu0 %v3444
    %4688 = vmatprep.subr.bf16.mxu0 %v3429
    %4689 = vmatpush1.bf16.msra.mxu0 %v3428
    %4690 = vmatprep.subr.bf16.mxu0 %v3413
    %4691 = vmatpush1.bf16.msra.mxu0 %v3412
    %4692 = vmatprep.subr.bf16.mxu0 %v3653
    %4693 = vmatpush2.bf16.msra.mxu0 %v3652
    %4694 = vmatprep.subr.bf16.mxu0 %v3637
    %4695 = vmatpush2.bf16.msra.mxu0 %v3636
    %4696 = vmatprep.subr.bf16.mxu0 %v3621
    %4697 = vmatpush2.bf16.msra.mxu0 %v3620
    %4698 = vmatprep.subr.bf16.mxu0 %v3605
    %4699 = vmatpush2.bf16.msra.mxu0 %v3604
    %4700 = vmatprep.subr.bf16.mxu0 %v3589
    %4701 = vmatpush2.bf16.msra.mxu0 %v3588
    %4702 = vmatprep.subr.bf16.mxu0 %v3573
    %4703 = vmatpush2.bf16.msra.mxu0 %v3572
    %4704 = vmatprep.subr.bf16.mxu0 %v3557
    %4705 = vmatpush2.bf16.msra.mxu0 %v3556
    %4706 = vmatprep.subr.bf16.mxu0 %v3541
    %4707 = vmatpush2.bf16.msra.mxu0 %v3540
    %4708 = vmatprep.mubr.bf16.mxu0 %v1271
    %4709 = vmatmul.mubr.bf16.gmra.mxu0 %v1270
    %v4710 = vpop.f32.mrf.mxu0
    %v4711 = vadd.f32 %v1817, %v4710
    %v4712 = vpop.f32.mrf.mxu0
    %v4713 = vadd.f32 %v1821, %v4712
    %v4714 = vpop.f32.mrf.mxu0
    %v4715 = vpop.f32.mrf.mxu0
    %4716 = vdwg.mxu0
    %4717 = vmatprep.subr.bf16.mxu0 %v3781
    %4718 = vmatpush1.bf16.msra.mxu0 %v3780
    %4719 = vmatprep.subr.bf16.mxu0 %v3765
    %4720 = vmatpush1.bf16.msra.mxu0 %v3764
    %4721 = vmatprep.subr.bf16.mxu0 %v3749
    %4722 = vmatpush1.bf16.msra.mxu0 %v3748
    %4723 = vmatprep.subr.bf16.mxu0 %v3733
    %4724 = vmatpush1.bf16.msra.mxu0 %v3732
    %4725 = vmatprep.subr.bf16.mxu0 %v3717
    %4726 = vmatpush1.bf16.msra.mxu0 %v3716
    %4727 = vmatprep.subr.bf16.mxu0 %v3701
    %4728 = vmatpush1.bf16.msra.mxu0 %v3700
    %4729 = vmatprep.subr.bf16.mxu0 %v3685
    %4730 = vmatpush1.bf16.msra.mxu0 %v3684
    %4731 = vmatprep.subr.bf16.mxu0 %v3669
    %4732 = vmatpush1.bf16.msra.mxu0 %v3668
    %4733 = vmatprep.subr.bf16.mxu0 %v3909
    %4734 = vmatpush2.bf16.msra.mxu0 %v3908
    %4735 = vmatprep.subr.bf16.mxu0 %v3893
    %4736 = vmatpush2.bf16.msra.mxu0 %v3892
    %4737 = vmatprep.subr.bf16.mxu0 %v3877
    %4738 = vmatpush2.bf16.msra.mxu0 %v3876
    %4739 = vmatprep.subr.bf16.mxu0 %v3861
    %4740 = vmatpush2.bf16.msra.mxu0 %v3860
    %4741 = vmatprep.subr.bf16.mxu0 %v3845
    %4742 = vmatpush2.bf16.msra.mxu0 %v3844
    %4743 = vmatprep.subr.bf16.mxu0 %v3829
    %4744 = vmatpush2.bf16.msra.mxu0 %v3828
    %4745 = vmatprep.subr.bf16.mxu0 %v3813
    %4746 = vmatpush2.bf16.msra.mxu0 %v3812
    %4747 = vmatprep.subr.bf16.mxu0 %v3797
    %4748 = vmatpush2.bf16.msra.mxu0 %v3796
    %4749 = vmatprep.mubr.bf16.mxu0 %v1273
    %4750 = vmatmul.mubr.bf16.gmra.mxu0 %v1272
    %v4751 = vpop.f32.mrf.mxu0
    %v4752 = vadd.f32 %v4711, %v4751
    %v4753 = vpop.f32.mrf.mxu0
    %v4754 = vadd.f32 %v4713, %v4753
    %v4755 = vpop.f32.mrf.mxu0
    %v4756 = vpop.f32.mrf.mxu0
    %4757 = vdwg.mxu0
    %4758 = vmatprep.subr.bf16.mxu0 %v3527
    %4759 = vmatpush1.bf16.msra.mxu0 %v3526
    %4760 = vmatprep.subr.bf16.mxu0 %v3511
    %4761 = vmatpush1.bf16.msra.mxu0 %v3510
    %4762 = vmatprep.subr.bf16.mxu0 %v3495
    %4763 = vmatpush1.bf16.msra.mxu0 %v3494
    %4764 = vmatprep.subr.bf16.mxu0 %v3479
    %4765 = vmatpush1.bf16.msra.mxu0 %v3478
    %4766 = vmatprep.subr.bf16.mxu0 %v3463
    %4767 = vmatpush1.bf16.msra.mxu0 %v3462
    %4768 = vmatprep.subr.bf16.mxu0 %v3447
    %4769 = vmatpush1.bf16.msra.mxu0 %v3446
    %4770 = vmatprep.subr.bf16.mxu0 %v3431
    %4771 = vmatpush1.bf16.msra.mxu0 %v3430
    %4772 = vmatprep.subr.bf16.mxu0 %v3415
    %4773 = vmatpush1.bf16.msra.mxu0 %v3414
    %4774 = vmatprep.subr.bf16.mxu0 %v3655
    %4775 = vmatpush2.bf16.msra.mxu0 %v3654
    %4776 = vmatprep.subr.bf16.mxu0 %v3639
    %4777 = vmatpush2.bf16.msra.mxu0 %v3638
    %4778 = vmatprep.subr.bf16.mxu0 %v3623
    %4779 = vmatpush2.bf16.msra.mxu0 %v3622
    %4780 = vmatprep.subr.bf16.mxu0 %v3607
    %4781 = vmatpush2.bf16.msra.mxu0 %v3606
    %4782 = vmatprep.subr.bf16.mxu0 %v3591
    %4783 = vmatpush2.bf16.msra.mxu0 %v3590
    %4784 = vmatprep.subr.bf16.mxu0 %v3575
    %4785 = vmatpush2.bf16.msra.mxu0 %v3574
    %4786 = vmatprep.subr.bf16.mxu0 %v3559
    %4787 = vmatpush2.bf16.msra.mxu0 %v3558
    %4788 = vmatprep.subr.bf16.mxu0 %v3543
    %4789 = vmatpush2.bf16.msra.mxu0 %v3542
    %4790 = vmatprep.mubr.bf16.mxu0 %v1271
    %4791 = vmatmul.mubr.bf16.gmra.mxu0 %v1270
    %v4792 = vpop.f32.mrf.mxu0
    %v4793 = vadd.f32 %v1825, %v4792
    %v4794 = vpop.f32.mrf.mxu0
    %v4795 = vadd.f32 %v1829, %v4794
    %v4796 = vpop.f32.mrf.mxu0
    %v4797 = vpop.f32.mrf.mxu0
    %4798 = vdwg.mxu0
    %4799 = vmatprep.subr.bf16.mxu0 %v3783
    %4800 = vmatpush1.bf16.msra.mxu0 %v3782
    %4801 = vmatprep.subr.bf16.mxu0 %v3767
    %4802 = vmatpush1.bf16.msra.mxu0 %v3766
    %4803 = vmatprep.subr.bf16.mxu0 %v3751
    %4804 = vmatpush1.bf16.msra.mxu0 %v3750
    %4805 = vmatprep.subr.bf16.mxu0 %v3735
    %4806 = vmatpush1.bf16.msra.mxu0 %v3734
    %4807 = vmatprep.subr.bf16.mxu0 %v3719
    %4808 = vmatpush1.bf16.msra.mxu0 %v3718
    %4809 = vmatprep.subr.bf16.mxu0 %v3703
    %4810 = vmatpush1.bf16.msra.mxu0 %v3702
    %4811 = vmatprep.subr.bf16.mxu0 %v3687
    %4812 = vmatpush1.bf16.msra.mxu0 %v3686
    %4813 = vmatprep.subr.bf16.mxu0 %v3671
    %4814 = vmatpush1.bf16.msra.mxu0 %v3670
    %4815 = vmatprep.subr.bf16.mxu0 %v3911
    %4816 = vmatpush2.bf16.msra.mxu0 %v3910
    %4817 = vmatprep.subr.bf16.mxu0 %v3895
    %4818 = vmatpush2.bf16.msra.mxu0 %v3894
    %4819 = vmatprep.subr.bf16.mxu0 %v3879
    %4820 = vmatpush2.bf16.msra.mxu0 %v3878
    %4821 = vmatprep.subr.bf16.mxu0 %v3863
    %4822 = vmatpush2.bf16.msra.mxu0 %v3862
    %4823 = vmatprep.subr.bf16.mxu0 %v3847
    %4824 = vmatpush2.bf16.msra.mxu0 %v3846
    %4825 = vmatprep.subr.bf16.mxu0 %v3831
    %4826 = vmatpush2.bf16.msra.mxu0 %v3830
    %4827 = vmatprep.subr.bf16.mxu0 %v3815
    %4828 = vmatpush2.bf16.msra.mxu0 %v3814
    %4829 = vmatprep.subr.bf16.mxu0 %v3799
    %4830 = vmatpush2.bf16.msra.mxu0 %v3798
    %4831 = vmatprep.mubr.bf16.mxu0 %v1273
    %4832 = vmatmul.mubr.bf16.gmra.mxu0 %v1272
    %v4833 = vpop.f32.mrf.mxu0
    %v4834 = vadd.f32 %v4793, %v4833
    %v4835 = vpop.f32.mrf.mxu0
    %v4836 = vadd.f32 %v4795, %v4835
    %v4837 = vpop.f32.mrf.mxu0
    %v4838 = vpop.f32.mrf.mxu0
    %4839 = vdwg.mxu0
    %4840 = vmatprep.subr.bf16.mxu0 %v3529
    %4841 = vmatpush1.bf16.msra.mxu0 %v3528
    %4842 = vmatprep.subr.bf16.mxu0 %v3513
    %4843 = vmatpush1.bf16.msra.mxu0 %v3512
    %4844 = vmatprep.subr.bf16.mxu0 %v3497
    %4845 = vmatpush1.bf16.msra.mxu0 %v3496
    %4846 = vmatprep.subr.bf16.mxu0 %v3481
    %4847 = vmatpush1.bf16.msra.mxu0 %v3480
    %4848 = vmatprep.subr.bf16.mxu0 %v3465
    %4849 = vmatpush1.bf16.msra.mxu0 %v3464
    %4850 = vmatprep.subr.bf16.mxu0 %v3449
    %4851 = vmatpush1.bf16.msra.mxu0 %v3448
    %4852 = vmatprep.subr.bf16.mxu0 %v3433
    %4853 = vmatpush1.bf16.msra.mxu0 %v3432
    %4854 = vmatprep.subr.bf16.mxu0 %v3417
    %4855 = vmatpush1.bf16.msra.mxu0 %v3416
    %4856 = vmatprep.subr.bf16.mxu0 %v3657
    %4857 = vmatpush2.bf16.msra.mxu0 %v3656
    %4858 = vmatprep.subr.bf16.mxu0 %v3641
    %4859 = vmatpush2.bf16.msra.mxu0 %v3640
    %4860 = vmatprep.subr.bf16.mxu0 %v3625
    %4861 = vmatpush2.bf16.msra.mxu0 %v3624
    %4862 = vmatprep.subr.bf16.mxu0 %v3609
    %4863 = vmatpush2.bf16.msra.mxu0 %v3608
    %4864 = vmatprep.subr.bf16.mxu0 %v3593
    %4865 = vmatpush2.bf16.msra.mxu0 %v3592
    %4866 = vmatprep.subr.bf16.mxu0 %v3577
    %4867 = vmatpush2.bf16.msra.mxu0 %v3576
    %4868 = vmatprep.subr.bf16.mxu0 %v3561
    %4869 = vmatpush2.bf16.msra.mxu0 %v3560
    %4870 = vmatprep.subr.bf16.mxu0 %v3545
    %4871 = vmatpush2.bf16.msra.mxu0 %v3544
    %4872 = vmatprep.mubr.bf16.mxu0 %v1271
    %4873 = vmatmul.mubr.bf16.gmra.mxu0 %v1270
    %v4874 = vpop.f32.mrf.mxu0
    %v4875 = vadd.f32 %v1833, %v4874
    %v4876 = vpop.f32.mrf.mxu0
    %v4877 = vadd.f32 %v1837, %v4876
    %v4878 = vpop.f32.mrf.mxu0
    %v4879 = vpop.f32.mrf.mxu0
    %4880 = vdwg.mxu0
    %4881 = vmatprep.subr.bf16.mxu0 %v3785
    %4882 = vmatpush1.bf16.msra.mxu0 %v3784
    %4883 = vmatprep.subr.bf16.mxu0 %v3769
    %4884 = vmatpush1.bf16.msra.mxu0 %v3768
    %4885 = vmatprep.subr.bf16.mxu0 %v3753
    %4886 = vmatpush1.bf16.msra.mxu0 %v3752
    %4887 = vmatprep.subr.bf16.mxu0 %v3737
    %4888 = vmatpush1.bf16.msra.mxu0 %v3736
    %4889 = vmatprep.subr.bf16.mxu0 %v3721
    %4890 = vmatpush1.bf16.msra.mxu0 %v3720
    %4891 = vmatprep.subr.bf16.mxu0 %v3705
    %4892 = vmatpush1.bf16.msra.mxu0 %v3704
    %4893 = vmatprep.subr.bf16.mxu0 %v3689
    %4894 = vmatpush1.bf16.msra.mxu0 %v3688
    %4895 = vmatprep.subr.bf16.mxu0 %v3673
    %4896 = vmatpush1.bf16.msra.mxu0 %v3672
    %4897 = vmatprep.subr.bf16.mxu0 %v3913
    %4898 = vmatpush2.bf16.msra.mxu0 %v3912
    %4899 = vmatprep.subr.bf16.mxu0 %v3897
    %4900 = vmatpush2.bf16.msra.mxu0 %v3896
    %4901 = vmatprep.subr.bf16.mxu0 %v3881
    %4902 = vmatpush2.bf16.msra.mxu0 %v3880
    %4903 = vmatprep.subr.bf16.mxu0 %v3865
    %4904 = vmatpush2.bf16.msra.mxu0 %v3864
    %4905 = vmatprep.subr.bf16.mxu0 %v3849
    %4906 = vmatpush2.bf16.msra.mxu0 %v3848
    %4907 = vmatprep.subr.bf16.mxu0 %v3833
    %4908 = vmatpush2.bf16.msra.mxu0 %v3832
    %4909 = vmatprep.subr.bf16.mxu0 %v3817
    %4910 = vmatpush2.bf16.msra.mxu0 %v3816
    %4911 = vmatprep.subr.bf16.mxu0 %v3801
    %4912 = vmatpush2.bf16.msra.mxu0 %v3800
    %4913 = vmatprep.mubr.bf16.mxu0 %v1273
    %4914 = vmatmul.mubr.bf16.gmra.mxu0 %v1272
    %v4915 = vpop.f32.mrf.mxu0
    %v4916 = vadd.f32 %v4875, %v4915
    %v4917 = vpop.f32.mrf.mxu0
    %v4918 = vadd.f32 %v4877, %v4917
    %v4919 = vpop.f32.mrf.mxu0
    %v4920 = vpop.f32.mrf.mxu0
    %4921 = vdwg.mxu0
    %4922 = vmatprep.subr.bf16.mxu0 %v3531
    %4923 = vmatpush1.bf16.msra.mxu0 %v3530
    %4924 = vmatprep.subr.bf16.mxu0 %v3515
    %4925 = vmatpush1.bf16.msra.mxu0 %v3514
    %4926 = vmatprep.subr.bf16.mxu0 %v3499
    %4927 = vmatpush1.bf16.msra.mxu0 %v3498
    %4928 = vmatprep.subr.bf16.mxu0 %v3483
    %4929 = vmatpush1.bf16.msra.mxu0 %v3482
    %4930 = vmatprep.subr.bf16.mxu0 %v3467
    %4931 = vmatpush1.bf16.msra.mxu0 %v3466
    %4932 = vmatprep.subr.bf16.mxu0 %v3451
    %4933 = vmatpush1.bf16.msra.mxu0 %v3450
    %4934 = vmatprep.subr.bf16.mxu0 %v3435
    %4935 = vmatpush1.bf16.msra.mxu0 %v3434
    %4936 = vmatprep.subr.bf16.mxu0 %v3419
    %4937 = vmatpush1.bf16.msra.mxu0 %v3418
    %4938 = vmatprep.subr.bf16.mxu0 %v3659
    %4939 = vmatpush2.bf16.msra.mxu0 %v3658
    %4940 = vmatprep.subr.bf16.mxu0 %v3643
    %4941 = vmatpush2.bf16.msra.mxu0 %v3642
    %4942 = vmatprep.subr.bf16.mxu0 %v3627
    %4943 = vmatpush2.bf16.msra.mxu0 %v3626
    %4944 = vmatprep.subr.bf16.mxu0 %v3611
    %4945 = vmatpush2.bf16.msra.mxu0 %v3610
    %4946 = vmatprep.subr.bf16.mxu0 %v3595
    %4947 = vmatpush2.bf16.msra.mxu0 %v3594
    %4948 = vmatprep.subr.bf16.mxu0 %v3579
    %4949 = vmatpush2.bf16.msra.mxu0 %v3578
    %4950 = vmatprep.subr.bf16.mxu0 %v3563
    %4951 = vmatpush2.bf16.msra.mxu0 %v3562
    %4952 = vmatprep.subr.bf16.mxu0 %v3547
    %4953 = vmatpush2.bf16.msra.mxu0 %v3546
    %4954 = vmatprep.mubr.bf16.mxu0 %v1271
    %4955 = vmatmul.mubr.bf16.gmra.mxu0 %v1270
    %v4956 = vpop.f32.mrf.mxu0
    %v4957 = vadd.f32 %v1841, %v4956
    %v4958 = vpop.f32.mrf.mxu0
    %v4959 = vadd.f32 %v1845, %v4958
    %v4960 = vpop.f32.mrf.mxu0
    %v4961 = vpop.f32.mrf.mxu0
    %4962 = vdwg.mxu0
    %4963 = vmatprep.subr.bf16.mxu0 %v3787
    %4964 = vmatpush1.bf16.msra.mxu0 %v3786
    %4965 = vmatprep.subr.bf16.mxu0 %v3771
    %4966 = vmatpush1.bf16.msra.mxu0 %v3770
    %4967 = vmatprep.subr.bf16.mxu0 %v3755
    %4968 = vmatpush1.bf16.msra.mxu0 %v3754
    %4969 = vmatprep.subr.bf16.mxu0 %v3739
    %4970 = vmatpush1.bf16.msra.mxu0 %v3738
    %4971 = vmatprep.subr.bf16.mxu0 %v3723
    %4972 = vmatpush1.bf16.msra.mxu0 %v3722
    %4973 = vmatprep.subr.bf16.mxu0 %v3707
    %4974 = vmatpush1.bf16.msra.mxu0 %v3706
    %4975 = vmatprep.subr.bf16.mxu0 %v3691
    %4976 = vmatpush1.bf16.msra.mxu0 %v3690
    %4977 = vmatprep.subr.bf16.mxu0 %v3675
    %4978 = vmatpush1.bf16.msra.mxu0 %v3674
    %4979 = vmatprep.subr.bf16.mxu0 %v3915
    %4980 = vmatpush2.bf16.msra.mxu0 %v3914
    %4981 = vmatprep.subr.bf16.mxu0 %v3899
    %4982 = vmatpush2.bf16.msra.mxu0 %v3898
    %4983 = vmatprep.subr.bf16.mxu0 %v3883
    %4984 = vmatpush2.bf16.msra.mxu0 %v3882
    %4985 = vmatprep.subr.bf16.mxu0 %v3867
    %4986 = vmatpush2.bf16.msra.mxu0 %v3866
    %4987 = vmatprep.subr.bf16.mxu0 %v3851
    %4988 = vmatpush2.bf16.msra.mxu0 %v3850
    %4989 = vmatprep.subr.bf16.mxu0 %v3835
    %4990 = vmatpush2.bf16.msra.mxu0 %v3834
    %4991 = vmatprep.subr.bf16.mxu0 %v3819
    %4992 = vmatpush2.bf16.msra.mxu0 %v3818
    %4993 = vmatprep.subr.bf16.mxu0 %v3803
    %4994 = vmatpush2.bf16.msra.mxu0 %v3802
    %4995 = vmatprep.mubr.bf16.mxu0 %v1273
    %4996 = vmatmul.mubr.bf16.gmra.mxu0 %v1272
    %v4997 = vpop.f32.mrf.mxu0
    %v4998 = vadd.f32 %v4957, %v4997
    %v4999 = vpop.f32.mrf.mxu0
    %v5000 = vadd.f32 %v4959, %v4999
    %v5001 = vpop.f32.mrf.mxu0
    %v5002 = vpop.f32.mrf.mxu0
    %5003 = vdwg.mxu0
    %5004 = vmatprep.subr.bf16.mxu0 %v3533
    %5005 = vmatpush1.bf16.msra.mxu0 %v3532
    %5006 = vmatprep.subr.bf16.mxu0 %v3517
    %5007 = vmatpush1.bf16.msra.mxu0 %v3516
    %5008 = vmatprep.subr.bf16.mxu0 %v3501
    %5009 = vmatpush1.bf16.msra.mxu0 %v3500
    %5010 = vmatprep.subr.bf16.mxu0 %v3485
    %5011 = vmatpush1.bf16.msra.mxu0 %v3484
    %5012 = vmatprep.subr.bf16.mxu0 %v3469
    %5013 = vmatpush1.bf16.msra.mxu0 %v3468
    %5014 = vmatprep.subr.bf16.mxu0 %v3453
    %5015 = vmatpush1.bf16.msra.mxu0 %v3452
    %5016 = vmatprep.subr.bf16.mxu0 %v3437
    %5017 = vmatpush1.bf16.msra.mxu0 %v3436
    %5018 = vmatprep.subr.bf16.mxu0 %v3421
    %5019 = vmatpush1.bf16.msra.mxu0 %v3420
    %5020 = vmatprep.subr.bf16.mxu0 %v3661
    %5021 = vmatpush2.bf16.msra.mxu0 %v3660
    %5022 = vmatprep.subr.bf16.mxu0 %v3645
    %5023 = vmatpush2.bf16.msra.mxu0 %v3644
    %5024 = vmatprep.subr.bf16.mxu0 %v3629
    %5025 = vmatpush2.bf16.msra.mxu0 %v3628
    %5026 = vmatprep.subr.bf16.mxu0 %v3613
    %5027 = vmatpush2.bf16.msra.mxu0 %v3612
    %5028 = vmatprep.subr.bf16.mxu0 %v3597
    %5029 = vmatpush2.bf16.msra.mxu0 %v3596
    %5030 = vmatprep.subr.bf16.mxu0 %v3581
    %5031 = vmatpush2.bf16.msra.mxu0 %v3580
    %5032 = vmatprep.subr.bf16.mxu0 %v3565
    %5033 = vmatpush2.bf16.msra.mxu0 %v3564
    %5034 = vmatprep.subr.bf16.mxu0 %v3549
    %5035 = vmatpush2.bf16.msra.mxu0 %v3548
    %5036 = vmatprep.mubr.bf16.mxu0 %v1271
    %5037 = vmatmul.mubr.bf16.gmra.mxu0 %v1270
    %v5038 = vpop.f32.mrf.mxu0
    %v5039 = vadd.f32 %v1849, %v5038
    %v5040 = vpop.f32.mrf.mxu0
    %v5041 = vadd.f32 %v1853, %v5040
    %v5042 = vpop.f32.mrf.mxu0
    %v5043 = vpop.f32.mrf.mxu0
    %5044 = vdwg.mxu0
    %5045 = vmatprep.subr.bf16.mxu0 %v3789
    %5046 = vmatpush1.bf16.msra.mxu0 %v3788
    %5047 = vmatprep.subr.bf16.mxu0 %v3773
    %5048 = vmatpush1.bf16.msra.mxu0 %v3772
    %5049 = vmatprep.subr.bf16.mxu0 %v3757
    %5050 = vmatpush1.bf16.msra.mxu0 %v3756
    %5051 = vmatprep.subr.bf16.mxu0 %v3741
    %5052 = vmatpush1.bf16.msra.mxu0 %v3740
    %5053 = vmatprep.subr.bf16.mxu0 %v3725
    %5054 = vmatpush1.bf16.msra.mxu0 %v3724
    %5055 = vmatprep.subr.bf16.mxu0 %v3709
    %5056 = vmatpush1.bf16.msra.mxu0 %v3708
    %5057 = vmatprep.subr.bf16.mxu0 %v3693
    %5058 = vmatpush1.bf16.msra.mxu0 %v3692
    %5059 = vmatprep.subr.bf16.mxu0 %v3677
    %5060 = vmatpush1.bf16.msra.mxu0 %v3676
    %5061 = vmatprep.subr.bf16.mxu0 %v3917
    %5062 = vmatpush2.bf16.msra.mxu0 %v3916
    %5063 = vmatprep.subr.bf16.mxu0 %v3901
    %5064 = vmatpush2.bf16.msra.mxu0 %v3900
    %5065 = vmatprep.subr.bf16.mxu0 %v3885
    %5066 = vmatpush2.bf16.msra.mxu0 %v3884
    %5067 = vmatprep.subr.bf16.mxu0 %v3869
    %5068 = vmatpush2.bf16.msra.mxu0 %v3868
    %5069 = vmatprep.subr.bf16.mxu0 %v3853
    %5070 = vmatpush2.bf16.msra.mxu0 %v3852
    %5071 = vmatprep.subr.bf16.mxu0 %v3837
    %5072 = vmatpush2.bf16.msra.mxu0 %v3836
    %5073 = vmatprep.subr.bf16.mxu0 %v3821
    %5074 = vmatpush2.bf16.msra.mxu0 %v3820
    %5075 = vmatprep.subr.bf16.mxu0 %v3805
    %5076 = vmatpush2.bf16.msra.mxu0 %v3804
    %5077 = vmatprep.mubr.bf16.mxu0 %v1273
    %5078 = vmatmul.mubr.bf16.gmra.mxu0 %v1272
    %v5079 = vpop.f32.mrf.mxu0
    %v5080 = vadd.f32 %v5039, %v5079
    %v5081 = vpop.f32.mrf.mxu0
    %v5082 = vadd.f32 %v5041, %v5081
    %v5083 = vpop.f32.mrf.mxu0
    %v5084 = vpop.f32.mrf.mxu0
    %5085 = vdwg.mxu0
    %v5086 = vmax.f32 %v4506, 0.0
    %v5087 = vmax.f32 %v4508, 0.0
    %v5088 = vmax.f32 %v4588, 0.0
    %v5089 = vmax.f32 %v4590, 0.0
    %v5090 = vmax.f32 %v4670, 0.0
    %v5091 = vmax.f32 %v4672, 0.0
    %v5092 = vmax.f32 %v4752, 0.0
    %v5093 = vmax.f32 %v4754, 0.0
    %v5094 = vmax.f32 %v4834, 0.0
    %v5095 = vmax.f32 %v4836, 0.0
    %v5096 = vmax.f32 %v4916, 0.0
    %v5097 = vmax.f32 %v4918, 0.0
    %v5098 = vmax.f32 %v4998, 0.0
    %v5099 = vmax.f32 %v5000, 0.0
    %v5100 = vmax.f32 %v5080, 0.0
    %v5101 = vmax.f32 %v5082, 0.0
    %v5102 = vpack.c.bf16 %v5086, %v5086
    %v5103 = vpack.c.bf16 %v5087, %v5087
    %v5104 = vpack.c.bf16 %v5088, %v5088
    %v5105 = vpack.c.bf16 %v5089, %v5089
    %v5106 = vpack.c.bf16 %v5090, %v5090
    %v5107 = vpack.c.bf16 %v5091, %v5091
    %v5108 = vpack.c.bf16 %v5092, %v5092
    %v5109 = vpack.c.bf16 %v5093, %v5093
    %v5110 = vpack.c.bf16 %v5094, %v5094
    %v5111 = vpack.c.bf16 %v5095, %v5095
    %v5112 = vpack.c.bf16 %v5096, %v5096
    %v5113 = vpack.c.bf16 %v5097, %v5097
    %v5114 = vpack.c.bf16 %v5098, %v5098
    %v5115 = vpack.c.bf16 %v5099, %v5099
    %v5116 = vpack.c.bf16 %v5100, %v5100
    %v5117 = vpack.c.bf16 %v5101, %v5101
    %v5118 = vld [vmem:[#allocation14] sm:$0xf]
    %v5119 = vld [vmem:[#allocation14 + $0x4] sm:$0xf]
    %v5120 = vld [vmem:[#allocation14 + $0x8] sm:$0xf]
    %v5121 = vld [vmem:[#allocation14 + $0xc] sm:$0xf]
    %v5122 = vld [vmem:[#allocation14 + $0x10] sm:$0xf]
    %v5123 = vld [vmem:[#allocation14 + $0x14] sm:$0xf]
    %v5124 = vld [vmem:[#allocation14 + $0x18] sm:$0xf]
    %v5125 = vld [vmem:[#allocation14 + $0x1c] sm:$0xf]
    %v5126 = vld [vmem:[#allocation14 + $0x20] sm:$0xf]
    %v5127 = vld [vmem:[#allocation14 + $0x24] sm:$0xf]
    %v5128 = vld [vmem:[#allocation14 + $0x28] sm:$0xf]
    %v5129 = vld [vmem:[#allocation14 + $0x2c] sm:$0xf]
    %v5130 = vld [vmem:[#allocation14 + $0x30] sm:$0xf]
    %v5131 = vld [vmem:[#allocation14 + $0x34] sm:$0xf]
    %v5132 = vld [vmem:[#allocation14 + $0x38] sm:$0xf]
    %v5133 = vld [vmem:[#allocation14 + $0x3c] sm:$0xf]
    %v5134 = vld [vmem:[#allocation14 + $0x40] sm:$0xf]
    %v5135 = vld [vmem:[#allocation14 + $0x44] sm:$0xf]
    %v5136 = vld [vmem:[#allocation14 + $0x48] sm:$0xf]
    %v5137 = vld [vmem:[#allocation14 + $0x4c] sm:$0xf]
    %v5138 = vld [vmem:[#allocation14 + $0x50] sm:$0xf]
    %v5139 = vld [vmem:[#allocation14 + $0x54] sm:$0xf]
    %v5140 = vld [vmem:[#allocation14 + $0x58] sm:$0xf]
    %v5141 = vld [vmem:[#allocation14 + $0x5c] sm:$0xf]
    %v5142 = vld [vmem:[#allocation14 + $0x60] sm:$0xf]
    %v5143 = vld [vmem:[#allocation14 + $0x64] sm:$0xf]
    %v5144 = vld [vmem:[#allocation14 + $0x68] sm:$0xf]
    %v5145 = vld [vmem:[#allocation14 + $0x6c] sm:$0xf]
    %v5146 = vld [vmem:[#allocation14 + $0x70] sm:$0xf]
    %v5147 = vld [vmem:[#allocation14 + $0x74] sm:$0xf]
    %v5148 = vld [vmem:[#allocation14 + $0x78] sm:$0xf]
    %v5149 = vld [vmem:[#allocation14 + $0x7c] sm:$0xf]
    %v5150 = vld [vmem:[#allocation14 + $0x80] sm:$0xf]
    %v5151 = vld [vmem:[#allocation14 + $0x84] sm:$0xf]
    %v5152 = vld [vmem:[#allocation14 + $0x88] sm:$0xf]
    %v5153 = vld [vmem:[#allocation14 + $0x8c] sm:$0xf]
    %v5154 = vld [vmem:[#allocation14 + $0x90] sm:$0xf]
    %v5155 = vld [vmem:[#allocation14 + $0x94] sm:$0xf]
    %v5156 = vld [vmem:[#allocation14 + $0x98] sm:$0xf]
    %v5157 = vld [vmem:[#allocation14 + $0x9c] sm:$0xf]
    %v5158 = vld [vmem:[#allocation14 + $0xa0] sm:$0xf]
    %v5159 = vld [vmem:[#allocation14 + $0xa4] sm:$0xf]
    %v5160 = vld [vmem:[#allocation14 + $0xa8] sm:$0xf]
    %v5161 = vld [vmem:[#allocation14 + $0xac] sm:$0xf]
    %v5162 = vld [vmem:[#allocation14 + $0xb0] sm:$0xf]
    %v5163 = vld [vmem:[#allocation14 + $0xb4] sm:$0xf]
    %v5164 = vld [vmem:[#allocation14 + $0xb8] sm:$0xf]
    %v5165 = vld [vmem:[#allocation14 + $0xbc] sm:$0xf]
    %v5166 = vld [vmem:[#allocation14 + $0xc0] sm:$0xf]
    %v5167 = vld [vmem:[#allocation14 + $0xc4] sm:$0xf]
    %v5168 = vld [vmem:[#allocation14 + $0xc8] sm:$0xf]
    %v5169 = vld [vmem:[#allocation14 + $0xcc] sm:$0xf]
    %v5170 = vld [vmem:[#allocation14 + $0xd0] sm:$0xf]
    %v5171 = vld [vmem:[#allocation14 + $0xd4] sm:$0xf]
    %v5172 = vld [vmem:[#allocation14 + $0xd8] sm:$0xf]
    %v5173 = vld [vmem:[#allocation14 + $0xdc] sm:$0xf]
    %v5174 = vld [vmem:[#allocation14 + $0xe0] sm:$0xf]
    %v5175 = vld [vmem:[#allocation14 + $0xe4] sm:$0xf]
    %v5176 = vld [vmem:[#allocation14 + $0xe8] sm:$0xf]
    %v5177 = vld [vmem:[#allocation14 + $0xec] sm:$0xf]
    %v5178 = vld [vmem:[#allocation14 + $0xf0] sm:$0xf]
    %v5179 = vld [vmem:[#allocation14 + $0xf4] sm:$0xf]
    %v5180 = vld [vmem:[#allocation14 + $0xf8] sm:$0xf]
    %v5181 = vld [vmem:[#allocation14 + $0xfc] sm:$0xf]
    %v5182 = vld [vmem:[#allocation14 + $0x100] sm:$0xf]
    %v5183 = vld [vmem:[#allocation14 + $0x104] sm:$0xf]
    %v5184 = vld [vmem:[#allocation14 + $0x108] sm:$0xf]
    %v5185 = vld [vmem:[#allocation14 + $0x10c] sm:$0xf]
    %v5186 = vld [vmem:[#allocation14 + $0x110] sm:$0xf]
    %v5187 = vld [vmem:[#allocation14 + $0x114] sm:$0xf]
    %v5188 = vld [vmem:[#allocation14 + $0x118] sm:$0xf]
    %v5189 = vld [vmem:[#allocation14 + $0x11c] sm:$0xf]
    %v5190 = vld [vmem:[#allocation14 + $0x120] sm:$0xf]
    %v5191 = vld [vmem:[#allocation14 + $0x124] sm:$0xf]
    %v5192 = vld [vmem:[#allocation14 + $0x128] sm:$0xf]
    %v5193 = vld [vmem:[#allocation14 + $0x12c] sm:$0xf]
    %v5194 = vld [vmem:[#allocation14 + $0x130] sm:$0xf]
    %v5195 = vld [vmem:[#allocation14 + $0x134] sm:$0xf]
    %v5196 = vld [vmem:[#allocation14 + $0x138] sm:$0xf]
    %v5197 = vld [vmem:[#allocation14 + $0x13c] sm:$0xf]
    %v5198 = vld [vmem:[#allocation14 + $0x140] sm:$0xf]
    %v5199 = vld [vmem:[#allocation14 + $0x144] sm:$0xf]
    %v5200 = vld [vmem:[#allocation14 + $0x148] sm:$0xf]
    %v5201 = vld [vmem:[#allocation14 + $0x14c] sm:$0xf]
    %v5202 = vld [vmem:[#allocation14 + $0x150] sm:$0xf]
    %v5203 = vld [vmem:[#allocation14 + $0x154] sm:$0xf]
    %v5204 = vld [vmem:[#allocation14 + $0x158] sm:$0xf]
    %v5205 = vld [vmem:[#allocation14 + $0x15c] sm:$0xf]
    %v5206 = vld [vmem:[#allocation14 + $0x160] sm:$0xf]
    %v5207 = vld [vmem:[#allocation14 + $0x164] sm:$0xf]
    %v5208 = vld [vmem:[#allocation14 + $0x168] sm:$0xf]
    %v5209 = vld [vmem:[#allocation14 + $0x16c] sm:$0xf]
    %v5210 = vld [vmem:[#allocation14 + $0x170] sm:$0xf]
    %v5211 = vld [vmem:[#allocation14 + $0x174] sm:$0xf]
    %v5212 = vld [vmem:[#allocation14 + $0x178] sm:$0xf]
    %v5213 = vld [vmem:[#allocation14 + $0x17c] sm:$0xf]
    %v5214 = vld [vmem:[#allocation14 + $0x180] sm:$0xf]
    %v5215 = vld [vmem:[#allocation14 + $0x184] sm:$0xf]
    %v5216 = vld [vmem:[#allocation14 + $0x188] sm:$0xf]
    %v5217 = vld [vmem:[#allocation14 + $0x18c] sm:$0xf]
    %v5218 = vld [vmem:[#allocation14 + $0x190] sm:$0xf]
    %v5219 = vld [vmem:[#allocation14 + $0x194] sm:$0xf]
    %v5220 = vld [vmem:[#allocation14 + $0x198] sm:$0xf]
    %v5221 = vld [vmem:[#allocation14 + $0x19c] sm:$0xf]
    %v5222 = vld [vmem:[#allocation14 + $0x1a0] sm:$0xf]
    %v5223 = vld [vmem:[#allocation14 + $0x1a4] sm:$0xf]
    %v5224 = vld [vmem:[#allocation14 + $0x1a8] sm:$0xf]
    %v5225 = vld [vmem:[#allocation14 + $0x1ac] sm:$0xf]
    %v5226 = vld [vmem:[#allocation14 + $0x1b0] sm:$0xf]
    %v5227 = vld [vmem:[#allocation14 + $0x1b4] sm:$0xf]
    %v5228 = vld [vmem:[#allocation14 + $0x1b8] sm:$0xf]
    %v5229 = vld [vmem:[#allocation14 + $0x1bc] sm:$0xf]
    %v5230 = vld [vmem:[#allocation14 + $0x1c0] sm:$0xf]
    %v5231 = vld [vmem:[#allocation14 + $0x1c4] sm:$0xf]
    %v5232 = vld [vmem:[#allocation14 + $0x1c8] sm:$0xf]
    %v5233 = vld [vmem:[#allocation14 + $0x1cc] sm:$0xf]
    %v5234 = vld [vmem:[#allocation14 + $0x1d0] sm:$0xf]
    %v5235 = vld [vmem:[#allocation14 + $0x1d4] sm:$0xf]
    %v5236 = vld [vmem:[#allocation14 + $0x1d8] sm:$0xf]
    %v5237 = vld [vmem:[#allocation14 + $0x1dc] sm:$0xf]
    %v5238 = vld [vmem:[#allocation14 + $0x1e0] sm:$0xf]
    %v5239 = vld [vmem:[#allocation14 + $0x1e4] sm:$0xf]
    %v5240 = vld [vmem:[#allocation14 + $0x1e8] sm:$0xf]
    %v5241 = vld [vmem:[#allocation14 + $0x1ec] sm:$0xf]
    %v5242 = vld [vmem:[#allocation14 + $0x1f0] sm:$0xf]
    %v5243 = vld [vmem:[#allocation14 + $0x1f4] sm:$0xf]
    %v5244 = vld [vmem:[#allocation14 + $0x1f8] sm:$0xf]
    %v5245 = vld [vmem:[#allocation14 + $0x1fc] sm:$0xf]
    %v5246 = vld [vmem:[#allocation14 + $0x200] sm:$0xf]
    %v5247 = vld [vmem:[#allocation14 + $0x204] sm:$0xf]
    %v5248 = vld [vmem:[#allocation14 + $0x208] sm:$0xf]
    %v5249 = vld [vmem:[#allocation14 + $0x20c] sm:$0xf]
    %v5250 = vld [vmem:[#allocation14 + $0x210] sm:$0xf]
    %v5251 = vld [vmem:[#allocation14 + $0x214] sm:$0xf]
    %v5252 = vld [vmem:[#allocation14 + $0x218] sm:$0xf]
    %v5253 = vld [vmem:[#allocation14 + $0x21c] sm:$0xf]
    %v5254 = vld [vmem:[#allocation14 + $0x220] sm:$0xf]
    %v5255 = vld [vmem:[#allocation14 + $0x224] sm:$0xf]
    %v5256 = vld [vmem:[#allocation14 + $0x228] sm:$0xf]
    %v5257 = vld [vmem:[#allocation14 + $0x22c] sm:$0xf]
    %v5258 = vld [vmem:[#allocation14 + $0x230] sm:$0xf]
    %v5259 = vld [vmem:[#allocation14 + $0x234] sm:$0xf]
    %v5260 = vld [vmem:[#allocation14 + $0x238] sm:$0xf]
    %v5261 = vld [vmem:[#allocation14 + $0x23c] sm:$0xf]
    %v5262 = vld [vmem:[#allocation14 + $0x240] sm:$0xf]
    %v5263 = vld [vmem:[#allocation14 + $0x244] sm:$0xf]
    %v5264 = vld [vmem:[#allocation14 + $0x248] sm:$0xf]
    %v5265 = vld [vmem:[#allocation14 + $0x24c] sm:$0xf]
    %v5266 = vld [vmem:[#allocation14 + $0x250] sm:$0xf]
    %v5267 = vld [vmem:[#allocation14 + $0x254] sm:$0xf]
    %v5268 = vld [vmem:[#allocation14 + $0x258] sm:$0xf]
    %v5269 = vld [vmem:[#allocation14 + $0x25c] sm:$0xf]
    %v5270 = vld [vmem:[#allocation14 + $0x260] sm:$0xf]
    %v5271 = vld [vmem:[#allocation14 + $0x264] sm:$0xf]
    %v5272 = vld [vmem:[#allocation14 + $0x268] sm:$0xf]
    %v5273 = vld [vmem:[#allocation14 + $0x26c] sm:$0xf]
    %v5274 = vld [vmem:[#allocation14 + $0x270] sm:$0xf]
    %v5275 = vld [vmem:[#allocation14 + $0x274] sm:$0xf]
    %v5276 = vld [vmem:[#allocation14 + $0x278] sm:$0xf]
    %v5277 = vld [vmem:[#allocation14 + $0x27c] sm:$0xf]
    %v5278 = vld [vmem:[#allocation14 + $0x280] sm:$0xf]
    %v5279 = vld [vmem:[#allocation14 + $0x284] sm:$0xf]
    %v5280 = vld [vmem:[#allocation14 + $0x288] sm:$0xf]
    %v5281 = vld [vmem:[#allocation14 + $0x28c] sm:$0xf]
    %v5282 = vld [vmem:[#allocation14 + $0x290] sm:$0xf]
    %v5283 = vld [vmem:[#allocation14 + $0x294] sm:$0xf]
    %v5284 = vld [vmem:[#allocation14 + $0x298] sm:$0xf]
    %v5285 = vld [vmem:[#allocation14 + $0x29c] sm:$0xf]
    %v5286 = vld [vmem:[#allocation14 + $0x2a0] sm:$0xf]
    %v5287 = vld [vmem:[#allocation14 + $0x2a4] sm:$0xf]
    %v5288 = vld [vmem:[#allocation14 + $0x2a8] sm:$0xf]
    %v5289 = vld [vmem:[#allocation14 + $0x2ac] sm:$0xf]
    %v5290 = vld [vmem:[#allocation14 + $0x2b0] sm:$0xf]
    %v5291 = vld [vmem:[#allocation14 + $0x2b4] sm:$0xf]
    %v5292 = vld [vmem:[#allocation14 + $0x2b8] sm:$0xf]
    %v5293 = vld [vmem:[#allocation14 + $0x2bc] sm:$0xf]
    %v5294 = vld [vmem:[#allocation14 + $0x2c0] sm:$0xf]
    %v5295 = vld [vmem:[#allocation14 + $0x2c4] sm:$0xf]
    %v5296 = vld [vmem:[#allocation14 + $0x2c8] sm:$0xf]
    %v5297 = vld [vmem:[#allocation14 + $0x2cc] sm:$0xf]
    %v5298 = vld [vmem:[#allocation14 + $0x2d0] sm:$0xf]
    %v5299 = vld [vmem:[#allocation14 + $0x2d4] sm:$0xf]
    %v5300 = vld [vmem:[#allocation14 + $0x2d8] sm:$0xf]
    %v5301 = vld [vmem:[#allocation14 + $0x2dc] sm:$0xf]
    %v5302 = vld [vmem:[#allocation14 + $0x2e0] sm:$0xf]
    %v5303 = vld [vmem:[#allocation14 + $0x2e4] sm:$0xf]
    %v5304 = vld [vmem:[#allocation14 + $0x2e8] sm:$0xf]
    %v5305 = vld [vmem:[#allocation14 + $0x2ec] sm:$0xf]
    %v5306 = vld [vmem:[#allocation14 + $0x2f0] sm:$0xf]
    %v5307 = vld [vmem:[#allocation14 + $0x2f4] sm:$0xf]
    %v5308 = vld [vmem:[#allocation14 + $0x2f8] sm:$0xf]
    %v5309 = vld [vmem:[#allocation14 + $0x2fc] sm:$0xf]
    %v5310 = vld [vmem:[#allocation14 + $0x300] sm:$0xf]
    %v5311 = vld [vmem:[#allocation14 + $0x304] sm:$0xf]
    %v5312 = vld [vmem:[#allocation14 + $0x308] sm:$0xf]
    %v5313 = vld [vmem:[#allocation14 + $0x30c] sm:$0xf]
    %v5314 = vld [vmem:[#allocation14 + $0x310] sm:$0xf]
    %v5315 = vld [vmem:[#allocation14 + $0x314] sm:$0xf]
    %v5316 = vld [vmem:[#allocation14 + $0x318] sm:$0xf]
    %v5317 = vld [vmem:[#allocation14 + $0x31c] sm:$0xf]
    %v5318 = vld [vmem:[#allocation14 + $0x320] sm:$0xf]
    %v5319 = vld [vmem:[#allocation14 + $0x324] sm:$0xf]
    %v5320 = vld [vmem:[#allocation14 + $0x328] sm:$0xf]
    %v5321 = vld [vmem:[#allocation14 + $0x32c] sm:$0xf]
    %v5322 = vld [vmem:[#allocation14 + $0x330] sm:$0xf]
    %v5323 = vld [vmem:[#allocation14 + $0x334] sm:$0xf]
    %v5324 = vld [vmem:[#allocation14 + $0x338] sm:$0xf]
    %v5325 = vld [vmem:[#allocation14 + $0x33c] sm:$0xf]
    %v5326 = vld [vmem:[#allocation14 + $0x340] sm:$0xf]
    %v5327 = vld [vmem:[#allocation14 + $0x344] sm:$0xf]
    %v5328 = vld [vmem:[#allocation14 + $0x348] sm:$0xf]
    %v5329 = vld [vmem:[#allocation14 + $0x34c] sm:$0xf]
    %v5330 = vld [vmem:[#allocation14 + $0x350] sm:$0xf]
    %v5331 = vld [vmem:[#allocation14 + $0x354] sm:$0xf]
    %v5332 = vld [vmem:[#allocation14 + $0x358] sm:$0xf]
    %v5333 = vld [vmem:[#allocation14 + $0x35c] sm:$0xf]
    %v5334 = vld [vmem:[#allocation14 + $0x360] sm:$0xf]
    %v5335 = vld [vmem:[#allocation14 + $0x364] sm:$0xf]
    %v5336 = vld [vmem:[#allocation14 + $0x368] sm:$0xf]
    %v5337 = vld [vmem:[#allocation14 + $0x36c] sm:$0xf]
    %v5338 = vld [vmem:[#allocation14 + $0x370] sm:$0xf]
    %v5339 = vld [vmem:[#allocation14 + $0x374] sm:$0xf]
    %v5340 = vld [vmem:[#allocation14 + $0x378] sm:$0xf]
    %v5341 = vld [vmem:[#allocation14 + $0x37c] sm:$0xf]
    %v5342 = vld [vmem:[#allocation14 + $0x380] sm:$0xf]
    %v5343 = vld [vmem:[#allocation14 + $0x384] sm:$0xf]
    %v5344 = vld [vmem:[#allocation14 + $0x388] sm:$0xf]
    %v5345 = vld [vmem:[#allocation14 + $0x38c] sm:$0xf]
    %v5346 = vld [vmem:[#allocation14 + $0x390] sm:$0xf]
    %v5347 = vld [vmem:[#allocation14 + $0x394] sm:$0xf]
    %v5348 = vld [vmem:[#allocation14 + $0x398] sm:$0xf]
    %v5349 = vld [vmem:[#allocation14 + $0x39c] sm:$0xf]
    %v5350 = vld [vmem:[#allocation14 + $0x3a0] sm:$0xf]
    %v5351 = vld [vmem:[#allocation14 + $0x3a4] sm:$0xf]
    %v5352 = vld [vmem:[#allocation14 + $0x3a8] sm:$0xf]
    %v5353 = vld [vmem:[#allocation14 + $0x3ac] sm:$0xf]
    %v5354 = vld [vmem:[#allocation14 + $0x3b0] sm:$0xf]
    %v5355 = vld [vmem:[#allocation14 + $0x3b4] sm:$0xf]
    %v5356 = vld [vmem:[#allocation14 + $0x3b8] sm:$0xf]
    %v5357 = vld [vmem:[#allocation14 + $0x3bc] sm:$0xf]
    %v5358 = vld [vmem:[#allocation14 + $0x3c0] sm:$0xf]
    %v5359 = vld [vmem:[#allocation14 + $0x3c4] sm:$0xf]
    %v5360 = vld [vmem:[#allocation14 + $0x3c8] sm:$0xf]
    %v5361 = vld [vmem:[#allocation14 + $0x3cc] sm:$0xf]
    %v5362 = vld [vmem:[#allocation14 + $0x3d0] sm:$0xf]
    %v5363 = vld [vmem:[#allocation14 + $0x3d4] sm:$0xf]
    %v5364 = vld [vmem:[#allocation14 + $0x3d8] sm:$0xf]
    %v5365 = vld [vmem:[#allocation14 + $0x3dc] sm:$0xf]
    %v5366 = vld [vmem:[#allocation14 + $0x3e0] sm:$0xf]
    %v5367 = vld [vmem:[#allocation14 + $0x3e4] sm:$0xf]
    %v5368 = vld [vmem:[#allocation14 + $0x3e8] sm:$0xf]
    %v5369 = vld [vmem:[#allocation14 + $0x3ec] sm:$0xf]
    %v5370 = vld [vmem:[#allocation14 + $0x3f0] sm:$0xf]
    %v5371 = vld [vmem:[#allocation14 + $0x3f4] sm:$0xf]
    %v5372 = vld [vmem:[#allocation14 + $0x3f8] sm:$0xf]
    %v5373 = vld [vmem:[#allocation14 + $0x3fc] sm:$0xf]
    %v5374 = vld [vmem:[#allocation16] sm:$0x1]
    %v5376 = vlaneseq
    %v5377 = vshrl.u32 %v5376, 7
    %v5378 = vsub.s32 0, %v5377
    %v5379 = vrot.slane %v5374, %v5378
    %v5637 = vunpack.c.l.b16 %v5118
    %v5638 = vunpack.c.l.b16 %v5119
    %v5639 = vunpack.c.l.b16 %v5120
    %v5640 = vunpack.c.l.b16 %v5121
    %v5641 = vunpack.c.l.b16 %v5122
    %v5642 = vunpack.c.l.b16 %v5123
    %v5643 = vunpack.c.l.b16 %v5124
    %v5644 = vunpack.c.l.b16 %v5125
    %v5645 = vunpack.c.l.b16 %v5126
    %v5646 = vunpack.c.l.b16 %v5127
    %v5647 = vunpack.c.l.b16 %v5128
    %v5648 = vunpack.c.l.b16 %v5129
    %v5649 = vunpack.c.l.b16 %v5130
    %v5650 = vunpack.c.l.b16 %v5131
    %v5651 = vunpack.c.l.b16 %v5132
    %v5652 = vunpack.c.l.b16 %v5133
    %v5653 = vunpack.c.l.b16 %v5134
    %v5654 = vunpack.c.l.b16 %v5135
    %v5655 = vunpack.c.l.b16 %v5136
    %v5656 = vunpack.c.l.b16 %v5137
    %v5657 = vunpack.c.l.b16 %v5138
    %v5658 = vunpack.c.l.b16 %v5139
    %v5659 = vunpack.c.l.b16 %v5140
    %v5660 = vunpack.c.l.b16 %v5141
    %v5661 = vunpack.c.l.b16 %v5142
    %v5662 = vunpack.c.l.b16 %v5143
    %v5663 = vunpack.c.l.b16 %v5144
    %v5664 = vunpack.c.l.b16 %v5145
    %v5665 = vunpack.c.l.b16 %v5146
    %v5666 = vunpack.c.l.b16 %v5147
    %v5667 = vunpack.c.l.b16 %v5148
    %v5668 = vunpack.c.l.b16 %v5149
    %v5669 = vunpack.c.l.b16 %v5150
    %v5670 = vunpack.c.l.b16 %v5151
    %v5671 = vunpack.c.l.b16 %v5152
    %v5672 = vunpack.c.l.b16 %v5153
    %v5673 = vunpack.c.l.b16 %v5154
    %v5674 = vunpack.c.l.b16 %v5155
    %v5675 = vunpack.c.l.b16 %v5156
    %v5676 = vunpack.c.l.b16 %v5157
    %v5677 = vunpack.c.l.b16 %v5158
    %v5678 = vunpack.c.l.b16 %v5159
    %v5679 = vunpack.c.l.b16 %v5160
    %v5680 = vunpack.c.l.b16 %v5161
    %v5681 = vunpack.c.l.b16 %v5162
    %v5682 = vunpack.c.l.b16 %v5163
    %v5683 = vunpack.c.l.b16 %v5164
    %v5684 = vunpack.c.l.b16 %v5165
    %v5685 = vunpack.c.l.b16 %v5166
    %v5686 = vunpack.c.l.b16 %v5167
    %v5687 = vunpack.c.l.b16 %v5168
    %v5688 = vunpack.c.l.b16 %v5169
    %v5689 = vunpack.c.l.b16 %v5170
    %v5690 = vunpack.c.l.b16 %v5171
    %v5691 = vunpack.c.l.b16 %v5172
    %v5692 = vunpack.c.l.b16 %v5173
    %v5693 = vunpack.c.l.b16 %v5174
    %v5694 = vunpack.c.l.b16 %v5175
    %v5695 = vunpack.c.l.b16 %v5176
    %v5696 = vunpack.c.l.b16 %v5177
    %v5697 = vunpack.c.l.b16 %v5178
    %v5698 = vunpack.c.l.b16 %v5179
    %v5699 = vunpack.c.l.b16 %v5180
    %v5700 = vunpack.c.l.b16 %v5181
    %v5701 = vunpack.c.l.b16 %v5182
    %v5702 = vunpack.c.l.b16 %v5183
    %v5703 = vunpack.c.l.b16 %v5184
    %v5704 = vunpack.c.l.b16 %v5185
    %v5705 = vunpack.c.l.b16 %v5186
    %v5706 = vunpack.c.l.b16 %v5187
    %v5707 = vunpack.c.l.b16 %v5188
    %v5708 = vunpack.c.l.b16 %v5189
    %v5709 = vunpack.c.l.b16 %v5190
    %v5710 = vunpack.c.l.b16 %v5191
    %v5711 = vunpack.c.l.b16 %v5192
    %v5712 = vunpack.c.l.b16 %v5193
    %v5713 = vunpack.c.l.b16 %v5194
    %v5714 = vunpack.c.l.b16 %v5195
    %v5715 = vunpack.c.l.b16 %v5196
    %v5716 = vunpack.c.l.b16 %v5197
    %v5717 = vunpack.c.l.b16 %v5198
    %v5718 = vunpack.c.l.b16 %v5199
    %v5719 = vunpack.c.l.b16 %v5200
    %v5720 = vunpack.c.l.b16 %v5201
    %v5721 = vunpack.c.l.b16 %v5202
    %v5722 = vunpack.c.l.b16 %v5203
    %v5723 = vunpack.c.l.b16 %v5204
    %v5724 = vunpack.c.l.b16 %v5205
    %v5725 = vunpack.c.l.b16 %v5206
    %v5726 = vunpack.c.l.b16 %v5207
    %v5727 = vunpack.c.l.b16 %v5208
    %v5728 = vunpack.c.l.b16 %v5209
    %v5729 = vunpack.c.l.b16 %v5210
    %v5730 = vunpack.c.l.b16 %v5211
    %v5731 = vunpack.c.l.b16 %v5212
    %v5732 = vunpack.c.l.b16 %v5213
    %v5733 = vunpack.c.l.b16 %v5214
    %v5734 = vunpack.c.l.b16 %v5215
    %v5735 = vunpack.c.l.b16 %v5216
    %v5736 = vunpack.c.l.b16 %v5217
    %v5737 = vunpack.c.l.b16 %v5218
    %v5738 = vunpack.c.l.b16 %v5219
    %v5739 = vunpack.c.l.b16 %v5220
    %v5740 = vunpack.c.l.b16 %v5221
    %v5741 = vunpack.c.l.b16 %v5222
    %v5742 = vunpack.c.l.b16 %v5223
    %v5743 = vunpack.c.l.b16 %v5224
    %v5744 = vunpack.c.l.b16 %v5225
    %v5745 = vunpack.c.l.b16 %v5226
    %v5746 = vunpack.c.l.b16 %v5227
    %v5747 = vunpack.c.l.b16 %v5228
    %v5748 = vunpack.c.l.b16 %v5229
    %v5749 = vunpack.c.l.b16 %v5230
    %v5750 = vunpack.c.l.b16 %v5231
    %v5751 = vunpack.c.l.b16 %v5232
    %v5752 = vunpack.c.l.b16 %v5233
    %v5753 = vunpack.c.l.b16 %v5234
    %v5754 = vunpack.c.l.b16 %v5235
    %v5755 = vunpack.c.l.b16 %v5236
    %v5756 = vunpack.c.l.b16 %v5237
    %v5757 = vunpack.c.l.b16 %v5238
    %v5758 = vunpack.c.l.b16 %v5239
    %v5759 = vunpack.c.l.b16 %v5240
    %v5760 = vunpack.c.l.b16 %v5241
    %v5761 = vunpack.c.l.b16 %v5242
    %v5762 = vunpack.c.l.b16 %v5243
    %v5763 = vunpack.c.l.b16 %v5244
    %v5764 = vunpack.c.l.b16 %v5245
    %v5765 = vunpack.c.l.b16 %v5246
    %v5766 = vunpack.c.l.b16 %v5247
    %v5767 = vunpack.c.l.b16 %v5248
    %v5768 = vunpack.c.l.b16 %v5249
    %v5769 = vunpack.c.l.b16 %v5250
    %v5770 = vunpack.c.l.b16 %v5251
    %v5771 = vunpack.c.l.b16 %v5252
    %v5772 = vunpack.c.l.b16 %v5253
    %v5773 = vunpack.c.l.b16 %v5254
    %v5774 = vunpack.c.l.b16 %v5255
    %v5775 = vunpack.c.l.b16 %v5256
    %v5776 = vunpack.c.l.b16 %v5257
    %v5777 = vunpack.c.l.b16 %v5258
    %v5778 = vunpack.c.l.b16 %v5259
    %v5779 = vunpack.c.l.b16 %v5260
    %v5780 = vunpack.c.l.b16 %v5261
    %v5781 = vunpack.c.l.b16 %v5262
    %v5782 = vunpack.c.l.b16 %v5263
    %v5783 = vunpack.c.l.b16 %v5264
    %v5784 = vunpack.c.l.b16 %v5265
    %v5785 = vunpack.c.l.b16 %v5266
    %v5786 = vunpack.c.l.b16 %v5267
    %v5787 = vunpack.c.l.b16 %v5268
    %v5788 = vunpack.c.l.b16 %v5269
    %v5789 = vunpack.c.l.b16 %v5270
    %v5790 = vunpack.c.l.b16 %v5271
    %v5791 = vunpack.c.l.b16 %v5272
    %v5792 = vunpack.c.l.b16 %v5273
    %v5793 = vunpack.c.l.b16 %v5274
    %v5794 = vunpack.c.l.b16 %v5275
    %v5795 = vunpack.c.l.b16 %v5276
    %v5796 = vunpack.c.l.b16 %v5277
    %v5797 = vunpack.c.l.b16 %v5278
    %v5798 = vunpack.c.l.b16 %v5279
    %v5799 = vunpack.c.l.b16 %v5280
    %v5800 = vunpack.c.l.b16 %v5281
    %v5801 = vunpack.c.l.b16 %v5282
    %v5802 = vunpack.c.l.b16 %v5283
    %v5803 = vunpack.c.l.b16 %v5284
    %v5804 = vunpack.c.l.b16 %v5285
    %v5805 = vunpack.c.l.b16 %v5286
    %v5806 = vunpack.c.l.b16 %v5287
    %v5807 = vunpack.c.l.b16 %v5288
    %v5808 = vunpack.c.l.b16 %v5289
    %v5809 = vunpack.c.l.b16 %v5290
    %v5810 = vunpack.c.l.b16 %v5291
    %v5811 = vunpack.c.l.b16 %v5292
    %v5812 = vunpack.c.l.b16 %v5293
    %v5813 = vunpack.c.l.b16 %v5294
    %v5814 = vunpack.c.l.b16 %v5295
    %v5815 = vunpack.c.l.b16 %v5296
    %v5816 = vunpack.c.l.b16 %v5297
    %v5817 = vunpack.c.l.b16 %v5298
    %v5818 = vunpack.c.l.b16 %v5299
    %v5819 = vunpack.c.l.b16 %v5300
    %v5820 = vunpack.c.l.b16 %v5301
    %v5821 = vunpack.c.l.b16 %v5302
    %v5822 = vunpack.c.l.b16 %v5303
    %v5823 = vunpack.c.l.b16 %v5304
    %v5824 = vunpack.c.l.b16 %v5305
    %v5825 = vunpack.c.l.b16 %v5306
    %v5826 = vunpack.c.l.b16 %v5307
    %v5827 = vunpack.c.l.b16 %v5308
    %v5828 = vunpack.c.l.b16 %v5309
    %v5829 = vunpack.c.l.b16 %v5310
    %v5830 = vunpack.c.l.b16 %v5311
    %v5831 = vunpack.c.l.b16 %v5312
    %v5832 = vunpack.c.l.b16 %v5313
    %v5833 = vunpack.c.l.b16 %v5314
    %v5834 = vunpack.c.l.b16 %v5315
    %v5835 = vunpack.c.l.b16 %v5316
    %v5836 = vunpack.c.l.b16 %v5317
    %v5837 = vunpack.c.l.b16 %v5318
    %v5838 = vunpack.c.l.b16 %v5319
    %v5839 = vunpack.c.l.b16 %v5320
    %v5840 = vunpack.c.l.b16 %v5321
    %v5841 = vunpack.c.l.b16 %v5322
    %v5842 = vunpack.c.l.b16 %v5323
    %v5843 = vunpack.c.l.b16 %v5324
    %v5844 = vunpack.c.l.b16 %v5325
    %v5845 = vunpack.c.l.b16 %v5326
    %v5846 = vunpack.c.l.b16 %v5327
    %v5847 = vunpack.c.l.b16 %v5328
    %v5848 = vunpack.c.l.b16 %v5329
    %v5849 = vunpack.c.l.b16 %v5330
    %v5850 = vunpack.c.l.b16 %v5331
    %v5851 = vunpack.c.l.b16 %v5332
    %v5852 = vunpack.c.l.b16 %v5333
    %v5853 = vunpack.c.l.b16 %v5334
    %v5854 = vunpack.c.l.b16 %v5335
    %v5855 = vunpack.c.l.b16 %v5336
    %v5856 = vunpack.c.l.b16 %v5337
    %v5857 = vunpack.c.l.b16 %v5338
    %v5858 = vunpack.c.l.b16 %v5339
    %v5859 = vunpack.c.l.b16 %v5340
    %v5860 = vunpack.c.l.b16 %v5341
    %v5861 = vunpack.c.l.b16 %v5342
    %v5862 = vunpack.c.l.b16 %v5343
    %v5863 = vunpack.c.l.b16 %v5344
    %v5864 = vunpack.c.l.b16 %v5345
    %v5865 = vunpack.c.l.b16 %v5346
    %v5866 = vunpack.c.l.b16 %v5347
    %v5867 = vunpack.c.l.b16 %v5348
    %v5868 = vunpack.c.l.b16 %v5349
    %v5869 = vunpack.c.l.b16 %v5350
    %v5870 = vunpack.c.l.b16 %v5351
    %v5871 = vunpack.c.l.b16 %v5352
    %v5872 = vunpack.c.l.b16 %v5353
    %v5873 = vunpack.c.l.b16 %v5354
    %v5874 = vunpack.c.l.b16 %v5355
    %v5875 = vunpack.c.l.b16 %v5356
    %v5876 = vunpack.c.l.b16 %v5357
    %v5877 = vunpack.c.l.b16 %v5358
    %v5878 = vunpack.c.l.b16 %v5359
    %v5879 = vunpack.c.l.b16 %v5360
    %v5880 = vunpack.c.l.b16 %v5361
    %v5881 = vunpack.c.l.b16 %v5362
    %v5882 = vunpack.c.l.b16 %v5363
    %v5883 = vunpack.c.l.b16 %v5364
    %v5884 = vunpack.c.l.b16 %v5365
    %v5885 = vunpack.c.l.b16 %v5366
    %v5886 = vunpack.c.l.b16 %v5367
    %v5887 = vunpack.c.l.b16 %v5368
    %v5888 = vunpack.c.l.b16 %v5369
    %v5889 = vunpack.c.l.b16 %v5370
    %v5890 = vunpack.c.l.b16 %v5371
    %v5891 = vunpack.c.l.b16 %v5372
    %v5892 = vunpack.c.l.b16 %v5373
    %v5893 = vpack.c.b16 %v5638, %v5637
    %v5894 = vpack.c.b16 %v5640, %v5639
    %v5895 = vpack.c.b16 %v5642, %v5641
    %v5896 = vpack.c.b16 %v5644, %v5643
    %v5897 = vpack.c.b16 %v5646, %v5645
    %v5898 = vpack.c.b16 %v5648, %v5647
    %v5899 = vpack.c.b16 %v5650, %v5649
    %v5900 = vpack.c.b16 %v5652, %v5651
    %v5901 = vpack.c.b16 %v5654, %v5653
    %v5902 = vpack.c.b16 %v5656, %v5655
    %v5903 = vpack.c.b16 %v5658, %v5657
    %v5904 = vpack.c.b16 %v5660, %v5659
    %v5905 = vpack.c.b16 %v5662, %v5661
    %v5906 = vpack.c.b16 %v5664, %v5663
    %v5907 = vpack.c.b16 %v5666, %v5665
    %v5908 = vpack.c.b16 %v5668, %v5667
    %v5909 = vpack.c.b16 %v5670, %v5669
    %v5910 = vpack.c.b16 %v5672, %v5671
    %v5911 = vpack.c.b16 %v5674, %v5673
    %v5912 = vpack.c.b16 %v5676, %v5675
    %v5913 = vpack.c.b16 %v5678, %v5677
    %v5914 = vpack.c.b16 %v5680, %v5679
    %v5915 = vpack.c.b16 %v5682, %v5681
    %v5916 = vpack.c.b16 %v5684, %v5683
    %v5917 = vpack.c.b16 %v5686, %v5685
    %v5918 = vpack.c.b16 %v5688, %v5687
    %v5919 = vpack.c.b16 %v5690, %v5689
    %v5920 = vpack.c.b16 %v5692, %v5691
    %v5921 = vpack.c.b16 %v5694, %v5693
    %v5922 = vpack.c.b16 %v5696, %v5695
    %v5923 = vpack.c.b16 %v5698, %v5697
    %v5924 = vpack.c.b16 %v5700, %v5699
    %v5925 = vpack.c.b16 %v5702, %v5701
    %v5926 = vpack.c.b16 %v5704, %v5703
    %v5927 = vpack.c.b16 %v5706, %v5705
    %v5928 = vpack.c.b16 %v5708, %v5707
    %v5929 = vpack.c.b16 %v5710, %v5709
    %v5930 = vpack.c.b16 %v5712, %v5711
    %v5931 = vpack.c.b16 %v5714, %v5713
    %v5932 = vpack.c.b16 %v5716, %v5715
    %v5933 = vpack.c.b16 %v5718, %v5717
    %v5934 = vpack.c.b16 %v5720, %v5719
    %v5935 = vpack.c.b16 %v5722, %v5721
    %v5936 = vpack.c.b16 %v5724, %v5723
    %v5937 = vpack.c.b16 %v5726, %v5725
    %v5938 = vpack.c.b16 %v5728, %v5727
    %v5939 = vpack.c.b16 %v5730, %v5729
    %v5940 = vpack.c.b16 %v5732, %v5731
    %v5941 = vpack.c.b16 %v5734, %v5733
    %v5942 = vpack.c.b16 %v5736, %v5735
    %v5943 = vpack.c.b16 %v5738, %v5737
    %v5944 = vpack.c.b16 %v5740, %v5739
    %v5945 = vpack.c.b16 %v5742, %v5741
    %v5946 = vpack.c.b16 %v5744, %v5743
    %v5947 = vpack.c.b16 %v5746, %v5745
    %v5948 = vpack.c.b16 %v5748, %v5747
    %v5949 = vpack.c.b16 %v5750, %v5749
    %v5950 = vpack.c.b16 %v5752, %v5751
    %v5951 = vpack.c.b16 %v5754, %v5753
    %v5952 = vpack.c.b16 %v5756, %v5755
    %v5953 = vpack.c.b16 %v5758, %v5757
    %v5954 = vpack.c.b16 %v5760, %v5759
    %v5955 = vpack.c.b16 %v5762, %v5761
    %v5956 = vpack.c.b16 %v5764, %v5763
    %v5957 = vpack.c.b16 %v5766, %v5765
    %v5958 = vpack.c.b16 %v5768, %v5767
    %v5959 = vpack.c.b16 %v5770, %v5769
    %v5960 = vpack.c.b16 %v5772, %v5771
    %v5961 = vpack.c.b16 %v5774, %v5773
    %v5962 = vpack.c.b16 %v5776, %v5775
    %v5963 = vpack.c.b16 %v5778, %v5777
    %v5964 = vpack.c.b16 %v5780, %v5779
    %v5965 = vpack.c.b16 %v5782, %v5781
    %v5966 = vpack.c.b16 %v5784, %v5783
    %v5967 = vpack.c.b16 %v5786, %v5785
    %v5968 = vpack.c.b16 %v5788, %v5787
    %v5969 = vpack.c.b16 %v5790, %v5789
    %v5970 = vpack.c.b16 %v5792, %v5791
    %v5971 = vpack.c.b16 %v5794, %v5793
    %v5972 = vpack.c.b16 %v5796, %v5795
    %v5973 = vpack.c.b16 %v5798, %v5797
    %v5974 = vpack.c.b16 %v5800, %v5799
    %v5975 = vpack.c.b16 %v5802, %v5801
    %v5976 = vpack.c.b16 %v5804, %v5803
    %v5977 = vpack.c.b16 %v5806, %v5805
    %v5978 = vpack.c.b16 %v5808, %v5807
    %v5979 = vpack.c.b16 %v5810, %v5809
    %v5980 = vpack.c.b16 %v5812, %v5811
    %v5981 = vpack.c.b16 %v5814, %v5813
    %v5982 = vpack.c.b16 %v5816, %v5815
    %v5983 = vpack.c.b16 %v5818, %v5817
    %v5984 = vpack.c.b16 %v5820, %v5819
    %v5985 = vpack.c.b16 %v5822, %v5821
    %v5986 = vpack.c.b16 %v5824, %v5823
    %v5987 = vpack.c.b16 %v5826, %v5825
    %v5988 = vpack.c.b16 %v5828, %v5827
    %v5989 = vpack.c.b16 %v5830, %v5829
    %v5990 = vpack.c.b16 %v5832, %v5831
    %v5991 = vpack.c.b16 %v5834, %v5833
    %v5992 = vpack.c.b16 %v5836, %v5835
    %v5993 = vpack.c.b16 %v5838, %v5837
    %v5994 = vpack.c.b16 %v5840, %v5839
    %v5995 = vpack.c.b16 %v5842, %v5841
    %v5996 = vpack.c.b16 %v5844, %v5843
    %v5997 = vpack.c.b16 %v5846, %v5845
    %v5998 = vpack.c.b16 %v5848, %v5847
    %v5999 = vpack.c.b16 %v5850, %v5849
    %v6000 = vpack.c.b16 %v5852, %v5851
    %v6001 = vpack.c.b16 %v5854, %v5853
    %v6002 = vpack.c.b16 %v5856, %v5855
    %v6003 = vpack.c.b16 %v5858, %v5857
    %v6004 = vpack.c.b16 %v5860, %v5859
    %v6005 = vpack.c.b16 %v5862, %v5861
    %v6006 = vpack.c.b16 %v5864, %v5863
    %v6007 = vpack.c.b16 %v5866, %v5865
    %v6008 = vpack.c.b16 %v5868, %v5867
    %v6009 = vpack.c.b16 %v5870, %v5869
    %v6010 = vpack.c.b16 %v5872, %v5871
    %v6011 = vpack.c.b16 %v5874, %v5873
    %v6012 = vpack.c.b16 %v5876, %v5875
    %v6013 = vpack.c.b16 %v5878, %v5877
    %v6014 = vpack.c.b16 %v5880, %v5879
    %v6015 = vpack.c.b16 %v5882, %v5881
    %v6016 = vpack.c.b16 %v5884, %v5883
    %v6017 = vpack.c.b16 %v5886, %v5885
    %v6018 = vpack.c.b16 %v5888, %v5887
    %v6019 = vpack.c.b16 %v5890, %v5889
    %v6020 = vpack.c.b16 %v5892, %v5891
    %6149 = vmatprep.subr.bf16.mxu0 0
    %6150 = vmatpush1.bf16.msra.mxu0 %v5900
    %6151 = vmatprep.subr.bf16.mxu0 0
    %6152 = vmatpush1.bf16.msra.mxu0 %v5899
    %6153 = vmatprep.subr.bf16.mxu0 0
    %6154 = vmatpush1.bf16.msra.mxu0 %v5898
    %6155 = vmatprep.subr.bf16.mxu0 0
    %6156 = vmatpush1.bf16.msra.mxu0 %v5897
    %6157 = vmatprep.subr.bf16.mxu0 0
    %6158 = vmatpush1.bf16.msra.mxu0 %v5896
    %6159 = vmatprep.subr.bf16.mxu0 0
    %6160 = vmatpush1.bf16.msra.mxu0 %v5895
    %6161 = vmatprep.subr.bf16.mxu0 0
    %6162 = vmatpush1.bf16.msra.mxu0 %v5894
    %6163 = vmatprep.subr.bf16.mxu0 0
    %6164 = vmatpush1.bf16.msra.mxu0 %v5893
    %6165 = vmatprep.subr.bf16.mxu0 0
    %6166 = vmatpush2.bf16.msra.mxu0 %v5908
    %6167 = vmatprep.subr.bf16.mxu0 0
    %6168 = vmatpush2.bf16.msra.mxu0 %v5907
    %6169 = vmatprep.subr.bf16.mxu0 0
    %6170 = vmatpush2.bf16.msra.mxu0 %v5906
    %6171 = vmatprep.subr.bf16.mxu0 0
    %6172 = vmatpush2.bf16.msra.mxu0 %v5905
    %6173 = vmatprep.subr.bf16.mxu0 0
    %6174 = vmatpush2.bf16.msra.mxu0 %v5904
    %6175 = vmatprep.subr.bf16.mxu0 0
    %6176 = vmatpush2.bf16.msra.mxu0 %v5903
    %6177 = vmatprep.subr.bf16.mxu0 0
    %6178 = vmatpush2.bf16.msra.mxu0 %v5902
    %6179 = vmatprep.subr.bf16.mxu0 0
    %6180 = vmatpush2.bf16.msra.mxu0 %v5901
    %6181 = vmatprep.mubr.bf16.mxu0 %v5103
    %6182 = vmatmul.mubr.bf16.gmra.mxu0 %v5102
    %v6183 = vpop.f32.mrf.mxu0
    %v6184 = vadd.f32 %v5379, %v6183
    %v6185 = vpop.f32.mrf.mxu0
    %v6186 = vpop.f32.mrf.mxu0
    %v6187 = vpop.f32.mrf.mxu0
    %6188 = vdwg.mxu0
    %6189 = vmatprep.subr.bf16.mxu0 0
    %6190 = vmatpush1.bf16.msra.mxu0 %v5916
    %6191 = vmatprep.subr.bf16.mxu0 0
    %6192 = vmatpush1.bf16.msra.mxu0 %v5915
    %6193 = vmatprep.subr.bf16.mxu0 0
    %6194 = vmatpush1.bf16.msra.mxu0 %v5914
    %6195 = vmatprep.subr.bf16.mxu0 0
    %6196 = vmatpush1.bf16.msra.mxu0 %v5913
    %6197 = vmatprep.subr.bf16.mxu0 0
    %6198 = vmatpush1.bf16.msra.mxu0 %v5912
    %6199 = vmatprep.subr.bf16.mxu0 0
    %6200 = vmatpush1.bf16.msra.mxu0 %v5911
    %6201 = vmatprep.subr.bf16.mxu0 0
    %6202 = vmatpush1.bf16.msra.mxu0 %v5910
    %6203 = vmatprep.subr.bf16.mxu0 0
    %6204 = vmatpush1.bf16.msra.mxu0 %v5909
    %6205 = vmatprep.subr.bf16.mxu0 0
    %6206 = vmatpush2.bf16.msra.mxu0 %v5924
    %6207 = vmatprep.subr.bf16.mxu0 0
    %6208 = vmatpush2.bf16.msra.mxu0 %v5923
    %6209 = vmatprep.subr.bf16.mxu0 0
    %6210 = vmatpush2.bf16.msra.mxu0 %v5922
    %6211 = vmatprep.subr.bf16.mxu0 0
    %6212 = vmatpush2.bf16.msra.mxu0 %v5921
    %6213 = vmatprep.subr.bf16.mxu0 0
    %6214 = vmatpush2.bf16.msra.mxu0 %v5920
    %6215 = vmatprep.subr.bf16.mxu0 0
    %6216 = vmatpush2.bf16.msra.mxu0 %v5919
    %6217 = vmatprep.subr.bf16.mxu0 0
    %6218 = vmatpush2.bf16.msra.mxu0 %v5918
    %6219 = vmatprep.subr.bf16.mxu0 0
    %6220 = vmatpush2.bf16.msra.mxu0 %v5917
    %6221 = vmatprep.mubr.bf16.mxu0 %v5105
    %6222 = vmatmul.mubr.bf16.gmra.mxu0 %v5104
    %v6223 = vpop.f32.mrf.mxu0
    %v6224 = vadd.f32 %v6184, %v6223
    %v6225 = vpop.f32.mrf.mxu0
    %v6226 = vpop.f32.mrf.mxu0
    %v6227 = vpop.f32.mrf.mxu0
    %6228 = vdwg.mxu0
    %6229 = vmatprep.subr.bf16.mxu0 0
    %6230 = vmatpush1.bf16.msra.mxu0 %v5932
    %6231 = vmatprep.subr.bf16.mxu0 0
    %6232 = vmatpush1.bf16.msra.mxu0 %v5931
    %6233 = vmatprep.subr.bf16.mxu0 0
    %6234 = vmatpush1.bf16.msra.mxu0 %v5930
    %6235 = vmatprep.subr.bf16.mxu0 0
    %6236 = vmatpush1.bf16.msra.mxu0 %v5929
    %6237 = vmatprep.subr.bf16.mxu0 0
    %6238 = vmatpush1.bf16.msra.mxu0 %v5928
    %6239 = vmatprep.subr.bf16.mxu0 0
    %6240 = vmatpush1.bf16.msra.mxu0 %v5927
    %6241 = vmatprep.subr.bf16.mxu0 0
    %6242 = vmatpush1.bf16.msra.mxu0 %v5926
    %6243 = vmatprep.subr.bf16.mxu0 0
    %6244 = vmatpush1.bf16.msra.mxu0 %v5925
    %6245 = vmatprep.subr.bf16.mxu0 0
    %6246 = vmatpush2.bf16.msra.mxu0 %v5940
    %6247 = vmatprep.subr.bf16.mxu0 0
    %6248 = vmatpush2.bf16.msra.mxu0 %v5939
    %6249 = vmatprep.subr.bf16.mxu0 0
    %6250 = vmatpush2.bf16.msra.mxu0 %v5938
    %6251 = vmatprep.subr.bf16.mxu0 0
    %6252 = vmatpush2.bf16.msra.mxu0 %v5937
    %6253 = vmatprep.subr.bf16.mxu0 0
    %6254 = vmatpush2.bf16.msra.mxu0 %v5936
    %6255 = vmatprep.subr.bf16.mxu0 0
    %6256 = vmatpush2.bf16.msra.mxu0 %v5935
    %6257 = vmatprep.subr.bf16.mxu0 0
    %6258 = vmatpush2.bf16.msra.mxu0 %v5934
    %6259 = vmatprep.subr.bf16.mxu0 0
    %6260 = vmatpush2.bf16.msra.mxu0 %v5933
    %6261 = vmatprep.mubr.bf16.mxu0 %v5107
    %6262 = vmatmul.mubr.bf16.gmra.mxu0 %v5106
    %v6263 = vpop.f32.mrf.mxu0
    %v6264 = vadd.f32 %v6224, %v6263
    %v6265 = vpop.f32.mrf.mxu0
    %v6266 = vpop.f32.mrf.mxu0
    %v6267 = vpop.f32.mrf.mxu0
    %6268 = vdwg.mxu0
    %6269 = vmatprep.subr.bf16.mxu0 0
    %6270 = vmatpush1.bf16.msra.mxu0 %v5948
    %6271 = vmatprep.subr.bf16.mxu0 0
    %6272 = vmatpush1.bf16.msra.mxu0 %v5947
    %6273 = vmatprep.subr.bf16.mxu0 0
    %6274 = vmatpush1.bf16.msra.mxu0 %v5946
    %6275 = vmatprep.subr.bf16.mxu0 0
    %6276 = vmatpush1.bf16.msra.mxu0 %v5945
    %6277 = vmatprep.subr.bf16.mxu0 0
    %6278 = vmatpush1.bf16.msra.mxu0 %v5944
    %6279 = vmatprep.subr.bf16.mxu0 0
    %6280 = vmatpush1.bf16.msra.mxu0 %v5943
    %6281 = vmatprep.subr.bf16.mxu0 0
    %6282 = vmatpush1.bf16.msra.mxu0 %v5942
    %6283 = vmatprep.subr.bf16.mxu0 0
    %6284 = vmatpush1.bf16.msra.mxu0 %v5941
    %6285 = vmatprep.subr.bf16.mxu0 0
    %6286 = vmatpush2.bf16.msra.mxu0 %v5956
    %6287 = vmatprep.subr.bf16.mxu0 0
    %6288 = vmatpush2.bf16.msra.mxu0 %v5955
    %6289 = vmatprep.subr.bf16.mxu0 0
    %6290 = vmatpush2.bf16.msra.mxu0 %v5954
    %6291 = vmatprep.subr.bf16.mxu0 0
    %6292 = vmatpush2.bf16.msra.mxu0 %v5953
    %6293 = vmatprep.subr.bf16.mxu0 0
    %6294 = vmatpush2.bf16.msra.mxu0 %v5952
    %6295 = vmatprep.subr.bf16.mxu0 0
    %6296 = vmatpush2.bf16.msra.mxu0 %v5951
    %6297 = vmatprep.subr.bf16.mxu0 0
    %6298 = vmatpush2.bf16.msra.mxu0 %v5950
    %6299 = vmatprep.subr.bf16.mxu0 0
    %6300 = vmatpush2.bf16.msra.mxu0 %v5949
    %6301 = vmatprep.mubr.bf16.mxu0 %v5109
    %6302 = vmatmul.mubr.bf16.gmra.mxu0 %v5108
    %v6303 = vpop.f32.mrf.mxu0
    %v6304 = vadd.f32 %v6264, %v6303
    %v6305 = vpop.f32.mrf.mxu0
    %v6306 = vpop.f32.mrf.mxu0
    %v6307 = vpop.f32.mrf.mxu0
    %6308 = vdwg.mxu0
    %6309 = vmatprep.subr.bf16.mxu0 0
    %6310 = vmatpush1.bf16.msra.mxu0 %v5964
    %6311 = vmatprep.subr.bf16.mxu0 0
    %6312 = vmatpush1.bf16.msra.mxu0 %v5963
    %6313 = vmatprep.subr.bf16.mxu0 0
    %6314 = vmatpush1.bf16.msra.mxu0 %v5962
    %6315 = vmatprep.subr.bf16.mxu0 0
    %6316 = vmatpush1.bf16.msra.mxu0 %v5961
    %6317 = vmatprep.subr.bf16.mxu0 0
    %6318 = vmatpush1.bf16.msra.mxu0 %v5960
    %6319 = vmatprep.subr.bf16.mxu0 0
    %6320 = vmatpush1.bf16.msra.mxu0 %v5959
    %6321 = vmatprep.subr.bf16.mxu0 0
    %6322 = vmatpush1.bf16.msra.mxu0 %v5958
    %6323 = vmatprep.subr.bf16.mxu0 0
    %6324 = vmatpush1.bf16.msra.mxu0 %v5957
    %6325 = vmatprep.subr.bf16.mxu0 0
    %6326 = vmatpush2.bf16.msra.mxu0 %v5972
    %6327 = vmatprep.subr.bf16.mxu0 0
    %6328 = vmatpush2.bf16.msra.mxu0 %v5971
    %6329 = vmatprep.subr.bf16.mxu0 0
    %6330 = vmatpush2.bf16.msra.mxu0 %v5970
    %6331 = vmatprep.subr.bf16.mxu0 0
    %6332 = vmatpush2.bf16.msra.mxu0 %v5969
    %6333 = vmatprep.subr.bf16.mxu0 0
    %6334 = vmatpush2.bf16.msra.mxu0 %v5968
    %6335 = vmatprep.subr.bf16.mxu0 0
    %6336 = vmatpush2.bf16.msra.mxu0 %v5967
    %6337 = vmatprep.subr.bf16.mxu0 0
    %6338 = vmatpush2.bf16.msra.mxu0 %v5966
    %6339 = vmatprep.subr.bf16.mxu0 0
    %6340 = vmatpush2.bf16.msra.mxu0 %v5965
    %6341 = vmatprep.mubr.bf16.mxu0 %v5111
    %6342 = vmatmul.mubr.bf16.gmra.mxu0 %v5110
    %v6343 = vpop.f32.mrf.mxu0
    %v6344 = vadd.f32 %v6304, %v6343
    %v6345 = vpop.f32.mrf.mxu0
    %v6346 = vpop.f32.mrf.mxu0
    %v6347 = vpop.f32.mrf.mxu0
    %6348 = vdwg.mxu0
    %6349 = vmatprep.subr.bf16.mxu0 0
    %6350 = vmatpush1.bf16.msra.mxu0 %v5980
    %6351 = vmatprep.subr.bf16.mxu0 0
    %6352 = vmatpush1.bf16.msra.mxu0 %v5979
    %6353 = vmatprep.subr.bf16.mxu0 0
    %6354 = vmatpush1.bf16.msra.mxu0 %v5978
    %6355 = vmatprep.subr.bf16.mxu0 0
    %6356 = vmatpush1.bf16.msra.mxu0 %v5977
    %6357 = vmatprep.subr.bf16.mxu0 0
    %6358 = vmatpush1.bf16.msra.mxu0 %v5976
    %6359 = vmatprep.subr.bf16.mxu0 0
    %6360 = vmatpush1.bf16.msra.mxu0 %v5975
    %6361 = vmatprep.subr.bf16.mxu0 0
    %6362 = vmatpush1.bf16.msra.mxu0 %v5974
    %6363 = vmatprep.subr.bf16.mxu0 0
    %6364 = vmatpush1.bf16.msra.mxu0 %v5973
    %6365 = vmatprep.subr.bf16.mxu0 0
    %6366 = vmatpush2.bf16.msra.mxu0 %v5988
    %6367 = vmatprep.subr.bf16.mxu0 0
    %6368 = vmatpush2.bf16.msra.mxu0 %v5987
    %6369 = vmatprep.subr.bf16.mxu0 0
    %6370 = vmatpush2.bf16.msra.mxu0 %v5986
    %6371 = vmatprep.subr.bf16.mxu0 0
    %6372 = vmatpush2.bf16.msra.mxu0 %v5985
    %6373 = vmatprep.subr.bf16.mxu0 0
    %6374 = vmatpush2.bf16.msra.mxu0 %v5984
    %6375 = vmatprep.subr.bf16.mxu0 0
    %6376 = vmatpush2.bf16.msra.mxu0 %v5983
    %6377 = vmatprep.subr.bf16.mxu0 0
    %6378 = vmatpush2.bf16.msra.mxu0 %v5982
    %6379 = vmatprep.subr.bf16.mxu0 0
    %6380 = vmatpush2.bf16.msra.mxu0 %v5981
    %6381 = vmatprep.mubr.bf16.mxu0 %v5113
    %6382 = vmatmul.mubr.bf16.gmra.mxu0 %v5112
    %v6383 = vpop.f32.mrf.mxu0
    %v6384 = vadd.f32 %v6344, %v6383
    %v6385 = vpop.f32.mrf.mxu0
    %v6386 = vpop.f32.mrf.mxu0
    %v6387 = vpop.f32.mrf.mxu0
    %6388 = vdwg.mxu0
    %6389 = vmatprep.subr.bf16.mxu0 0
    %6390 = vmatpush1.bf16.msra.mxu0 %v5996
    %6391 = vmatprep.subr.bf16.mxu0 0
    %6392 = vmatpush1.bf16.msra.mxu0 %v5995
    %6393 = vmatprep.subr.bf16.mxu0 0
    %6394 = vmatpush1.bf16.msra.mxu0 %v5994
    %6395 = vmatprep.subr.bf16.mxu0 0
    %6396 = vmatpush1.bf16.msra.mxu0 %v5993
    %6397 = vmatprep.subr.bf16.mxu0 0
    %6398 = vmatpush1.bf16.msra.mxu0 %v5992
    %6399 = vmatprep.subr.bf16.mxu0 0
    %6400 = vmatpush1.bf16.msra.mxu0 %v5991
    %6401 = vmatprep.subr.bf16.mxu0 0
    %6402 = vmatpush1.bf16.msra.mxu0 %v5990
    %6403 = vmatprep.subr.bf16.mxu0 0
    %6404 = vmatpush1.bf16.msra.mxu0 %v5989
    %6405 = vmatprep.subr.bf16.mxu0 0
    %6406 = vmatpush2.bf16.msra.mxu0 %v6004
    %6407 = vmatprep.subr.bf16.mxu0 0
    %6408 = vmatpush2.bf16.msra.mxu0 %v6003
    %6409 = vmatprep.subr.bf16.mxu0 0
    %6410 = vmatpush2.bf16.msra.mxu0 %v6002
    %6411 = vmatprep.subr.bf16.mxu0 0
    %6412 = vmatpush2.bf16.msra.mxu0 %v6001
    %6413 = vmatprep.subr.bf16.mxu0 0
    %6414 = vmatpush2.bf16.msra.mxu0 %v6000
    %6415 = vmatprep.subr.bf16.mxu0 0
    %6416 = vmatpush2.bf16.msra.mxu0 %v5999
    %6417 = vmatprep.subr.bf16.mxu0 0
    %6418 = vmatpush2.bf16.msra.mxu0 %v5998
    %6419 = vmatprep.subr.bf16.mxu0 0
    %6420 = vmatpush2.bf16.msra.mxu0 %v5997
    %6421 = vmatprep.mubr.bf16.mxu0 %v5115
    %6422 = vmatmul.mubr.bf16.gmra.mxu0 %v5114
    %v6423 = vpop.f32.mrf.mxu0
    %v6424 = vadd.f32 %v6384, %v6423
    %v6425 = vpop.f32.mrf.mxu0
    %v6426 = vpop.f32.mrf.mxu0
    %v6427 = vpop.f32.mrf.mxu0
    %6428 = vdwg.mxu0
    %6429 = vmatprep.subr.bf16.mxu0 0
    %6430 = vmatpush1.bf16.msra.mxu0 %v6012
    %6431 = vmatprep.subr.bf16.mxu0 0
    %6432 = vmatpush1.bf16.msra.mxu0 %v6011
    %6433 = vmatprep.subr.bf16.mxu0 0
    %6434 = vmatpush1.bf16.msra.mxu0 %v6010
    %6435 = vmatprep.subr.bf16.mxu0 0
    %6436 = vmatpush1.bf16.msra.mxu0 %v6009
    %6437 = vmatprep.subr.bf16.mxu0 0
    %6438 = vmatpush1.bf16.msra.mxu0 %v6008
    %6439 = vmatprep.subr.bf16.mxu0 0
    %6440 = vmatpush1.bf16.msra.mxu0 %v6007
    %6441 = vmatprep.subr.bf16.mxu0 0
    %6442 = vmatpush1.bf16.msra.mxu0 %v6006
    %6443 = vmatprep.subr.bf16.mxu0 0
    %6444 = vmatpush1.bf16.msra.mxu0 %v6005
    %6445 = vmatprep.subr.bf16.mxu0 0
    %6446 = vmatpush2.bf16.msra.mxu0 %v6020
    %6447 = vmatprep.subr.bf16.mxu0 0
    %6448 = vmatpush2.bf16.msra.mxu0 %v6019
    %6449 = vmatprep.subr.bf16.mxu0 0
    %6450 = vmatpush2.bf16.msra.mxu0 %v6018
    %6451 = vmatprep.subr.bf16.mxu0 0
    %6452 = vmatpush2.bf16.msra.mxu0 %v6017
    %6453 = vmatprep.subr.bf16.mxu0 0
    %6454 = vmatpush2.bf16.msra.mxu0 %v6016
    %6455 = vmatprep.subr.bf16.mxu0 0
    %6456 = vmatpush2.bf16.msra.mxu0 %v6015
    %6457 = vmatprep.subr.bf16.mxu0 0
    %6458 = vmatpush2.bf16.msra.mxu0 %v6014
    %6459 = vmatprep.subr.bf16.mxu0 0
    %6460 = vmatpush2.bf16.msra.mxu0 %v6013
    %6461 = vmatprep.mubr.bf16.mxu0 %v5117
    %6462 = vmatmul.mubr.bf16.gmra.mxu0 %v5116
    %v6463 = vpop.f32.mrf.mxu0
    %v6464 = vadd.f32 %v6424, %v6463
    %v6465 = vpop.f32.mrf.mxu0
    %v6466 = vpop.f32.mrf.mxu0
    %v6467 = vpop.f32.mrf.mxu0
    %6468 = vdwg.mxu0
    %6469 = vst [vmem:[#allocation17] sm:$0xff] %v6464
    // Predicated region
    $region74: #{_encoder_forward_jit.1} parent=1 // pred_check
      _
    $region75: #{_encoder_forward_jit.1} parent=1 // pred_check_branch
      %6471 = sbr.rel (0) target = $region77
    $region76: #{_encoder_forward_jit.1} parent=1 // pred_region
      %s6473 = ssub.s32 128, 128
      %6474 = vsyncadd [#allocation4], %s6473
      %s6476 = sshll.u32 [#allocation17], 4
      %s6477 = int_to_ptr.vmem [resolvable:$true] %s6476
      %6479 = dma.vmem_to_hbm [thread:$0]  %s6477, 128, %s9, [#allocation4]
    $region77: #{_encoder_forward_jit.1} parent=1 // pred_fallthru
      _
    // Predicated region
    $region78: #{_encoder_forward_jit.1} parent=1 // pred_check
      _
    $region79: #{_encoder_forward_jit.1} parent=1 // pred_check_branch
      %6481 = sbr.rel (0) target = $region81
    $region80: #{_encoder_forward_jit.1} parent=1 // pred_region
      %6482 = dma.done [#allocation4], 128
    $region81: #{_encoder_forward_jit.1} parent=1 // pred_fallthru
      _
    %6483 = vsyncpa [#allocation3], 1
    %6484 = vsyncpa [#allocation6], 1
    %6485 = vsyncpa [#allocation9], 1
    %6486 = vsyncpa [#allocation12], 1
    %6487 = vsyncpa [#allocation15], 1
    %6488 = vsyncpa [#allocation4], 1

</llo_original>
